<compile_context>
chip_gen: v7x
topology: tpu7x:2x2x1
jax: 0.10.0
libtpu: 0.0.40
codegen_flags: <defaults>
</compile_context>

<pallas_src>
import jax
import jax.numpy as jnp
from jax import lax
from jax.experimental import pallas as pl
from jax.experimental.pallas import tpu as pltpu


# ----------------------------------------------------------------------------- kernel
def lstm_kernel(x_ref,        # (T, B, 1)    f32  raw inputs (time-major)
                wih0_ref,     # (1, 4*Hp)    f32  layer-0 input weights (I=1 row)
                b0_ref,       # (1, 4*Hp)    f32  layer-0 fused bias
                whh_blk_ref,  # (2*Hp, 8*Hp) bf16 blockdiag(whh0, whh1)
                wih1_ref,     # (Hp, 4*Hp)   bf16 layer-1 input weights
                b1_ref,       # (1, 4*Hp)    f32  layer-1 fused bias
                wlin_ref,     # (1, Hp)      f32  head weights (row)
                blin_ref,     # (1, 1)       f32  head bias
                out_ref):     # (B, 1)       f32
    T, B, _ = x_ref.shape
    G4 = b0_ref.shape[-1]          # 4 * Hp
    Hp = G4 // 4

    # Hoist only the tiny row constants (a few vregs each); big weights are read
    # directly inside jnp.dot so the MXU pulls them straight from VMEM.
    wih0 = wih0_ref[...]
    b0 = b0_ref[...]
    b1 = b1_ref[...]

    def cell_update(gates, c):
        # Gate order (i, f, o, g); each block is Hp = 128 lanes -> vreg-aligned slices.
        sig = jax.nn.sigmoid(gates[:, :3 * Hp])   # one EUP pass over i|f|o
        g = jnp.tanh(gates[:, 3 * Hp:])           # one EUP pass over g
        i = sig[:, :Hp]
        f = sig[:, Hp:2 * Hp]
        o = sig[:, 2 * Hp:3 * Hp]
        c_new = f * c + i * g
        h_new = o * jnp.tanh(c_new)
        return h_new, c_new

    def step(t, carry):
        h0, c0, h1, c1 = carry
        # One block-diagonal recurrent matmul for BOTH layers' carry terms:
        # [h0, h1] @ blockdiag(whh0, whh1) -> [h0@whh0 | h1@whh1], K = 2*Hp = 256.
        hcat = jnp.concatenate([h0, h1], axis=-1).astype(jnp.bfloat16)   # (B, 2Hp)
        rec = jnp.dot(hcat, whh_blk_ref[...],
                      preferred_element_type=jnp.float32)                # (B, 8Hp)
        # ---- layer 0: degenerate I=1 input projection is a VPU broadcast-multiply.
        g0 = x_ref[t] * wih0 + b0 + rec[:, :G4]
        h0, c0 = cell_update(g0, c0)
        # ---- layer 1: only the fresh-h0 matmul is on the new dependency; the
        #      h1@whh1 contribution was already computed at step start (rec tail).
        g1 = (jnp.dot(h0.astype(jnp.bfloat16), wih1_ref[...],
                      preferred_element_type=jnp.float32)
              + rec[:, G4:] + b1)
        h1, c1 = cell_update(g1, c1)
        return (h0, c0, h1, c1)

    zeros = jnp.zeros((B, Hp), jnp.float32)
    unroll = True if T <= 32 else 2          # T is static; bound unrolling at large T
    _, _, h1_last, _ = lax.fori_loop(0, T, step, (zeros, zeros, zeros, zeros),
                                     unroll=unroll)

    # Head: VPU multiply + lane reduction instead of an N=1 MXU matmul.
    out_ref[...] = (jnp.sum(h1_last * wlin_ref[...], axis=-1, keepdims=True)
                    + blin_ref[...])


# ----------------------------------------------------------------------------- wrapper
def lstm_model_forward(x, kparams):
    """x: (B, T, I=1) float32 (PyTorch batch_first layout). Returns (B, 1)."""
    B, T, I = x.shape
    x_tb = jnp.transpose(x, (1, 0, 2))        # (T, B, 1) — tiny layout change only

    return pl.pallas_call(
        lstm_kernel,
        out_shape=jax.ShapeDtypeStruct((B, 1), jnp.float32),
        in_specs=[pl.BlockSpec(memory_space=pltpu.MemorySpace.VMEM)] * 8,
        out_specs=pl.BlockSpec(memory_space=pltpu.MemorySpace.VMEM),
    )(x_tb, kparams["wih0"], kparams["b0"], kparams["whh_blk"],
      kparams["wih1"], kparams["b1"], kparams["wlin_row"], kparams["blin"])


# ----------------------------------------------------------------- parameter handling
def init_params(key, input_size=1, hidden=64, output_size=1):
    """PyTorch-style LSTM/Linear params, uniform(-k, k) init, gate order (i,f,g,o)."""
    k = 1.0 / jnp.sqrt(hidden)
    keys = jax.random.split(key, 10)

    def u(kk, shape):
        return jax.random.uniform(kk, shape, jnp.float32, -k, k)

    return {
        "w_ih_l0": u(keys[0], (4 * hidden, input_size)),
        "w_hh_l0": u(keys[1], (4 * hidden, hidden)),
        "b_ih_l0": u(keys[2], (4 * hidden,)),
        "b_hh_l0": u(keys[3], (4 * hidden,)),
        "w_ih_l1": u(keys[4], (4 * hidden, hidden)),
        "w_hh_l1": u(keys[5], (4 * hidden, hidden)),
        "b_ih_l1": u(keys[6], (4 * hidden,)),
        "b_hh_l1": u(keys[7], (4 * hidden,)),
        "w_lin":   u(keys[8], (output_size, hidden)),
        "b_lin":   u(keys[9], (output_size,)),
    }


def prepare_kernel_params(params, hidden, hp=None):
    """Transpose to (in, 4H), reorder gates (i,f,g,o)->(i,f,o,g), zero-pad H->Hp,
    build the block-diagonal recurrent weight, and cast MXU operands to bf16."""
    H = hidden
    Hp = hp if hp is not None else ((H + 127) // 128) * 128

    def reorder_pad(w):                      # w: (4H, ...) gate-blocked rows
        i, f, g, o = jnp.split(w, 4, axis=0)

        def pad(blk):
            return jnp.pad(blk, ((0, Hp - H),) + ((0, 0),) * (blk.ndim - 1))

        return jnp.concatenate([pad(i), pad(f), pad(o), pad(g)], axis=0)  # (4Hp, ...)

    def gates_T(w):                          # (4H, in) -> (in, 4Hp)
        return reorder_pad(w).T

    def pad_rows(w_t):                       # (H, 4Hp) -> (Hp, 4Hp), zero rows
        return jnp.pad(w_t, ((0, Hp - H), (0, 0)))

    def bias(b_ih, b_hh):                    # fused, reordered, zero-padded -> (1, 4Hp)
        return reorder_pad((b_ih + b_hh).reshape(4 * H, 1)).reshape(1, 4 * Hp)

    whh0 = pad_rows(gates_T(params["w_hh_l0"]))   # (Hp, 4Hp) f32
    whh1 = pad_rows(gates_T(params["w_hh_l1"]))   # (Hp, 4Hp) f32
    # [h0, h1] @ whh_blk == [h0 @ whh0 | h1 @ whh1]
    whh_blk = jnp.zeros((2 * Hp, 8 * Hp), jnp.float32)
    whh_blk = whh_blk.at[:Hp, :4 * Hp].set(whh0)
    whh_blk = whh_blk.at[Hp:, 4 * Hp:].set(whh1)

    return {
        "wih0": gates_T(params["w_ih_l0"]),                              # (I, 4Hp) f32 (VPU)
        "b0":   bias(params["b_ih_l0"], params["b_hh_l0"]),              # (1, 4Hp) f32
        "whh_blk": whh_blk.astype(jnp.bfloat16),                         # (2Hp, 8Hp) bf16
        "wih1": pad_rows(gates_T(params["w_ih_l1"])).astype(jnp.bfloat16),  # (Hp, 4Hp) bf16
        "b1":   bias(params["b_ih_l1"], params["b_hh_l1"]),              # (1, 4Hp) f32
        "wlin_row": jnp.pad(params["w_lin"], ((0, 0), (0, Hp - H))),     # (1, Hp) f32
        "blin": params["b_lin"].reshape(1, 1),                           # (1, 1) f32
    }


# ----------------------------------------------------------------------------- reference
def reference_forward(x, params, H):
    """Pure-JAX f32 reference of the 2-layer LSTM + Linear on PyTorch-layout params."""
    B, T, I = x.shape

    def run_layer(seq, w_ih, w_hh, b_ih, b_hh):
        wih, whh, b = w_ih.T, w_hh.T, (b_ih + b_hh)[None, :]

        def step(carry, x_t):
            h, c = carry
            gates = x_t @ wih + h @ whh + b
            i = jax.nn.sigmoid(gates[:, 0 * H:1 * H])
            f = jax.nn.sigmoid(gates[:, 1 * H:2 * H])
            g = jnp.tanh(gates[:, 2 * H:3 * H])
            o = jax.nn.sigmoid(gates[:, 3 * H:4 * H])
            c = f * c + i * g
            h = o * jnp.tanh(c)
            return (h, c), h

        init = (jnp.zeros((B, H), jnp.float32), jnp.zeros((B, H), jnp.float32))
        _, hs = lax.scan(step, init, jnp.transpose(seq, (1, 0, 2)))
        return jnp.transpose(hs, (1, 0, 2))

    h0 = run_layer(x, params["w_ih_l0"], params["w_hh_l0"],
                   params["b_ih_l0"], params["b_hh_l0"])
    h1 = run_layer(h0, params["w_ih_l1"], params["w_hh_l1"],
                   params["b_ih_l1"], params["b_hh_l1"])
    return h1[:, -1, :] @ params["w_lin"].T + params["b_lin"][None, :]


if __name__ == "__main__":
    B, T, I, H = 2, 8, 1, 64
    key = jax.random.PRNGKey(0)
    k_x, k_p = jax.random.split(key)

    x = jax.random.normal(k_x, (B, T, I), jnp.float32)
    params = init_params(k_p, input_size=I, hidden=H, output_size=1)
    kparams = prepare_kernel_params(params, hidden=H)   # Hp = 128

    fwd = jax.jit(lstm_model_forward)
    out = jax.block_until_ready(fwd(x, kparams))

    ref = reference_forward(x, params, H)
    assert out.shape == (B, 1)
    # bf16 MXU operands -> loosened tolerance (f32 reference kept exact).
    assert jnp.allclose(out, ref, atol=2e-2, rtol=2e-2), (out, ref)

    print("KERNEL_OK")
</pallas_src>

<mosaic_0001>
module attributes {stable_mosaic.version = 11 : i64} {
  func.func @lstm_kernel(%arg0: memref<8x2x1xf32, #tpu.memory_space<vmem>>, %arg1: memref<1x512xf32, #tpu.memory_space<vmem>>, %arg2: memref<1x512xf32, #tpu.memory_space<vmem>>, %arg3: memref<256x1024xbf16, #tpu.memory_space<vmem>>, %arg4: memref<128x512xbf16, #tpu.memory_space<vmem>>, %arg5: memref<1x512xf32, #tpu.memory_space<vmem>>, %arg6: memref<1x128xf32, #tpu.memory_space<vmem>>, %arg7: memref<1x1xf32, #tpu.memory_space<vmem>>, %arg8: memref<2x1xf32, #tpu.memory_space<vmem>>) attributes {dimension_semantics = [], scalar_prefetch = 0 : i64, scratch_operands = 0 : i64, tpu.core_type = #tpu.core_type<tc>} {
    %c0 = arith.constant 0 : index
    %c0_0 = arith.constant 0 : index
    %0 = vector.load %arg1[%c0, %c0_0] : memref<1x512xf32, #tpu.memory_space<vmem>>, vector<1x512xf32>
    %c0_1 = arith.constant 0 : index
    %c0_2 = arith.constant 0 : index
    %1 = vector.load %arg2[%c0_1, %c0_2] : memref<1x512xf32, #tpu.memory_space<vmem>>, vector<1x512xf32>
    %c0_3 = arith.constant 0 : index
    %c0_4 = arith.constant 0 : index
    %2 = vector.load %arg5[%c0_3, %c0_4] : memref<1x512xf32, #tpu.memory_space<vmem>>, vector<1x512xf32>
    %cst = arith.constant 0.000000e+00 : f32
    %3 = vector.broadcast %cst : f32 to vector<2x128xf32>
    %c0_i32 = arith.constant 0 : i32
    %4 = tpu.concatenate %3, %3 in 1 : vector<2x128xf32>, vector<2x128xf32> -> vector<2x256xf32>
    %5 = arith.truncf %4 : vector<2x256xf32> to vector<2x256xbf16>
    %c0_5 = arith.constant 0 : index
    %c0_6 = arith.constant 0 : index
    %6 = vector.load %arg3[%c0_5, %c0_6] : memref<256x1024xbf16, #tpu.memory_space<vmem>>, vector<256x1024xbf16>
    %cst_7 = arith.constant dense<0.000000e+00> : vector<2x1024xf32>
    %7 = tpu.matmul %5, %6, %cst_7 {dimension_numbers = #tpu.dot_dimension_numbers<[1], [0], [0], [1], [0, 0, 1, 1], [], []>} : vector<2x256xbf16>, vector<256x1024xbf16>, vector<2x1024xf32> -> vector<2x1024xf32>
    %8 = arith.index_cast %c0_i32 : i32 to index
    %c0_8 = arith.constant 0 : index
    %c0_9 = arith.constant 0 : index
    %9 = vector.load %arg0[%8, %c0_8, %c0_9] : memref<8x2x1xf32, #tpu.memory_space<vmem>>, vector<1x2x1xf32>
    %10 = vector.shape_cast %9 : vector<1x2x1xf32> to vector<2x1xf32>
    %11 = vector.broadcast %10 : vector<2x1xf32> to vector<2x512xf32>
    %12 = vector.broadcast %0 : vector<1x512xf32> to vector<2x512xf32>
    %13 = arith.mulf %11, %12 : vector<2x512xf32>
    %14 = vector.broadcast %1 : vector<1x512xf32> to vector<2x512xf32>
    %15 = arith.addf %13, %14 : vector<2x512xf32>
    %16 = vector.extract_strided_slice %7 {offsets = [0, 0], sizes = [2, 512], strides = [1, 1]} : vector<2x1024xf32> to vector<2x512xf32>
    %17 = arith.addf %15, %16 : vector<2x512xf32>
    %18 = vector.extract_strided_slice %17 {offsets = [0, 0], sizes = [2, 384], strides = [1, 1]} : vector<2x512xf32> to vector<2x384xf32>
    %19 = arith.negf %18 : vector<2x384xf32>
    %20 = math.exp %19 : vector<2x384xf32>
    %cst_10 = arith.constant 1.000000e+00 : f32
    %21 = vector.broadcast %cst_10 : f32 to vector<2x384xf32>
    %22 = arith.addf %21, %20 : vector<2x384xf32>
    %23 = arith.divf %21, %22 : vector<2x384xf32>
    %24 = vector.extract_strided_slice %17 {offsets = [0, 384], sizes = [2, 128], strides = [1, 1]} : vector<2x512xf32> to vector<2x128xf32>
    %25 = math.tanh %24 : vector<2x128xf32>
    %26 = vector.extract_strided_slice %23 {offsets = [0, 0], sizes = [2, 128], strides = [1, 1]} : vector<2x384xf32> to vector<2x128xf32>
    %27 = vector.extract_strided_slice %23 {offsets = [0, 128], sizes = [2, 128], strides = [1, 1]} : vector<2x384xf32> to vector<2x128xf32>
    %28 = vector.extract_strided_slice %23 {offsets = [0, 256], sizes = [2, 128], strides = [1, 1]} : vector<2x384xf32> to vector<2x128xf32>
    %29 = arith.mulf %27, %3 : vector<2x128xf32>
    %30 = arith.mulf %26, %25 : vector<2x128xf32>
    %31 = arith.addf %29, %30 : vector<2x128xf32>
    %32 = math.tanh %31 : vector<2x128xf32>
    %33 = arith.mulf %28, %32 : vector<2x128xf32>
    %34 = arith.truncf %33 : vector<2x128xf32> to vector<2x128xbf16>
    %c0_11 = arith.constant 0 : index
    %c0_12 = arith.constant 0 : index
    %35 = vector.load %arg4[%c0_11, %c0_12] : memref<128x512xbf16, #tpu.memory_space<vmem>>, vector<128x512xbf16>
    %cst_13 = arith.constant dense<0.000000e+00> : vector<2x512xf32>
    %36 = tpu.matmul %34, %35, %cst_13 {dimension_numbers = #tpu.dot_dimension_numbers<[1], [0], [0], [1], [0, 0, 1, 1], [], []>} : vector<2x128xbf16>, vector<128x512xbf16>, vector<2x512xf32> -> vector<2x512xf32>
    %37 = vector.extract_strided_slice %7 {offsets = [0, 512], sizes = [2, 512], strides = [1, 1]} : vector<2x1024xf32> to vector<2x512xf32>
    %38 = arith.addf %36, %37 : vector<2x512xf32>
    %39 = vector.broadcast %2 : vector<1x512xf32> to vector<2x512xf32>
    %40 = arith.addf %38, %39 : vector<2x512xf32>
    %41 = vector.extract_strided_slice %40 {offsets = [0, 0], sizes = [2, 384], strides = [1, 1]} : vector<2x512xf32> to vector<2x384xf32>
    %42 = arith.negf %41 : vector<2x384xf32>
    %43 = math.exp %42 : vector<2x384xf32>
    %cst_14 = arith.constant 1.000000e+00 : f32
    %44 = vector.broadcast %cst_14 : f32 to vector<2x384xf32>
    %45 = arith.addf %44, %43 : vector<2x384xf32>
    %46 = arith.divf %44, %45 : vector<2x384xf32>
    %47 = vector.extract_strided_slice %40 {offsets = [0, 384], sizes = [2, 128], strides = [1, 1]} : vector<2x512xf32> to vector<2x128xf32>
    %48 = math.tanh %47 : vector<2x128xf32>
    %49 = vector.extract_strided_slice %46 {offsets = [0, 0], sizes = [2, 128], strides = [1, 1]} : vector<2x384xf32> to vector<2x128xf32>
    %50 = vector.extract_strided_slice %46 {offsets = [0, 128], sizes = [2, 128], strides = [1, 1]} : vector<2x384xf32> to vector<2x128xf32>
    %51 = vector.extract_strided_slice %46 {offsets = [0, 256], sizes = [2, 128], strides = [1, 1]} : vector<2x384xf32> to vector<2x128xf32>
    %52 = arith.mulf %50, %3 : vector<2x128xf32>
    %53 = arith.mulf %49, %48 : vector<2x128xf32>
    %54 = arith.addf %52, %53 : vector<2x128xf32>
    %55 = math.tanh %54 : vector<2x128xf32>
    %56 = arith.mulf %51, %55 : vector<2x128xf32>
    %c1_i32 = arith.constant 1 : i32
    %57 = tpu.concatenate %33, %56 in 1 : vector<2x128xf32>, vector<2x128xf32> -> vector<2x256xf32>
    %58 = arith.truncf %57 : vector<2x256xf32> to vector<2x256xbf16>
    %c0_15 = arith.constant 0 : index
    %c0_16 = arith.constant 0 : index
    %59 = vector.load %arg3[%c0_15, %c0_16] : memref<256x1024xbf16, #tpu.memory_space<vmem>>, vector<256x1024xbf16>
    %cst_17 = arith.constant dense<0.000000e+00> : vector<2x1024xf32>
    %60 = tpu.matmul %58, %59, %cst_17 {dimension_numbers = #tpu.dot_dimension_numbers<[1], [0], [0], [1], [0, 0, 1, 1], [], []>} : vector<2x256xbf16>, vector<256x1024xbf16>, vector<2x1024xf32> -> vector<2x1024xf32>
    %61 = arith.index_cast %c1_i32 : i32 to index
    %c0_18 = arith.constant 0 : index
    %c0_19 = arith.constant 0 : index
    %62 = vector.load %arg0[%61, %c0_18, %c0_19] : memref<8x2x1xf32, #tpu.memory_space<vmem>>, vector<1x2x1xf32>
    %63 = vector.shape_cast %62 : vector<1x2x1xf32> to vector<2x1xf32>
    %64 = vector.broadcast %63 : vector<2x1xf32> to vector<2x512xf32>
    %65 = vector.broadcast %0 : vector<1x512xf32> to vector<2x512xf32>
    %66 = arith.mulf %64, %65 : vector<2x512xf32>
    %67 = vector.broadcast %1 : vector<1x512xf32> to vector<2x512xf32>
    %68 = arith.addf %66, %67 : vector<2x512xf32>
    %69 = vector.extract_strided_slice %60 {offsets = [0, 0], sizes = [2, 512], strides = [1, 1]} : vector<2x1024xf32> to vector<2x512xf32>
    %70 = arith.addf %68, %69 : vector<2x512xf32>
    %71 = vector.extract_strided_slice %70 {offsets = [0, 0], sizes = [2, 384], strides = [1, 1]} : vector<2x512xf32> to vector<2x384xf32>
    %72 = arith.negf %71 : vector<2x384xf32>
    %73 = math.exp %72 : vector<2x384xf32>
    %cst_20 = arith.constant 1.000000e+00 : f32
    %74 = vector.broadcast %cst_20 : f32 to vector<2x384xf32>
    %75 = arith.addf %74, %73 : vector<2x384xf32>
    %76 = arith.divf %74, %75 : vector<2x384xf32>
    %77 = vector.extract_strided_slice %70 {offsets = [0, 384], sizes = [2, 128], strides = [1, 1]} : vector<2x512xf32> to vector<2x128xf32>
    %78 = math.tanh %77 : vector<2x128xf32>
    %79 = vector.extract_strided_slice %76 {offsets = [0, 0], sizes = [2, 128], strides = [1, 1]} : vector<2x384xf32> to vector<2x128xf32>
    %80 = vector.extract_strided_slice %76 {offsets = [0, 128], sizes = [2, 128], strides = [1, 1]} : vector<2x384xf32> to vector<2x128xf32>
    %81 = vector.extract_strided_slice %76 {offsets = [0, 256], sizes = [2, 128], strides = [1, 1]} : vector<2x384xf32> to vector<2x128xf32>
    %82 = arith.mulf %80, %31 : vector<2x128xf32>
    %83 = arith.mulf %79, %78 : vector<2x128xf32>
    %84 = arith.addf %82, %83 : vector<2x128xf32>
    %85 = math.tanh %84 : vector<2x128xf32>
    %86 = arith.mulf %81, %85 : vector<2x128xf32>
    %87 = arith.truncf %86 : vector<2x128xf32> to vector<2x128xbf16>
    %c0_21 = arith.constant 0 : index
    %c0_22 = arith.constant 0 : index
    %88 = vector.load %arg4[%c0_21, %c0_22] : memref<128x512xbf16, #tpu.memory_space<vmem>>, vector<128x512xbf16>
    %cst_23 = arith.constant dense<0.000000e+00> : vector<2x512xf32>
    %89 = tpu.matmul %87, %88, %cst_23 {dimension_numbers = #tpu.dot_dimension_numbers<[1], [0], [0], [1], [0, 0, 1, 1], [], []>} : vector<2x128xbf16>, vector<128x512xbf16>, vector<2x512xf32> -> vector<2x512xf32>
    %90 = vector.extract_strided_slice %60 {offsets = [0, 512], sizes = [2, 512], strides = [1, 1]} : vector<2x1024xf32> to vector<2x512xf32>
    %91 = arith.addf %89, %90 : vector<2x512xf32>
    %92 = vector.broadcast %2 : vector<1x512xf32> to vector<2x512xf32>
    %93 = arith.addf %91, %92 : vector<2x512xf32>
    %94 = vector.extract_strided_slice %93 {offsets = [0, 0], sizes = [2, 384], strides = [1, 1]} : vector<2x512xf32> to vector<2x384xf32>
    %95 = arith.negf %94 : vector<2x384xf32>
    %96 = math.exp %95 : vector<2x384xf32>
    %cst_24 = arith.constant 1.000000e+00 : f32
    %97 = vector.broadcast %cst_24 : f32 to vector<2x384xf32>
    %98 = arith.addf %97, %96 : vector<2x384xf32>
    %99 = arith.divf %97, %98 : vector<2x384xf32>
    %100 = vector.extract_strided_slice %93 {offsets = [0, 384], sizes = [2, 128], strides = [1, 1]} : vector<2x512xf32> to vector<2x128xf32>
    %101 = math.tanh %100 : vector<2x128xf32>
    %102 = vector.extract_strided_slice %99 {offsets = [0, 0], sizes = [2, 128], strides = [1, 1]} : vector<2x384xf32> to vector<2x128xf32>
    %103 = vector.extract_strided_slice %99 {offsets = [0, 128], sizes = [2, 128], strides = [1, 1]} : vector<2x384xf32> to vector<2x128xf32>
    %104 = vector.extract_strided_slice %99 {offsets = [0, 256], sizes = [2, 128], strides = [1, 1]} : vector<2x384xf32> to vector<2x128xf32>
    %105 = arith.mulf %103, %54 : vector<2x128xf32>
    %106 = arith.mulf %102, %101 : vector<2x128xf32>
    %107 = arith.addf %105, %106 : vector<2x128xf32>
    %108 = math.tanh %107 : vector<2x128xf32>
    %109 = arith.mulf %104, %108 : vector<2x128xf32>
    %c2_i32 = arith.constant 2 : i32
    %110 = tpu.concatenate %86, %109 in 1 : vector<2x128xf32>, vector<2x128xf32> -> vector<2x256xf32>
    %111 = arith.truncf %110 : vector<2x256xf32> to vector<2x256xbf16>
    %c0_25 = arith.constant 0 : index
    %c0_26 = arith.constant 0 : index
    %112 = vector.load %arg3[%c0_25, %c0_26] : memref<256x1024xbf16, #tpu.memory_space<vmem>>, vector<256x1024xbf16>
    %cst_27 = arith.constant dense<0.000000e+00> : vector<2x1024xf32>
    %113 = tpu.matmul %111, %112, %cst_27 {dimension_numbers = #tpu.dot_dimension_numbers<[1], [0], [0], [1], [0, 0, 1, 1], [], []>} : vector<2x256xbf16>, vector<256x1024xbf16>, vector<2x1024xf32> -> vector<2x1024xf32>
    %114 = arith.index_cast %c2_i32 : i32 to index
    %c0_28 = arith.constant 0 : index
    %c0_29 = arith.constant 0 : index
    %115 = vector.load %arg0[%114, %c0_28, %c0_29] : memref<8x2x1xf32, #tpu.memory_space<vmem>>, vector<1x2x1xf32>
    %116 = vector.shape_cast %115 : vector<1x2x1xf32> to vector<2x1xf32>
    %117 = vector.broadcast %116 : vector<2x1xf32> to vector<2x512xf32>
    %118 = vector.broadcast %0 : vector<1x512xf32> to vector<2x512xf32>
    %119 = arith.mulf %117, %118 : vector<2x512xf32>
    %120 = vector.broadcast %1 : vector<1x512xf32> to vector<2x512xf32>
    %121 = arith.addf %119, %120 : vector<2x512xf32>
    %122 = vector.extract_strided_slice %113 {offsets = [0, 0], sizes = [2, 512], strides = [1, 1]} : vector<2x1024xf32> to vector<2x512xf32>
    %123 = arith.addf %121, %122 : vector<2x512xf32>
    %124 = vector.extract_strided_slice %123 {offsets = [0, 0], sizes = [2, 384], strides = [1, 1]} : vector<2x512xf32> to vector<2x384xf32>
    %125 = arith.negf %124 : vector<2x384xf32>
    %126 = math.exp %125 : vector<2x384xf32>
    %cst_30 = arith.constant 1.000000e+00 : f32
    %127 = vector.broadcast %cst_30 : f32 to vector<2x384xf32>
    %128 = arith.addf %127, %126 : vector<2x384xf32>
    %129 = arith.divf %127, %128 : vector<2x384xf32>
    %130 = vector.extract_strided_slice %123 {offsets = [0, 384], sizes = [2, 128], strides = [1, 1]} : vector<2x512xf32> to vector<2x128xf32>
    %131 = math.tanh %130 : vector<2x128xf32>
    %132 = vector.extract_strided_slice %129 {offsets = [0, 0], sizes = [2, 128], strides = [1, 1]} : vector<2x384xf32> to vector<2x128xf32>
    %133 = vector.extract_strided_slice %129 {offsets = [0, 128], sizes = [2, 128], strides = [1, 1]} : vector<2x384xf32> to vector<2x128xf32>
    %134 = vector.extract_strided_slice %129 {offsets = [0, 256], sizes = [2, 128], strides = [1, 1]} : vector<2x384xf32> to vector<2x128xf32>
    %135 = arith.mulf %133, %84 : vector<2x128xf32>
    %136 = arith.mulf %132, %131 : vector<2x128xf32>
    %137 = arith.addf %135, %136 : vector<2x128xf32>
    %138 = math.tanh %137 : vector<2x128xf32>
    %139 = arith.mulf %134, %138 : vector<2x128xf32>
    %140 = arith.truncf %139 : vector<2x128xf32> to vector<2x128xbf16>
    %c0_31 = arith.constant 0 : index
    %c0_32 = arith.constant 0 : index
    %141 = vector.load %arg4[%c0_31, %c0_32] : memref<128x512xbf16, #tpu.memory_space<vmem>>, vector<128x512xbf16>
    %cst_33 = arith.constant dense<0.000000e+00> : vector<2x512xf32>
    %142 = tpu.matmul %140, %141, %cst_33 {dimension_numbers = #tpu.dot_dimension_numbers<[1], [0], [0], [1], [0, 0, 1, 1], [], []>} : vector<2x128xbf16>, vector<128x512xbf16>, vector<2x512xf32> -> vector<2x512xf32>
    %143 = vector.extract_strided_slice %113 {offsets = [0, 512], sizes = [2, 512], strides = [1, 1]} : vector<2x1024xf32> to vector<2x512xf32>
    %144 = arith.addf %142, %143 : vector<2x512xf32>
    %145 = vector.broadcast %2 : vector<1x512xf32> to vector<2x512xf32>
    %146 = arith.addf %144, %145 : vector<2x512xf32>
    %147 = vector.extract_strided_slice %146 {offsets = [0, 0], sizes = [2, 384], strides = [1, 1]} : vector<2x512xf32> to vector<2x384xf32>
    %148 = arith.negf %147 : vector<2x384xf32>
    %149 = math.exp %148 : vector<2x384xf32>
    %cst_34 = arith.constant 1.000000e+00 : f32
    %150 = vector.broadcast %cst_34 : f32 to vector<2x384xf32>
    %151 = arith.addf %150, %149 : vector<2x384xf32>
    %152 = arith.divf %150, %151 : vector<2x384xf32>
    %153 = vector.extract_strided_slice %146 {offsets = [0, 384], sizes = [2, 128], strides = [1, 1]} : vector<2x512xf32> to vector<2x128xf32>
    %154 = math.tanh %153 : vector<2x128xf32>
    %155 = vector.extract_strided_slice %152 {offsets = [0, 0], sizes = [2, 128], strides = [1, 1]} : vector<2x384xf32> to vector<2x128xf32>
    %156 = vector.extract_strided_slice %152 {offsets = [0, 128], sizes = [2, 128], strides = [1, 1]} : vector<2x384xf32> to vector<2x128xf32>
    %157 = vector.extract_strided_slice %152 {offsets = [0, 256], sizes = [2, 128], strides = [1, 1]} : vector<2x384xf32> to vector<2x128xf32>
    %158 = arith.mulf %156, %107 : vector<2x128xf32>
    %159 = arith.mulf %155, %154 : vector<2x128xf32>
    %160 = arith.addf %158, %159 : vector<2x128xf32>
    %161 = math.tanh %160 : vector<2x128xf32>
    %162 = arith.mulf %157, %161 : vector<2x128xf32>
    %c3_i32 = arith.constant 3 : i32
    %163 = tpu.concatenate %139, %162 in 1 : vector<2x128xf32>, vector<2x128xf32> -> vector<2x256xf32>
    %164 = arith.truncf %163 : vector<2x256xf32> to vector<2x256xbf16>
    %c0_35 = arith.constant 0 : index
    %c0_36 = arith.constant 0 : index
    %165 = vector.load %arg3[%c0_35, %c0_36] : memref<256x1024xbf16, #tpu.memory_space<vmem>>, vector<256x1024xbf16>
    %cst_37 = arith.constant dense<0.000000e+00> : vector<2x1024xf32>
    %166 = tpu.matmul %164, %165, %cst_37 {dimension_numbers = #tpu.dot_dimension_numbers<[1], [0], [0], [1], [0, 0, 1, 1], [], []>} : vector<2x256xbf16>, vector<256x1024xbf16>, vector<2x1024xf32> -> vector<2x1024xf32>
    %167 = arith.index_cast %c3_i32 : i32 to index
    %c0_38 = arith.constant 0 : index
    %c0_39 = arith.constant 0 : index
    %168 = vector.load %arg0[%167, %c0_38, %c0_39] : memref<8x2x1xf32, #tpu.memory_space<vmem>>, vector<1x2x1xf32>
    %169 = vector.shape_cast %168 : vector<1x2x1xf32> to vector<2x1xf32>
    %170 = vector.broadcast %169 : vector<2x1xf32> to vector<2x512xf32>
    %171 = vector.broadcast %0 : vector<1x512xf32> to vector<2x512xf32>
    %172 = arith.mulf %170, %171 : vector<2x512xf32>
    %173 = vector.broadcast %1 : vector<1x512xf32> to vector<2x512xf32>
    %174 = arith.addf %172, %173 : vector<2x512xf32>
    %175 = vector.extract_strided_slice %166 {offsets = [0, 0], sizes = [2, 512], strides = [1, 1]} : vector<2x1024xf32> to vector<2x512xf32>
    %176 = arith.addf %174, %175 : vector<2x512xf32>
    %177 = vector.extract_strided_slice %176 {offsets = [0, 0], sizes = [2, 384], strides = [1, 1]} : vector<2x512xf32> to vector<2x384xf32>
    %178 = arith.negf %177 : vector<2x384xf32>
    %179 = math.exp %178 : vector<2x384xf32>
    %cst_40 = arith.constant 1.000000e+00 : f32
    %180 = vector.broadcast %cst_40 : f32 to vector<2x384xf32>
    %181 = arith.addf %180, %179 : vector<2x384xf32>
    %182 = arith.divf %180, %181 : vector<2x384xf32>
    %183 = vector.extract_strided_slice %176 {offsets = [0, 384], sizes = [2, 128], strides = [1, 1]} : vector<2x512xf32> to vector<2x128xf32>
    %184 = math.tanh %183 : vector<2x128xf32>
    %185 = vector.extract_strided_slice %182 {offsets = [0, 0], sizes = [2, 128], strides = [1, 1]} : vector<2x384xf32> to vector<2x128xf32>
    %186 = vector.extract_strided_slice %182 {offsets = [0, 128], sizes = [2, 128], strides = [1, 1]} : vector<2x384xf32> to vector<2x128xf32>
    %187 = vector.extract_strided_slice %182 {offsets = [0, 256], sizes = [2, 128], strides = [1, 1]} : vector<2x384xf32> to vector<2x128xf32>
    %188 = arith.mulf %186, %137 : vector<2x128xf32>
    %189 = arith.mulf %185, %184 : vector<2x128xf32>
    %190 = arith.addf %188, %189 : vector<2x128xf32>
    %191 = math.tanh %190 : vector<2x128xf32>
    %192 = arith.mulf %187, %191 : vector<2x128xf32>
    %193 = arith.truncf %192 : vector<2x128xf32> to vector<2x128xbf16>
    %c0_41 = arith.constant 0 : index
    %c0_42 = arith.constant 0 : index
    %194 = vector.load %arg4[%c0_41, %c0_42] : memref<128x512xbf16, #tpu.memory_space<vmem>>, vector<128x512xbf16>
    %cst_43 = arith.constant dense<0.000000e+00> : vector<2x512xf32>
    %195 = tpu.matmul %193, %194, %cst_43 {dimension_numbers = #tpu.dot_dimension_numbers<[1], [0], [0], [1], [0, 0, 1, 1], [], []>} : vector<2x128xbf16>, vector<128x512xbf16>, vector<2x512xf32> -> vector<2x512xf32>
    %196 = vector.extract_strided_slice %166 {offsets = [0, 512], sizes = [2, 512], strides = [1, 1]} : vector<2x1024xf32> to vector<2x512xf32>
    %197 = arith.addf %195, %196 : vector<2x512xf32>
    %198 = vector.broadcast %2 : vector<1x512xf32> to vector<2x512xf32>
    %199 = arith.addf %197, %198 : vector<2x512xf32>
    %200 = vector.extract_strided_slice %199 {offsets = [0, 0], sizes = [2, 384], strides = [1, 1]} : vector<2x512xf32> to vector<2x384xf32>
    %201 = arith.negf %200 : vector<2x384xf32>
    %202 = math.exp %201 : vector<2x384xf32>
    %cst_44 = arith.constant 1.000000e+00 : f32
    %203 = vector.broadcast %cst_44 : f32 to vector<2x384xf32>
    %204 = arith.addf %203, %202 : vector<2x384xf32>
    %205 = arith.divf %203, %204 : vector<2x384xf32>
    %206 = vector.extract_strided_slice %199 {offsets = [0, 384], sizes = [2, 128], strides = [1, 1]} : vector<2x512xf32> to vector<2x128xf32>
    %207 = math.tanh %206 : vector<2x128xf32>
    %208 = vector.extract_strided_slice %205 {offsets = [0, 0], sizes = [2, 128], strides = [1, 1]} : vector<2x384xf32> to vector<2x128xf32>
    %209 = vector.extract_strided_slice %205 {offsets = [0, 128], sizes = [2, 128], strides = [1, 1]} : vector<2x384xf32> to vector<2x128xf32>
    %210 = vector.extract_strided_slice %205 {offsets = [0, 256], sizes = [2, 128], strides = [1, 1]} : vector<2x384xf32> to vector<2x128xf32>
    %211 = arith.mulf %209, %160 : vector<2x128xf32>
    %212 = arith.mulf %208, %207 : vector<2x128xf32>
    %213 = arith.addf %211, %212 : vector<2x128xf32>
    %214 = math.tanh %213 : vector<2x128xf32>
    %215 = arith.mulf %210, %214 : vector<2x128xf32>
    %c4_i32 = arith.constant 4 : i32
    %216 = tpu.concatenate %192, %215 in 1 : vector<2x128xf32>, vector<2x128xf32> -> vector<2x256xf32>
    %217 = arith.truncf %216 : vector<2x256xf32> to vector<2x256xbf16>
    %c0_45 = arith.constant 0 : index
    %c0_46 = arith.constant 0 : index
    %218 = vector.load %arg3[%c0_45, %c0_46] : memref<256x1024xbf16, #tpu.memory_space<vmem>>, vector<256x1024xbf16>
    %cst_47 = arith.constant dense<0.000000e+00> : vector<2x1024xf32>
    %219 = tpu.matmul %217, %218, %cst_47 {dimension_numbers = #tpu.dot_dimension_numbers<[1], [0], [0], [1], [0, 0, 1, 1], [], []>} : vector<2x256xbf16>, vector<256x1024xbf16>, vector<2x1024xf32> -> vector<2x1024xf32>
    %220 = arith.index_cast %c4_i32 : i32 to index
    %c0_48 = arith.constant 0 : index
    %c0_49 = arith.constant 0 : index
    %221 = vector.load %arg0[%220, %c0_48, %c0_49] : memref<8x2x1xf32, #tpu.memory_space<vmem>>, vector<1x2x1xf32>
    %222 = vector.shape_cast %221 : vector<1x2x1xf32> to vector<2x1xf32>
    %223 = vector.broadcast %222 : vector<2x1xf32> to vector<2x512xf32>
    %224 = vector.broadcast %0 : vector<1x512xf32> to vector<2x512xf32>
    %225 = arith.mulf %223, %224 : vector<2x512xf32>
    %226 = vector.broadcast %1 : vector<1x512xf32> to vector<2x512xf32>
    %227 = arith.addf %225, %226 : vector<2x512xf32>
    %228 = vector.extract_strided_slice %219 {offsets = [0, 0], sizes = [2, 512], strides = [1, 1]} : vector<2x1024xf32> to vector<2x512xf32>
    %229 = arith.addf %227, %228 : vector<2x512xf32>
    %230 = vector.extract_strided_slice %229 {offsets = [0, 0], sizes = [2, 384], strides = [1, 1]} : vector<2x512xf32> to vector<2x384xf32>
    %231 = arith.negf %230 : vector<2x384xf32>
    %232 = math.exp %231 : vector<2x384xf32>
    %cst_50 = arith.constant 1.000000e+00 : f32
    %233 = vector.broadcast %cst_50 : f32 to vector<2x384xf32>
    %234 = arith.addf %233, %232 : vector<2x384xf32>
    %235 = arith.divf %233, %234 : vector<2x384xf32>
    %236 = vector.extract_strided_slice %229 {offsets = [0, 384], sizes = [2, 128], strides = [1, 1]} : vector<2x512xf32> to vector<2x128xf32>
    %237 = math.tanh %236 : vector<2x128xf32>
    %238 = vector.extract_strided_slice %235 {offsets = [0, 0], sizes = [2, 128], strides = [1, 1]} : vector<2x384xf32> to vector<2x128xf32>
    %239 = vector.extract_strided_slice %235 {offsets = [0, 128], sizes = [2, 128], strides = [1, 1]} : vector<2x384xf32> to vector<2x128xf32>
    %240 = vector.extract_strided_slice %235 {offsets = [0, 256], sizes = [2, 128], strides = [1, 1]} : vector<2x384xf32> to vector<2x128xf32>
    %241 = arith.mulf %239, %190 : vector<2x128xf32>
    %242 = arith.mulf %238, %237 : vector<2x128xf32>
    %243 = arith.addf %241, %242 : vector<2x128xf32>
    %244 = math.tanh %243 : vector<2x128xf32>
    %245 = arith.mulf %240, %244 : vector<2x128xf32>
    %246 = arith.truncf %245 : vector<2x128xf32> to vector<2x128xbf16>
    %c0_51 = arith.constant 0 : index
    %c0_52 = arith.constant 0 : index
    %247 = vector.load %arg4[%c0_51, %c0_52] : memref<128x512xbf16, #tpu.memory_space<vmem>>, vector<128x512xbf16>
    %cst_53 = arith.constant dense<0.000000e+00> : vector<2x512xf32>
    %248 = tpu.matmul %246, %247, %cst_53 {dimension_numbers = #tpu.dot_dimension_numbers<[1], [0], [0], [1], [0, 0, 1, 1], [], []>} : vector<2x128xbf16>, vector<128x512xbf16>, vector<2x512xf32> -> vector<2x512xf32>
    %249 = vector.extract_strided_slice %219 {offsets = [0, 512], sizes = [2, 512], strides = [1, 1]} : vector<2x1024xf32> to vector<2x512xf32>
    %250 = arith.addf %248, %249 : vector<2x512xf32>
    %251 = vector.broadcast %2 : vector<1x512xf32> to vector<2x512xf32>
    %252 = arith.addf %250, %251 : vector<2x512xf32>
    %253 = vector.extract_strided_slice %252 {offsets = [0, 0], sizes = [2, 384], strides = [1, 1]} : vector<2x512xf32> to vector<2x384xf32>
    %254 = arith.negf %253 : vector<2x384xf32>
    %255 = math.exp %254 : vector<2x384xf32>
    %cst_54 = arith.constant 1.000000e+00 : f32
    %256 = vector.broadcast %cst_54 : f32 to vector<2x384xf32>
    %257 = arith.addf %256, %255 : vector<2x384xf32>
    %258 = arith.divf %256, %257 : vector<2x384xf32>
    %259 = vector.extract_strided_slice %252 {offsets = [0, 384], sizes = [2, 128], strides = [1, 1]} : vector<2x512xf32> to vector<2x128xf32>
    %260 = math.tanh %259 : vector<2x128xf32>
    %261 = vector.extract_strided_slice %258 {offsets = [0, 0], sizes = [2, 128], strides = [1, 1]} : vector<2x384xf32> to vector<2x128xf32>
    %262 = vector.extract_strided_slice %258 {offsets = [0, 128], sizes = [2, 128], strides = [1, 1]} : vector<2x384xf32> to vector<2x128xf32>
    %263 = vector.extract_strided_slice %258 {offsets = [0, 256], sizes = [2, 128], strides = [1, 1]} : vector<2x384xf32> to vector<2x128xf32>
    %264 = arith.mulf %262, %213 : vector<2x128xf32>
    %265 = arith.mulf %261, %260 : vector<2x128xf32>
    %266 = arith.addf %264, %265 : vector<2x128xf32>
    %267 = math.tanh %266 : vector<2x128xf32>
    %268 = arith.mulf %263, %267 : vector<2x128xf32>
    %c5_i32 = arith.constant 5 : i32
    %269 = tpu.concatenate %245, %268 in 1 : vector<2x128xf32>, vector<2x128xf32> -> vector<2x256xf32>
    %270 = arith.truncf %269 : vector<2x256xf32> to vector<2x256xbf16>
    %c0_55 = arith.constant 0 : index
    %c0_56 = arith.constant 0 : index
    %271 = vector.load %arg3[%c0_55, %c0_56] : memref<256x1024xbf16, #tpu.memory_space<vmem>>, vector<256x1024xbf16>
    %cst_57 = arith.constant dense<0.000000e+00> : vector<2x1024xf32>
    %272 = tpu.matmul %270, %271, %cst_57 {dimension_numbers = #tpu.dot_dimension_numbers<[1], [0], [0], [1], [0, 0, 1, 1], [], []>} : vector<2x256xbf16>, vector<256x1024xbf16>, vector<2x1024xf32> -> vector<2x1024xf32>
    %273 = arith.index_cast %c5_i32 : i32 to index
    %c0_58 = arith.constant 0 : index
    %c0_59 = arith.constant 0 : index
    %274 = vector.load %arg0[%273, %c0_58, %c0_59] : memref<8x2x1xf32, #tpu.memory_space<vmem>>, vector<1x2x1xf32>
    %275 = vector.shape_cast %274 : vector<1x2x1xf32> to vector<2x1xf32>
    %276 = vector.broadcast %275 : vector<2x1xf32> to vector<2x512xf32>
    %277 = vector.broadcast %0 : vector<1x512xf32> to vector<2x512xf32>
    %278 = arith.mulf %276, %277 : vector<2x512xf32>
    %279 = vector.broadcast %1 : vector<1x512xf32> to vector<2x512xf32>
    %280 = arith.addf %278, %279 : vector<2x512xf32>
    %281 = vector.extract_strided_slice %272 {offsets = [0, 0], sizes = [2, 512], strides = [1, 1]} : vector<2x1024xf32> to vector<2x512xf32>
    %282 = arith.addf %280, %281 : vector<2x512xf32>
    %283 = vector.extract_strided_slice %282 {offsets = [0, 0], sizes = [2, 384], strides = [1, 1]} : vector<2x512xf32> to vector<2x384xf32>
    %284 = arith.negf %283 : vector<2x384xf32>
    %285 = math.exp %284 : vector<2x384xf32>
    %cst_60 = arith.constant 1.000000e+00 : f32
    %286 = vector.broadcast %cst_60 : f32 to vector<2x384xf32>
    %287 = arith.addf %286, %285 : vector<2x384xf32>
    %288 = arith.divf %286, %287 : vector<2x384xf32>
    %289 = vector.extract_strided_slice %282 {offsets = [0, 384], sizes = [2, 128], strides = [1, 1]} : vector<2x512xf32> to vector<2x128xf32>
    %290 = math.tanh %289 : vector<2x128xf32>
    %291 = vector.extract_strided_slice %288 {offsets = [0, 0], sizes = [2, 128], strides = [1, 1]} : vector<2x384xf32> to vector<2x128xf32>
    %292 = vector.extract_strided_slice %288 {offsets = [0, 128], sizes = [2, 128], strides = [1, 1]} : vector<2x384xf32> to vector<2x128xf32>
    %293 = vector.extract_strided_slice %288 {offsets = [0, 256], sizes = [2, 128], strides = [1, 1]} : vector<2x384xf32> to vector<2x128xf32>
    %294 = arith.mulf %292, %243 : vector<2x128xf32>
    %295 = arith.mulf %291, %290 : vector<2x128xf32>
    %296 = arith.addf %294, %295 : vector<2x128xf32>
    %297 = math.tanh %296 : vector<2x128xf32>
    %298 = arith.mulf %293, %297 : vector<2x128xf32>
    %299 = arith.truncf %298 : vector<2x128xf32> to vector<2x128xbf16>
    %c0_61 = arith.constant 0 : index
    %c0_62 = arith.constant 0 : index
    %300 = vector.load %arg4[%c0_61, %c0_62] : memref<128x512xbf16, #tpu.memory_space<vmem>>, vector<128x512xbf16>
    %cst_63 = arith.constant dense<0.000000e+00> : vector<2x512xf32>
    %301 = tpu.matmul %299, %300, %cst_63 {dimension_numbers = #tpu.dot_dimension_numbers<[1], [0], [0], [1], [0, 0, 1, 1], [], []>} : vector<2x128xbf16>, vector<128x512xbf16>, vector<2x512xf32> -> vector<2x512xf32>
    %302 = vector.extract_strided_slice %272 {offsets = [0, 512], sizes = [2, 512], strides = [1, 1]} : vector<2x1024xf32> to vector<2x512xf32>
    %303 = arith.addf %301, %302 : vector<2x512xf32>
    %304 = vector.broadcast %2 : vector<1x512xf32> to vector<2x512xf32>
    %305 = arith.addf %303, %304 : vector<2x512xf32>
    %306 = vector.extract_strided_slice %305 {offsets = [0, 0], sizes = [2, 384], strides = [1, 1]} : vector<2x512xf32> to vector<2x384xf32>
    %307 = arith.negf %306 : vector<2x384xf32>
    %308 = math.exp %307 : vector<2x384xf32>
    %cst_64 = arith.constant 1.000000e+00 : f32
    %309 = vector.broadcast %cst_64 : f32 to vector<2x384xf32>
    %310 = arith.addf %309, %308 : vector<2x384xf32>
    %311 = arith.divf %309, %310 : vector<2x384xf32>
    %312 = vector.extract_strided_slice %305 {offsets = [0, 384], sizes = [2, 128], strides = [1, 1]} : vector<2x512xf32> to vector<2x128xf32>
    %313 = math.tanh %312 : vector<2x128xf32>
    %314 = vector.extract_strided_slice %311 {offsets = [0, 0], sizes = [2, 128], strides = [1, 1]} : vector<2x384xf32> to vector<2x128xf32>
    %315 = vector.extract_strided_slice %311 {offsets = [0, 128], sizes = [2, 128], strides = [1, 1]} : vector<2x384xf32> to vector<2x128xf32>
    %316 = vector.extract_strided_slice %311 {offsets = [0, 256], sizes = [2, 128], strides = [1, 1]} : vector<2x384xf32> to vector<2x128xf32>
    %317 = arith.mulf %315, %266 : vector<2x128xf32>
    %318 = arith.mulf %314, %313 : vector<2x128xf32>
    %319 = arith.addf %317, %318 : vector<2x128xf32>
    %320 = math.tanh %319 : vector<2x128xf32>
    %321 = arith.mulf %316, %320 : vector<2x128xf32>
    %c6_i32 = arith.constant 6 : i32
    %322 = tpu.concatenate %298, %321 in 1 : vector<2x128xf32>, vector<2x128xf32> -> vector<2x256xf32>
    %323 = arith.truncf %322 : vector<2x256xf32> to vector<2x256xbf16>
    %c0_65 = arith.constant 0 : index
    %c0_66 = arith.constant 0 : index
    %324 = vector.load %arg3[%c0_65, %c0_66] : memref<256x1024xbf16, #tpu.memory_space<vmem>>, vector<256x1024xbf16>
    %cst_67 = arith.constant dense<0.000000e+00> : vector<2x1024xf32>
    %325 = tpu.matmul %323, %324, %cst_67 {dimension_numbers = #tpu.dot_dimension_numbers<[1], [0], [0], [1], [0, 0, 1, 1], [], []>} : vector<2x256xbf16>, vector<256x1024xbf16>, vector<2x1024xf32> -> vector<2x1024xf32>
    %326 = arith.index_cast %c6_i32 : i32 to index
    %c0_68 = arith.constant 0 : index
    %c0_69 = arith.constant 0 : index
    %327 = vector.load %arg0[%326, %c0_68, %c0_69] : memref<8x2x1xf32, #tpu.memory_space<vmem>>, vector<1x2x1xf32>
    %328 = vector.shape_cast %327 : vector<1x2x1xf32> to vector<2x1xf32>
    %329 = vector.broadcast %328 : vector<2x1xf32> to vector<2x512xf32>
    %330 = vector.broadcast %0 : vector<1x512xf32> to vector<2x512xf32>
    %331 = arith.mulf %329, %330 : vector<2x512xf32>
    %332 = vector.broadcast %1 : vector<1x512xf32> to vector<2x512xf32>
    %333 = arith.addf %331, %332 : vector<2x512xf32>
    %334 = vector.extract_strided_slice %325 {offsets = [0, 0], sizes = [2, 512], strides = [1, 1]} : vector<2x1024xf32> to vector<2x512xf32>
    %335 = arith.addf %333, %334 : vector<2x512xf32>
    %336 = vector.extract_strided_slice %335 {offsets = [0, 0], sizes = [2, 384], strides = [1, 1]} : vector<2x512xf32> to vector<2x384xf32>
    %337 = arith.negf %336 : vector<2x384xf32>
    %338 = math.exp %337 : vector<2x384xf32>
    %cst_70 = arith.constant 1.000000e+00 : f32
    %339 = vector.broadcast %cst_70 : f32 to vector<2x384xf32>
    %340 = arith.addf %339, %338 : vector<2x384xf32>
    %341 = arith.divf %339, %340 : vector<2x384xf32>
    %342 = vector.extract_strided_slice %335 {offsets = [0, 384], sizes = [2, 128], strides = [1, 1]} : vector<2x512xf32> to vector<2x128xf32>
    %343 = math.tanh %342 : vector<2x128xf32>
    %344 = vector.extract_strided_slice %341 {offsets = [0, 0], sizes = [2, 128], strides = [1, 1]} : vector<2x384xf32> to vector<2x128xf32>
    %345 = vector.extract_strided_slice %341 {offsets = [0, 128], sizes = [2, 128], strides = [1, 1]} : vector<2x384xf32> to vector<2x128xf32>
    %346 = vector.extract_strided_slice %341 {offsets = [0, 256], sizes = [2, 128], strides = [1, 1]} : vector<2x384xf32> to vector<2x128xf32>
    %347 = arith.mulf %345, %296 : vector<2x128xf32>
    %348 = arith.mulf %344, %343 : vector<2x128xf32>
    %349 = arith.addf %347, %348 : vector<2x128xf32>
    %350 = math.tanh %349 : vector<2x128xf32>
    %351 = arith.mulf %346, %350 : vector<2x128xf32>
    %352 = arith.truncf %351 : vector<2x128xf32> to vector<2x128xbf16>
    %c0_71 = arith.constant 0 : index
    %c0_72 = arith.constant 0 : index
    %353 = vector.load %arg4[%c0_71, %c0_72] : memref<128x512xbf16, #tpu.memory_space<vmem>>, vector<128x512xbf16>
    %cst_73 = arith.constant dense<0.000000e+00> : vector<2x512xf32>
    %354 = tpu.matmul %352, %353, %cst_73 {dimension_numbers = #tpu.dot_dimension_numbers<[1], [0], [0], [1], [0, 0, 1, 1], [], []>} : vector<2x128xbf16>, vector<128x512xbf16>, vector<2x512xf32> -> vector<2x512xf32>
    %355 = vector.extract_strided_slice %325 {offsets = [0, 512], sizes = [2, 512], strides = [1, 1]} : vector<2x1024xf32> to vector<2x512xf32>
    %356 = arith.addf %354, %355 : vector<2x512xf32>
    %357 = vector.broadcast %2 : vector<1x512xf32> to vector<2x512xf32>
    %358 = arith.addf %356, %357 : vector<2x512xf32>
    %359 = vector.extract_strided_slice %358 {offsets = [0, 0], sizes = [2, 384], strides = [1, 1]} : vector<2x512xf32> to vector<2x384xf32>
    %360 = arith.negf %359 : vector<2x384xf32>
    %361 = math.exp %360 : vector<2x384xf32>
    %cst_74 = arith.constant 1.000000e+00 : f32
    %362 = vector.broadcast %cst_74 : f32 to vector<2x384xf32>
    %363 = arith.addf %362, %361 : vector<2x384xf32>
    %364 = arith.divf %362, %363 : vector<2x384xf32>
    %365 = vector.extract_strided_slice %358 {offsets = [0, 384], sizes = [2, 128], strides = [1, 1]} : vector<2x512xf32> to vector<2x128xf32>
    %366 = math.tanh %365 : vector<2x128xf32>
    %367 = vector.extract_strided_slice %364 {offsets = [0, 0], sizes = [2, 128], strides = [1, 1]} : vector<2x384xf32> to vector<2x128xf32>
    %368 = vector.extract_strided_slice %364 {offsets = [0, 128], sizes = [2, 128], strides = [1, 1]} : vector<2x384xf32> to vector<2x128xf32>
    %369 = vector.extract_strided_slice %364 {offsets = [0, 256], sizes = [2, 128], strides = [1, 1]} : vector<2x384xf32> to vector<2x128xf32>
    %370 = arith.mulf %368, %319 : vector<2x128xf32>
    %371 = arith.mulf %367, %366 : vector<2x128xf32>
    %372 = arith.addf %370, %371 : vector<2x128xf32>
    %373 = math.tanh %372 : vector<2x128xf32>
    %374 = arith.mulf %369, %373 : vector<2x128xf32>
    %c7_i32 = arith.constant 7 : i32
    %375 = tpu.concatenate %351, %374 in 1 : vector<2x128xf32>, vector<2x128xf32> -> vector<2x256xf32>
    %376 = arith.truncf %375 : vector<2x256xf32> to vector<2x256xbf16>
    %c0_75 = arith.constant 0 : index
    %c0_76 = arith.constant 0 : index
    %377 = vector.load %arg3[%c0_75, %c0_76] : memref<256x1024xbf16, #tpu.memory_space<vmem>>, vector<256x1024xbf16>
    %cst_77 = arith.constant dense<0.000000e+00> : vector<2x1024xf32>
    %378 = tpu.matmul %376, %377, %cst_77 {dimension_numbers = #tpu.dot_dimension_numbers<[1], [0], [0], [1], [0, 0, 1, 1], [], []>} : vector<2x256xbf16>, vector<256x1024xbf16>, vector<2x1024xf32> -> vector<2x1024xf32>
    %379 = arith.index_cast %c7_i32 : i32 to index
    %c0_78 = arith.constant 0 : index
    %c0_79 = arith.constant 0 : index
    %380 = vector.load %arg0[%379, %c0_78, %c0_79] : memref<8x2x1xf32, #tpu.memory_space<vmem>>, vector<1x2x1xf32>
    %381 = vector.shape_cast %380 : vector<1x2x1xf32> to vector<2x1xf32>
    %382 = vector.broadcast %381 : vector<2x1xf32> to vector<2x512xf32>
    %383 = vector.broadcast %0 : vector<1x512xf32> to vector<2x512xf32>
    %384 = arith.mulf %382, %383 : vector<2x512xf32>
    %385 = vector.broadcast %1 : vector<1x512xf32> to vector<2x512xf32>
    %386 = arith.addf %384, %385 : vector<2x512xf32>
    %387 = vector.extract_strided_slice %378 {offsets = [0, 0], sizes = [2, 512], strides = [1, 1]} : vector<2x1024xf32> to vector<2x512xf32>
    %388 = arith.addf %386, %387 : vector<2x512xf32>
    %389 = vector.extract_strided_slice %388 {offsets = [0, 0], sizes = [2, 384], strides = [1, 1]} : vector<2x512xf32> to vector<2x384xf32>
    %390 = arith.negf %389 : vector<2x384xf32>
    %391 = math.exp %390 : vector<2x384xf32>
    %cst_80 = arith.constant 1.000000e+00 : f32
    %392 = vector.broadcast %cst_80 : f32 to vector<2x384xf32>
    %393 = arith.addf %392, %391 : vector<2x384xf32>
    %394 = arith.divf %392, %393 : vector<2x384xf32>
    %395 = vector.extract_strided_slice %388 {offsets = [0, 384], sizes = [2, 128], strides = [1, 1]} : vector<2x512xf32> to vector<2x128xf32>
    %396 = math.tanh %395 : vector<2x128xf32>
    %397 = vector.extract_strided_slice %394 {offsets = [0, 0], sizes = [2, 128], strides = [1, 1]} : vector<2x384xf32> to vector<2x128xf32>
    %398 = vector.extract_strided_slice %394 {offsets = [0, 128], sizes = [2, 128], strides = [1, 1]} : vector<2x384xf32> to vector<2x128xf32>
    %399 = vector.extract_strided_slice %394 {offsets = [0, 256], sizes = [2, 128], strides = [1, 1]} : vector<2x384xf32> to vector<2x128xf32>
    %400 = arith.mulf %398, %349 : vector<2x128xf32>
    %401 = arith.mulf %397, %396 : vector<2x128xf32>
    %402 = arith.addf %400, %401 : vector<2x128xf32>
    %403 = math.tanh %402 : vector<2x128xf32>
    %404 = arith.mulf %399, %403 : vector<2x128xf32>
    %405 = arith.truncf %404 : vector<2x128xf32> to vector<2x128xbf16>
    %c0_81 = arith.constant 0 : index
    %c0_82 = arith.constant 0 : index
    %406 = vector.load %arg4[%c0_81, %c0_82] : memref<128x512xbf16, #tpu.memory_space<vmem>>, vector<128x512xbf16>
    %cst_83 = arith.constant dense<0.000000e+00> : vector<2x512xf32>
    %407 = tpu.matmul %405, %406, %cst_83 {dimension_numbers = #tpu.dot_dimension_numbers<[1], [0], [0], [1], [0, 0, 1, 1], [], []>} : vector<2x128xbf16>, vector<128x512xbf16>, vector<2x512xf32> -> vector<2x512xf32>
    %408 = vector.extract_strided_slice %378 {offsets = [0, 512], sizes = [2, 512], strides = [1, 1]} : vector<2x1024xf32> to vector<2x512xf32>
    %409 = arith.addf %407, %408 : vector<2x512xf32>
    %410 = vector.broadcast %2 : vector<1x512xf32> to vector<2x512xf32>
    %411 = arith.addf %409, %410 : vector<2x512xf32>
    %412 = vector.extract_strided_slice %411 {offsets = [0, 0], sizes = [2, 384], strides = [1, 1]} : vector<2x512xf32> to vector<2x384xf32>
    %413 = arith.negf %412 : vector<2x384xf32>
    %414 = math.exp %413 : vector<2x384xf32>
    %cst_84 = arith.constant 1.000000e+00 : f32
    %415 = vector.broadcast %cst_84 : f32 to vector<2x384xf32>
    %416 = arith.addf %415, %414 : vector<2x384xf32>
    %417 = arith.divf %415, %416 : vector<2x384xf32>
    %418 = vector.extract_strided_slice %411 {offsets = [0, 384], sizes = [2, 128], strides = [1, 1]} : vector<2x512xf32> to vector<2x128xf32>
    %419 = math.tanh %418 : vector<2x128xf32>
    %420 = vector.extract_strided_slice %417 {offsets = [0, 0], sizes = [2, 128], strides = [1, 1]} : vector<2x384xf32> to vector<2x128xf32>
    %421 = vector.extract_strided_slice %417 {offsets = [0, 128], sizes = [2, 128], strides = [1, 1]} : vector<2x384xf32> to vector<2x128xf32>
    %422 = vector.extract_strided_slice %417 {offsets = [0, 256], sizes = [2, 128], strides = [1, 1]} : vector<2x384xf32> to vector<2x128xf32>
    %423 = arith.mulf %421, %372 : vector<2x128xf32>
    %424 = arith.mulf %420, %419 : vector<2x128xf32>
    %425 = arith.addf %423, %424 : vector<2x128xf32>
    %426 = math.tanh %425 : vector<2x128xf32>
    %427 = arith.mulf %422, %426 : vector<2x128xf32>
    %c8_i32 = arith.constant 8 : i32
    %c0_85 = arith.constant 0 : index
    %c0_86 = arith.constant 0 : index
    %428 = vector.load %arg6[%c0_85, %c0_86] : memref<1x128xf32, #tpu.memory_space<vmem>>, vector<1x128xf32>
    %429 = vector.broadcast %428 : vector<1x128xf32> to vector<2x128xf32>
    %430 = arith.mulf %427, %429 : vector<2x128xf32>
    %cst_87 = arith.constant dense<0.000000e+00> : vector<2xf32>
    %431 = vector.multi_reduction <add>, %430, %cst_87 [1] : vector<2x128xf32> to vector<2xf32>
    %432 = vector.shape_cast %431 : vector<2xf32> to vector<2x1xf32>
    %c0_88 = arith.constant 0 : index
    %c0_89 = arith.constant 0 : index
    %433 = vector.load %arg7[%c0_88, %c0_89] : memref<1x1xf32, #tpu.memory_space<vmem>>, vector<1x1xf32>
    %434 = vector.broadcast %433 : vector<1x1xf32> to vector<2x1xf32>
    %435 = arith.addf %432, %434 : vector<2x1xf32>
    %c0_90 = arith.constant 0 : index
    %c0_91 = arith.constant 0 : index
    %436 = vector.load %arg8[%c0_90, %c0_91] : memref<2x1xf32, #tpu.memory_space<vmem>>, vector<2x1xf32>
    tpu.vector_store %arg8[%c0_90, %c0_91], %435 {strides = array<i32>} : memref<2x1xf32, #tpu.memory_space<vmem>>, vector<2x1xf32>,
    return
  }
}

</mosaic_0001>

<llo_original>
// kernel: lstm_model_forward.1
$region0: #{lstm_model_forward.1}
  #allocation0 [shape = 'u32[]', space=smem, size = 0x4, offset = 0x4, fixed_abs, tag = 'smem constant byte address 0x4 - core index']
  #allocation1 [shape = 'u32[144,128]{1,0:T(1,128)}', space=vmem, size = 0x12000, scoped, tag = 'internal scratch']
  #allocation2 [shape = 'f32[1,1]{1,0:T(1,128)S(1)}', space=vmem, size = 0x200, scoped, tag = 'scoped memory for lstm_model_forward.1']
  %s0 = inlined_call_operand.vmem [shape: f32[8,2,1], index: 0, kind: input, shape index: {}]
  %s1 = inlined_call_operand.vmem [shape: f32[1,512], index: 1, kind: input, shape index: {}]
  %s2 = inlined_call_operand.vmem [shape: f32[1,512], index: 2, kind: input, shape index: {}]
  %s3 = inlined_call_operand.hbm [shape: bf16[256,1024], index: 3, kind: input, shape index: {}]
  %s4 = inlined_call_operand.hbm [shape: bf16[128,512], index: 4, kind: input, shape index: {}]
  %s5 = inlined_call_operand.vmem [shape: f32[1,512], index: 5, kind: input, shape index: {}]
  %s6 = inlined_call_operand.vmem [shape: f32[1,128], index: 6, kind: input, shape index: {}]
  %s7 = inlined_call_operand.<no memory space> [shape: f32[1,1], index: 7, kind: input, shape index: {}]
  %s8 = inlined_call_operand.vmem [shape: f32[2,1], index: 8, kind: output, shape index: {}]
  %s9 = sld [smem:[#allocation0]]
  $region50: #{lstm_model_forward.1} parent=0
    _
  %s11 = ssub.s32 1, %s9
  %s12 = scalar_select 0, %s11, %s9
  %v13 = vstv %s7
  %14 = vst [vmem:[#allocation2] sm:$0x1] %v13
  $region1: #{lstm_model_forward.1} parent=0
    #allocation3 [shape = 'u8[524288]{0}', space=vmem, size = 0x80000, scoped, tag = 'input window, operand 3, single buffered']
    #allocation4 [shape = 's32[1]{0}', space=sflag, size = 0x4, scoped, tag = 'scoped memory for lstm_model_forward.1']
    #allocation5 [shape = 'u8[131072]{0}', space=vmem, size = 0x20000, scoped, tag = 'input window, operand 4, single buffered']
    #allocation6 [shape = 's32[1]{0}', space=sflag, size = 0x4, scoped, tag = 'scoped memory for lstm_model_forward.1']
    %15 = vsyncpa [#allocation4], 0
    %16 = vsyncpa [#allocation6], 0
    // Predicated region
    $region2: #{lstm_model_forward.1} parent=1 // pred_check
      _
    $region3: #{lstm_model_forward.1} parent=1 // pred_check_branch
      %18 = sbr.rel (0) target = $region5
    $region4: #{lstm_model_forward.1} parent=1 // pred_region
      _
    $region5: #{lstm_model_forward.1} parent=1 // pred_fallthru
      _
    // Predicated region
    $region6: #{lstm_model_forward.1} parent=1 // pred_check
      _
    $region7: #{lstm_model_forward.1} parent=1 // pred_check_branch
      %20 = sbr.rel (0) target = $region9
    $region8: #{lstm_model_forward.1} parent=1 // pred_region
      _
    $region9: #{lstm_model_forward.1} parent=1 // pred_fallthru
      _
    // Predicated region
    $region10: #{lstm_model_forward.1} parent=1 // pred_check
      _
    $region11: #{lstm_model_forward.1} parent=1 // pred_check_branch
      %22 = sbr.rel (0) target = $region13
    $region12: #{lstm_model_forward.1} parent=1 // pred_region
      _
    $region13: #{lstm_model_forward.1} parent=1 // pred_fallthru
      _
    // Predicated region
    $region14: #{lstm_model_forward.1} parent=1 // pred_check
      _
    $region15: #{lstm_model_forward.1} parent=1 // pred_check_branch
      %24 = sbr.rel (0) target = $region17
    $region16: #{lstm_model_forward.1} parent=1 // pred_region
      %s26 = ssub.s32 16384, 16384
      %27 = vsyncadd [#allocation4], %s26
      %s28 = sshll.u32 [#allocation3], 4
      %s29 = int_to_ptr.vmem [resolvable:$true] %s28
      %34 = dma.hbm_to_vmem [thread:$0]  %s3, 16384, %s29, [#allocation4], 512, 512, 32
    $region17: #{lstm_model_forward.1} parent=1 // pred_fallthru
      _
    // Predicated region
    $region18: #{lstm_model_forward.1} parent=1 // pred_check
      _
    $region19: #{lstm_model_forward.1} parent=1 // pred_check_branch
      %36 = sbr.rel (0) target = $region21
    $region20: #{lstm_model_forward.1} parent=1 // pred_region
      %s38 = ssub.s32 4096, 4096
      %39 = vsyncadd [#allocation6], %s38
      %s40 = sshll.u32 [#allocation5], 4
      %s41 = int_to_ptr.vmem [resolvable:$true] %s40
      %46 = dma.hbm_to_vmem [thread:$0]  %s4, 4096, %s41, [#allocation6], 256, 256, 16
    $region21: #{lstm_model_forward.1} parent=1 // pred_fallthru
      _
    // Predicated region
    $region22: #{lstm_model_forward.1} parent=1 // pred_check
      _
    $region23: #{lstm_model_forward.1} parent=1 // pred_check_branch
      %48 = sbr.rel (0) target = $region25
    $region24: #{lstm_model_forward.1} parent=1 // pred_region
      _
    $region25: #{lstm_model_forward.1} parent=1 // pred_fallthru
      _
    // Predicated region
    $region26: #{lstm_model_forward.1} parent=1 // pred_check
      _
    $region27: #{lstm_model_forward.1} parent=1 // pred_check_branch
      %50 = sbr.rel (0) target = $region29
    $region28: #{lstm_model_forward.1} parent=1 // pred_region
      _
    $region29: #{lstm_model_forward.1} parent=1 // pred_fallthru
      _
    // Predicated region
    $region30: #{lstm_model_forward.1} parent=1 // pred_check
      _
    $region31: #{lstm_model_forward.1} parent=1 // pred_check_branch
      %52 = sbr.rel (0) target = $region33
    $region32: #{lstm_model_forward.1} parent=1 // pred_region
      _
    $region33: #{lstm_model_forward.1} parent=1 // pred_fallthru
      _
    // Predicated region
    $region34: #{lstm_model_forward.1} parent=1 // pred_check
      _
    $region35: #{lstm_model_forward.1} parent=1 // pred_check_branch
      %54 = sbr.rel (0) target = $region37
    $region36: #{lstm_model_forward.1} parent=1 // pred_region
      %55 = dma.done [#allocation4], 16384
    $region37: #{lstm_model_forward.1} parent=1 // pred_fallthru
      _
    // Predicated region
    $region38: #{lstm_model_forward.1} parent=1 // pred_check
      _
    $region39: #{lstm_model_forward.1} parent=1 // pred_check_branch
      %57 = sbr.rel (0) target = $region41
    $region40: #{lstm_model_forward.1} parent=1 // pred_region
      %58 = dma.done [#allocation6], 4096
    $region41: #{lstm_model_forward.1} parent=1 // pred_fallthru
      _
    %v60 = vld [vmem:[%s1] sm:$0xf]
    %v61 = vld [vmem:[%s2] sm:$0xf]
    %v62 = vld [vmem:[%s5] sm:$0xf]
    %v63 = vpack.c.bf16 0.0, 0.0
    %v64 = vld [vmem:[#allocation3] sm:$0xff]
    %v65 = vld [vmem:[#allocation3 + $0x8] sm:$0xff]
    %v66 = vld [vmem:[#allocation3 + $0x10] sm:$0xff]
    %v67 = vld [vmem:[#allocation3 + $0x18] sm:$0xff]
    %v68 = vld [vmem:[#allocation3 + $0x20] sm:$0xff]
    %v69 = vld [vmem:[#allocation3 + $0x28] sm:$0xff]
    %v70 = vld [vmem:[#allocation3 + $0x30] sm:$0xff]
    %v71 = vld [vmem:[#allocation3 + $0x38] sm:$0xff]
    %v72 = vld [vmem:[#allocation3 + $0x40] sm:$0xff]
    %v73 = vld [vmem:[#allocation3 + $0x48] sm:$0xff]
    %v74 = vld [vmem:[#allocation3 + $0x50] sm:$0xff]
    %v75 = vld [vmem:[#allocation3 + $0x58] sm:$0xff]
    %v76 = vld [vmem:[#allocation3 + $0x60] sm:$0xff]
    %v77 = vld [vmem:[#allocation3 + $0x68] sm:$0xff]
    %v78 = vld [vmem:[#allocation3 + $0x70] sm:$0xff]
    %v79 = vld [vmem:[#allocation3 + $0x78] sm:$0xff]
    %v80 = vld [vmem:[#allocation3 + $0x80] sm:$0xff]
    %v81 = vld [vmem:[#allocation3 + $0x88] sm:$0xff]
    %v82 = vld [vmem:[#allocation3 + $0x90] sm:$0xff]
    %v83 = vld [vmem:[#allocation3 + $0x98] sm:$0xff]
    %v84 = vld [vmem:[#allocation3 + $0xa0] sm:$0xff]
    %v85 = vld [vmem:[#allocation3 + $0xa8] sm:$0xff]
    %v86 = vld [vmem:[#allocation3 + $0xb0] sm:$0xff]
    %v87 = vld [vmem:[#allocation3 + $0xb8] sm:$0xff]
    %v88 = vld [vmem:[#allocation3 + $0xc0] sm:$0xff]
    %v89 = vld [vmem:[#allocation3 + $0xc8] sm:$0xff]
    %v90 = vld [vmem:[#allocation3 + $0xd0] sm:$0xff]
    %v91 = vld [vmem:[#allocation3 + $0xd8] sm:$0xff]
    %v92 = vld [vmem:[#allocation3 + $0xe0] sm:$0xff]
    %v93 = vld [vmem:[#allocation3 + $0xe8] sm:$0xff]
    %v94 = vld [vmem:[#allocation3 + $0xf0] sm:$0xff]
    %v95 = vld [vmem:[#allocation3 + $0xf8] sm:$0xff]
    %v96 = vld [vmem:[#allocation3 + $0x100] sm:$0xff]
    %v97 = vld [vmem:[#allocation3 + $0x108] sm:$0xff]
    %v98 = vld [vmem:[#allocation3 + $0x110] sm:$0xff]
    %v99 = vld [vmem:[#allocation3 + $0x118] sm:$0xff]
    %v100 = vld [vmem:[#allocation3 + $0x120] sm:$0xff]
    %v101 = vld [vmem:[#allocation3 + $0x128] sm:$0xff]
    %v102 = vld [vmem:[#allocation3 + $0x130] sm:$0xff]
    %v103 = vld [vmem:[#allocation3 + $0x138] sm:$0xff]
    %v104 = vld [vmem:[#allocation3 + $0x140] sm:$0xff]
    %v105 = vld [vmem:[#allocation3 + $0x148] sm:$0xff]
    %v106 = vld [vmem:[#allocation3 + $0x150] sm:$0xff]
    %v107 = vld [vmem:[#allocation3 + $0x158] sm:$0xff]
    %v108 = vld [vmem:[#allocation3 + $0x160] sm:$0xff]
    %v109 = vld [vmem:[#allocation3 + $0x168] sm:$0xff]
    %v110 = vld [vmem:[#allocation3 + $0x170] sm:$0xff]
    %v111 = vld [vmem:[#allocation3 + $0x178] sm:$0xff]
    %v112 = vld [vmem:[#allocation3 + $0x180] sm:$0xff]
    %v113 = vld [vmem:[#allocation3 + $0x188] sm:$0xff]
    %v114 = vld [vmem:[#allocation3 + $0x190] sm:$0xff]
    %v115 = vld [vmem:[#allocation3 + $0x198] sm:$0xff]
    %v116 = vld [vmem:[#allocation3 + $0x1a0] sm:$0xff]
    %v117 = vld [vmem:[#allocation3 + $0x1a8] sm:$0xff]
    %v118 = vld [vmem:[#allocation3 + $0x1b0] sm:$0xff]
    %v119 = vld [vmem:[#allocation3 + $0x1b8] sm:$0xff]
    %v120 = vld [vmem:[#allocation3 + $0x1c0] sm:$0xff]
    %v121 = vld [vmem:[#allocation3 + $0x1c8] sm:$0xff]
    %v122 = vld [vmem:[#allocation3 + $0x1d0] sm:$0xff]
    %v123 = vld [vmem:[#allocation3 + $0x1d8] sm:$0xff]
    %v124 = vld [vmem:[#allocation3 + $0x1e0] sm:$0xff]
    %v125 = vld [vmem:[#allocation3 + $0x1e8] sm:$0xff]
    %v126 = vld [vmem:[#allocation3 + $0x1f0] sm:$0xff]
    %v127 = vld [vmem:[#allocation3 + $0x1f8] sm:$0xff]
    %v128 = vld [vmem:[#allocation3 + $0x200] sm:$0xff]
    %v129 = vld [vmem:[#allocation3 + $0x208] sm:$0xff]
    %v130 = vld [vmem:[#allocation3 + $0x210] sm:$0xff]
    %v131 = vld [vmem:[#allocation3 + $0x218] sm:$0xff]
    %v132 = vld [vmem:[#allocation3 + $0x220] sm:$0xff]
    %v133 = vld [vmem:[#allocation3 + $0x228] sm:$0xff]
    %v134 = vld [vmem:[#allocation3 + $0x230] sm:$0xff]
    %v135 = vld [vmem:[#allocation3 + $0x238] sm:$0xff]
    %v136 = vld [vmem:[#allocation3 + $0x240] sm:$0xff]
    %v137 = vld [vmem:[#allocation3 + $0x248] sm:$0xff]
    %v138 = vld [vmem:[#allocation3 + $0x250] sm:$0xff]
    %v139 = vld [vmem:[#allocation3 + $0x258] sm:$0xff]
    %v140 = vld [vmem:[#allocation3 + $0x260] sm:$0xff]
    %v141 = vld [vmem:[#allocation3 + $0x268] sm:$0xff]
    %v142 = vld [vmem:[#allocation3 + $0x270] sm:$0xff]
    %v143 = vld [vmem:[#allocation3 + $0x278] sm:$0xff]
    %v144 = vld [vmem:[#allocation3 + $0x280] sm:$0xff]
    %v145 = vld [vmem:[#allocation3 + $0x288] sm:$0xff]
    %v146 = vld [vmem:[#allocation3 + $0x290] sm:$0xff]
    %v147 = vld [vmem:[#allocation3 + $0x298] sm:$0xff]
    %v148 = vld [vmem:[#allocation3 + $0x2a0] sm:$0xff]
    %v149 = vld [vmem:[#allocation3 + $0x2a8] sm:$0xff]
    %v150 = vld [vmem:[#allocation3 + $0x2b0] sm:$0xff]
    %v151 = vld [vmem:[#allocation3 + $0x2b8] sm:$0xff]
    %v152 = vld [vmem:[#allocation3 + $0x2c0] sm:$0xff]
    %v153 = vld [vmem:[#allocation3 + $0x2c8] sm:$0xff]
    %v154 = vld [vmem:[#allocation3 + $0x2d0] sm:$0xff]
    %v155 = vld [vmem:[#allocation3 + $0x2d8] sm:$0xff]
    %v156 = vld [vmem:[#allocation3 + $0x2e0] sm:$0xff]
    %v157 = vld [vmem:[#allocation3 + $0x2e8] sm:$0xff]
    %v158 = vld [vmem:[#allocation3 + $0x2f0] sm:$0xff]
    %v159 = vld [vmem:[#allocation3 + $0x2f8] sm:$0xff]
    %v160 = vld [vmem:[#allocation3 + $0x300] sm:$0xff]
    %v161 = vld [vmem:[#allocation3 + $0x308] sm:$0xff]
    %v162 = vld [vmem:[#allocation3 + $0x310] sm:$0xff]
    %v163 = vld [vmem:[#allocation3 + $0x318] sm:$0xff]
    %v164 = vld [vmem:[#allocation3 + $0x320] sm:$0xff]
    %v165 = vld [vmem:[#allocation3 + $0x328] sm:$0xff]
    %v166 = vld [vmem:[#allocation3 + $0x330] sm:$0xff]
    %v167 = vld [vmem:[#allocation3 + $0x338] sm:$0xff]
    %v168 = vld [vmem:[#allocation3 + $0x340] sm:$0xff]
    %v169 = vld [vmem:[#allocation3 + $0x348] sm:$0xff]
    %v170 = vld [vmem:[#allocation3 + $0x350] sm:$0xff]
    %v171 = vld [vmem:[#allocation3 + $0x358] sm:$0xff]
    %v172 = vld [vmem:[#allocation3 + $0x360] sm:$0xff]
    %v173 = vld [vmem:[#allocation3 + $0x368] sm:$0xff]
    %v174 = vld [vmem:[#allocation3 + $0x370] sm:$0xff]
    %v175 = vld [vmem:[#allocation3 + $0x378] sm:$0xff]
    %v176 = vld [vmem:[#allocation3 + $0x380] sm:$0xff]
    %v177 = vld [vmem:[#allocation3 + $0x388] sm:$0xff]
    %v178 = vld [vmem:[#allocation3 + $0x390] sm:$0xff]
    %v179 = vld [vmem:[#allocation3 + $0x398] sm:$0xff]
    %v180 = vld [vmem:[#allocation3 + $0x3a0] sm:$0xff]
    %v181 = vld [vmem:[#allocation3 + $0x3a8] sm:$0xff]
    %v182 = vld [vmem:[#allocation3 + $0x3b0] sm:$0xff]
    %v183 = vld [vmem:[#allocation3 + $0x3b8] sm:$0xff]
    %v184 = vld [vmem:[#allocation3 + $0x3c0] sm:$0xff]
    %v185 = vld [vmem:[#allocation3 + $0x3c8] sm:$0xff]
    %v186 = vld [vmem:[#allocation3 + $0x3d0] sm:$0xff]
    %v187 = vld [vmem:[#allocation3 + $0x3d8] sm:$0xff]
    %v188 = vld [vmem:[#allocation3 + $0x3e0] sm:$0xff]
    %v189 = vld [vmem:[#allocation3 + $0x3e8] sm:$0xff]
    %v190 = vld [vmem:[#allocation3 + $0x3f0] sm:$0xff]
    %v191 = vld [vmem:[#allocation3 + $0x3f8] sm:$0xff]
    %v320 = vunpack.c.l.b16 %v64
    %v321 = vunpack.c.h.b16 %v64
    %v322 = vunpack.c.l.b16 %v65
    %v323 = vunpack.c.h.b16 %v65
    %v324 = vunpack.c.l.b16 %v66
    %v325 = vunpack.c.h.b16 %v66
    %v326 = vunpack.c.l.b16 %v67
    %v327 = vunpack.c.h.b16 %v67
    %v328 = vunpack.c.l.b16 %v68
    %v329 = vunpack.c.h.b16 %v68
    %v330 = vunpack.c.l.b16 %v69
    %v331 = vunpack.c.h.b16 %v69
    %v332 = vunpack.c.l.b16 %v70
    %v333 = vunpack.c.h.b16 %v70
    %v334 = vunpack.c.l.b16 %v71
    %v335 = vunpack.c.h.b16 %v71
    %v336 = vunpack.c.l.b16 %v72
    %v337 = vunpack.c.h.b16 %v72
    %v338 = vunpack.c.l.b16 %v73
    %v339 = vunpack.c.h.b16 %v73
    %v340 = vunpack.c.l.b16 %v74
    %v341 = vunpack.c.h.b16 %v74
    %v342 = vunpack.c.l.b16 %v75
    %v343 = vunpack.c.h.b16 %v75
    %v344 = vunpack.c.l.b16 %v76
    %v345 = vunpack.c.h.b16 %v76
    %v346 = vunpack.c.l.b16 %v77
    %v347 = vunpack.c.h.b16 %v77
    %v348 = vunpack.c.l.b16 %v78
    %v349 = vunpack.c.h.b16 %v78
    %v350 = vunpack.c.l.b16 %v79
    %v351 = vunpack.c.h.b16 %v79
    %v352 = vunpack.c.l.b16 %v80
    %v353 = vunpack.c.h.b16 %v80
    %v354 = vunpack.c.l.b16 %v81
    %v355 = vunpack.c.h.b16 %v81
    %v356 = vunpack.c.l.b16 %v82
    %v357 = vunpack.c.h.b16 %v82
    %v358 = vunpack.c.l.b16 %v83
    %v359 = vunpack.c.h.b16 %v83
    %v360 = vunpack.c.l.b16 %v84
    %v361 = vunpack.c.h.b16 %v84
    %v362 = vunpack.c.l.b16 %v85
    %v363 = vunpack.c.h.b16 %v85
    %v364 = vunpack.c.l.b16 %v86
    %v365 = vunpack.c.h.b16 %v86
    %v366 = vunpack.c.l.b16 %v87
    %v367 = vunpack.c.h.b16 %v87
    %v368 = vunpack.c.l.b16 %v88
    %v369 = vunpack.c.h.b16 %v88
    %v370 = vunpack.c.l.b16 %v89
    %v371 = vunpack.c.h.b16 %v89
    %v372 = vunpack.c.l.b16 %v90
    %v373 = vunpack.c.h.b16 %v90
    %v374 = vunpack.c.l.b16 %v91
    %v375 = vunpack.c.h.b16 %v91
    %v376 = vunpack.c.l.b16 %v92
    %v377 = vunpack.c.h.b16 %v92
    %v378 = vunpack.c.l.b16 %v93
    %v379 = vunpack.c.h.b16 %v93
    %v380 = vunpack.c.l.b16 %v94
    %v381 = vunpack.c.h.b16 %v94
    %v382 = vunpack.c.l.b16 %v95
    %v383 = vunpack.c.h.b16 %v95
    %v384 = vunpack.c.l.b16 %v96
    %v385 = vunpack.c.h.b16 %v96
    %v386 = vunpack.c.l.b16 %v97
    %v387 = vunpack.c.h.b16 %v97
    %v388 = vunpack.c.l.b16 %v98
    %v389 = vunpack.c.h.b16 %v98
    %v390 = vunpack.c.l.b16 %v99
    %v391 = vunpack.c.h.b16 %v99
    %v392 = vunpack.c.l.b16 %v100
    %v393 = vunpack.c.h.b16 %v100
    %v394 = vunpack.c.l.b16 %v101
    %v395 = vunpack.c.h.b16 %v101
    %v396 = vunpack.c.l.b16 %v102
    %v397 = vunpack.c.h.b16 %v102
    %v398 = vunpack.c.l.b16 %v103
    %v399 = vunpack.c.h.b16 %v103
    %v400 = vunpack.c.l.b16 %v104
    %v401 = vunpack.c.h.b16 %v104
    %v402 = vunpack.c.l.b16 %v105
    %v403 = vunpack.c.h.b16 %v105
    %v404 = vunpack.c.l.b16 %v106
    %v405 = vunpack.c.h.b16 %v106
    %v406 = vunpack.c.l.b16 %v107
    %v407 = vunpack.c.h.b16 %v107
    %v408 = vunpack.c.l.b16 %v108
    %v409 = vunpack.c.h.b16 %v108
    %v410 = vunpack.c.l.b16 %v109
    %v411 = vunpack.c.h.b16 %v109
    %v412 = vunpack.c.l.b16 %v110
    %v413 = vunpack.c.h.b16 %v110
    %v414 = vunpack.c.l.b16 %v111
    %v415 = vunpack.c.h.b16 %v111
    %v416 = vunpack.c.l.b16 %v112
    %v417 = vunpack.c.h.b16 %v112
    %v418 = vunpack.c.l.b16 %v113
    %v419 = vunpack.c.h.b16 %v113
    %v420 = vunpack.c.l.b16 %v114
    %v421 = vunpack.c.h.b16 %v114
    %v422 = vunpack.c.l.b16 %v115
    %v423 = vunpack.c.h.b16 %v115
    %v424 = vunpack.c.l.b16 %v116
    %v425 = vunpack.c.h.b16 %v116
    %v426 = vunpack.c.l.b16 %v117
    %v427 = vunpack.c.h.b16 %v117
    %v428 = vunpack.c.l.b16 %v118
    %v429 = vunpack.c.h.b16 %v118
    %v430 = vunpack.c.l.b16 %v119
    %v431 = vunpack.c.h.b16 %v119
    %v432 = vunpack.c.l.b16 %v120
    %v433 = vunpack.c.h.b16 %v120
    %v434 = vunpack.c.l.b16 %v121
    %v435 = vunpack.c.h.b16 %v121
    %v436 = vunpack.c.l.b16 %v122
    %v437 = vunpack.c.h.b16 %v122
    %v438 = vunpack.c.l.b16 %v123
    %v439 = vunpack.c.h.b16 %v123
    %v440 = vunpack.c.l.b16 %v124
    %v441 = vunpack.c.h.b16 %v124
    %v442 = vunpack.c.l.b16 %v125
    %v443 = vunpack.c.h.b16 %v125
    %v444 = vunpack.c.l.b16 %v126
    %v445 = vunpack.c.h.b16 %v126
    %v446 = vunpack.c.l.b16 %v127
    %v447 = vunpack.c.h.b16 %v127
    %v448 = vunpack.c.l.b16 %v128
    %v449 = vunpack.c.h.b16 %v128
    %v450 = vunpack.c.l.b16 %v129
    %v451 = vunpack.c.h.b16 %v129
    %v452 = vunpack.c.l.b16 %v130
    %v453 = vunpack.c.h.b16 %v130
    %v454 = vunpack.c.l.b16 %v131
    %v455 = vunpack.c.h.b16 %v131
    %v456 = vunpack.c.l.b16 %v132
    %v457 = vunpack.c.h.b16 %v132
    %v458 = vunpack.c.l.b16 %v133
    %v459 = vunpack.c.h.b16 %v133
    %v460 = vunpack.c.l.b16 %v134
    %v461 = vunpack.c.h.b16 %v134
    %v462 = vunpack.c.l.b16 %v135
    %v463 = vunpack.c.h.b16 %v135
    %v464 = vunpack.c.l.b16 %v136
    %v465 = vunpack.c.h.b16 %v136
    %v466 = vunpack.c.l.b16 %v137
    %v467 = vunpack.c.h.b16 %v137
    %v468 = vunpack.c.l.b16 %v138
    %v469 = vunpack.c.h.b16 %v138
    %v470 = vunpack.c.l.b16 %v139
    %v471 = vunpack.c.h.b16 %v139
    %v472 = vunpack.c.l.b16 %v140
    %v473 = vunpack.c.h.b16 %v140
    %v474 = vunpack.c.l.b16 %v141
    %v475 = vunpack.c.h.b16 %v141
    %v476 = vunpack.c.l.b16 %v142
    %v477 = vunpack.c.h.b16 %v142
    %v478 = vunpack.c.l.b16 %v143
    %v479 = vunpack.c.h.b16 %v143
    %v480 = vunpack.c.l.b16 %v144
    %v481 = vunpack.c.h.b16 %v144
    %v482 = vunpack.c.l.b16 %v145
    %v483 = vunpack.c.h.b16 %v145
    %v484 = vunpack.c.l.b16 %v146
    %v485 = vunpack.c.h.b16 %v146
    %v486 = vunpack.c.l.b16 %v147
    %v487 = vunpack.c.h.b16 %v147
    %v488 = vunpack.c.l.b16 %v148
    %v489 = vunpack.c.h.b16 %v148
    %v490 = vunpack.c.l.b16 %v149
    %v491 = vunpack.c.h.b16 %v149
    %v492 = vunpack.c.l.b16 %v150
    %v493 = vunpack.c.h.b16 %v150
    %v494 = vunpack.c.l.b16 %v151
    %v495 = vunpack.c.h.b16 %v151
    %v496 = vunpack.c.l.b16 %v152
    %v497 = vunpack.c.h.b16 %v152
    %v498 = vunpack.c.l.b16 %v153
    %v499 = vunpack.c.h.b16 %v153
    %v500 = vunpack.c.l.b16 %v154
    %v501 = vunpack.c.h.b16 %v154
    %v502 = vunpack.c.l.b16 %v155
    %v503 = vunpack.c.h.b16 %v155
    %v504 = vunpack.c.l.b16 %v156
    %v505 = vunpack.c.h.b16 %v156
    %v506 = vunpack.c.l.b16 %v157
    %v507 = vunpack.c.h.b16 %v157
    %v508 = vunpack.c.l.b16 %v158
    %v509 = vunpack.c.h.b16 %v158
    %v510 = vunpack.c.l.b16 %v159
    %v511 = vunpack.c.h.b16 %v159
    %v512 = vunpack.c.l.b16 %v160
    %v513 = vunpack.c.h.b16 %v160
    %v514 = vunpack.c.l.b16 %v161
    %v515 = vunpack.c.h.b16 %v161
    %v516 = vunpack.c.l.b16 %v162
    %v517 = vunpack.c.h.b16 %v162
    %v518 = vunpack.c.l.b16 %v163
    %v519 = vunpack.c.h.b16 %v163
    %v520 = vunpack.c.l.b16 %v164
    %v521 = vunpack.c.h.b16 %v164
    %v522 = vunpack.c.l.b16 %v165
    %v523 = vunpack.c.h.b16 %v165
    %v524 = vunpack.c.l.b16 %v166
    %v525 = vunpack.c.h.b16 %v166
    %v526 = vunpack.c.l.b16 %v167
    %v527 = vunpack.c.h.b16 %v167
    %v528 = vunpack.c.l.b16 %v168
    %v529 = vunpack.c.h.b16 %v168
    %v530 = vunpack.c.l.b16 %v169
    %v531 = vunpack.c.h.b16 %v169
    %v532 = vunpack.c.l.b16 %v170
    %v533 = vunpack.c.h.b16 %v170
    %v534 = vunpack.c.l.b16 %v171
    %v535 = vunpack.c.h.b16 %v171
    %v536 = vunpack.c.l.b16 %v172
    %v537 = vunpack.c.h.b16 %v172
    %v538 = vunpack.c.l.b16 %v173
    %v539 = vunpack.c.h.b16 %v173
    %v540 = vunpack.c.l.b16 %v174
    %v541 = vunpack.c.h.b16 %v174
    %v542 = vunpack.c.l.b16 %v175
    %v543 = vunpack.c.h.b16 %v175
    %v544 = vunpack.c.l.b16 %v176
    %v545 = vunpack.c.h.b16 %v176
    %v546 = vunpack.c.l.b16 %v177
    %v547 = vunpack.c.h.b16 %v177
    %v548 = vunpack.c.l.b16 %v178
    %v549 = vunpack.c.h.b16 %v178
    %v550 = vunpack.c.l.b16 %v179
    %v551 = vunpack.c.h.b16 %v179
    %v552 = vunpack.c.l.b16 %v180
    %v553 = vunpack.c.h.b16 %v180
    %v554 = vunpack.c.l.b16 %v181
    %v555 = vunpack.c.h.b16 %v181
    %v556 = vunpack.c.l.b16 %v182
    %v557 = vunpack.c.h.b16 %v182
    %v558 = vunpack.c.l.b16 %v183
    %v559 = vunpack.c.h.b16 %v183
    %v560 = vunpack.c.l.b16 %v184
    %v561 = vunpack.c.h.b16 %v184
    %v562 = vunpack.c.l.b16 %v185
    %v563 = vunpack.c.h.b16 %v185
    %v564 = vunpack.c.l.b16 %v186
    %v565 = vunpack.c.h.b16 %v186
    %v566 = vunpack.c.l.b16 %v187
    %v567 = vunpack.c.h.b16 %v187
    %v568 = vunpack.c.l.b16 %v188
    %v569 = vunpack.c.h.b16 %v188
    %v570 = vunpack.c.l.b16 %v189
    %v571 = vunpack.c.h.b16 %v189
    %v572 = vunpack.c.l.b16 %v190
    %v573 = vunpack.c.h.b16 %v190
    %v574 = vunpack.c.l.b16 %v191
    %v575 = vunpack.c.h.b16 %v191
    %v576 = vpack.c.b16 %v328, %v320
    %v577 = vpack.c.b16 %v329, %v321
    %v578 = vpack.c.b16 %v330, %v322
    %v579 = vpack.c.b16 %v331, %v323
    %v580 = vpack.c.b16 %v332, %v324
    %v581 = vpack.c.b16 %v333, %v325
    %v582 = vpack.c.b16 %v334, %v326
    %v583 = vpack.c.b16 %v335, %v327
    %v584 = vpack.c.b16 %v344, %v336
    %v585 = vpack.c.b16 %v345, %v337
    %v586 = vpack.c.b16 %v346, %v338
    %v587 = vpack.c.b16 %v347, %v339
    %v588 = vpack.c.b16 %v348, %v340
    %v589 = vpack.c.b16 %v349, %v341
    %v590 = vpack.c.b16 %v350, %v342
    %v591 = vpack.c.b16 %v351, %v343
    %v592 = vpack.c.b16 %v360, %v352
    %v593 = vpack.c.b16 %v361, %v353
    %v594 = vpack.c.b16 %v362, %v354
    %v595 = vpack.c.b16 %v363, %v355
    %v596 = vpack.c.b16 %v364, %v356
    %v597 = vpack.c.b16 %v365, %v357
    %v598 = vpack.c.b16 %v366, %v358
    %v599 = vpack.c.b16 %v367, %v359
    %v600 = vpack.c.b16 %v376, %v368
    %v601 = vpack.c.b16 %v377, %v369
    %v602 = vpack.c.b16 %v378, %v370
    %v603 = vpack.c.b16 %v379, %v371
    %v604 = vpack.c.b16 %v380, %v372
    %v605 = vpack.c.b16 %v381, %v373
    %v606 = vpack.c.b16 %v382, %v374
    %v607 = vpack.c.b16 %v383, %v375
    %v608 = vpack.c.b16 %v392, %v384
    %v609 = vpack.c.b16 %v393, %v385
    %v610 = vpack.c.b16 %v394, %v386
    %v611 = vpack.c.b16 %v395, %v387
    %v612 = vpack.c.b16 %v396, %v388
    %v613 = vpack.c.b16 %v397, %v389
    %v614 = vpack.c.b16 %v398, %v390
    %v615 = vpack.c.b16 %v399, %v391
    %v616 = vpack.c.b16 %v408, %v400
    %v617 = vpack.c.b16 %v409, %v401
    %v618 = vpack.c.b16 %v410, %v402
    %v619 = vpack.c.b16 %v411, %v403
    %v620 = vpack.c.b16 %v412, %v404
    %v621 = vpack.c.b16 %v413, %v405
    %v622 = vpack.c.b16 %v414, %v406
    %v623 = vpack.c.b16 %v415, %v407
    %v624 = vpack.c.b16 %v424, %v416
    %v625 = vpack.c.b16 %v425, %v417
    %v626 = vpack.c.b16 %v426, %v418
    %v627 = vpack.c.b16 %v427, %v419
    %v628 = vpack.c.b16 %v428, %v420
    %v629 = vpack.c.b16 %v429, %v421
    %v630 = vpack.c.b16 %v430, %v422
    %v631 = vpack.c.b16 %v431, %v423
    %v632 = vpack.c.b16 %v440, %v432
    %v633 = vpack.c.b16 %v441, %v433
    %v634 = vpack.c.b16 %v442, %v434
    %v635 = vpack.c.b16 %v443, %v435
    %v636 = vpack.c.b16 %v444, %v436
    %v637 = vpack.c.b16 %v445, %v437
    %v638 = vpack.c.b16 %v446, %v438
    %v639 = vpack.c.b16 %v447, %v439
    %v640 = vpack.c.b16 %v456, %v448
    %v641 = vpack.c.b16 %v457, %v449
    %v642 = vpack.c.b16 %v458, %v450
    %v643 = vpack.c.b16 %v459, %v451
    %v644 = vpack.c.b16 %v460, %v452
    %v645 = vpack.c.b16 %v461, %v453
    %v646 = vpack.c.b16 %v462, %v454
    %v647 = vpack.c.b16 %v463, %v455
    %v648 = vpack.c.b16 %v472, %v464
    %v649 = vpack.c.b16 %v473, %v465
    %v650 = vpack.c.b16 %v474, %v466
    %v651 = vpack.c.b16 %v475, %v467
    %v652 = vpack.c.b16 %v476, %v468
    %v653 = vpack.c.b16 %v477, %v469
    %v654 = vpack.c.b16 %v478, %v470
    %v655 = vpack.c.b16 %v479, %v471
    %v656 = vpack.c.b16 %v488, %v480
    %v657 = vpack.c.b16 %v489, %v481
    %v658 = vpack.c.b16 %v490, %v482
    %v659 = vpack.c.b16 %v491, %v483
    %v660 = vpack.c.b16 %v492, %v484
    %v661 = vpack.c.b16 %v493, %v485
    %v662 = vpack.c.b16 %v494, %v486
    %v663 = vpack.c.b16 %v495, %v487
    %v664 = vpack.c.b16 %v504, %v496
    %v665 = vpack.c.b16 %v505, %v497
    %v666 = vpack.c.b16 %v506, %v498
    %v667 = vpack.c.b16 %v507, %v499
    %v668 = vpack.c.b16 %v508, %v500
    %v669 = vpack.c.b16 %v509, %v501
    %v670 = vpack.c.b16 %v510, %v502
    %v671 = vpack.c.b16 %v511, %v503
    %v672 = vpack.c.b16 %v520, %v512
    %v673 = vpack.c.b16 %v521, %v513
    %v674 = vpack.c.b16 %v522, %v514
    %v675 = vpack.c.b16 %v523, %v515
    %v676 = vpack.c.b16 %v524, %v516
    %v677 = vpack.c.b16 %v525, %v517
    %v678 = vpack.c.b16 %v526, %v518
    %v679 = vpack.c.b16 %v527, %v519
    %v680 = vpack.c.b16 %v536, %v528
    %v681 = vpack.c.b16 %v537, %v529
    %v682 = vpack.c.b16 %v538, %v530
    %v683 = vpack.c.b16 %v539, %v531
    %v684 = vpack.c.b16 %v540, %v532
    %v685 = vpack.c.b16 %v541, %v533
    %v686 = vpack.c.b16 %v542, %v534
    %v687 = vpack.c.b16 %v543, %v535
    %v688 = vpack.c.b16 %v552, %v544
    %v689 = vpack.c.b16 %v553, %v545
    %v690 = vpack.c.b16 %v554, %v546
    %v691 = vpack.c.b16 %v555, %v547
    %v692 = vpack.c.b16 %v556, %v548
    %v693 = vpack.c.b16 %v557, %v549
    %v694 = vpack.c.b16 %v558, %v550
    %v695 = vpack.c.b16 %v559, %v551
    %v696 = vpack.c.b16 %v568, %v560
    %v697 = vpack.c.b16 %v569, %v561
    %v698 = vpack.c.b16 %v570, %v562
    %v699 = vpack.c.b16 %v571, %v563
    %v700 = vpack.c.b16 %v572, %v564
    %v701 = vpack.c.b16 %v573, %v565
    %v702 = vpack.c.b16 %v574, %v566
    %v703 = vpack.c.b16 %v575, %v567
    %832 = vmatprep.subr.bf16.mxu0 %v577
    %833 = vmatpush1.bf16.msra.mxu0 %v576
    %834 = vmatprep.subr.bf16.mxu0 %v585
    %835 = vmatpush1.bf16.msra.mxu0 %v584
    %836 = vmatprep.subr.bf16.mxu0 %v593
    %837 = vmatpush1.bf16.msra.mxu0 %v592
    %838 = vmatprep.subr.bf16.mxu0 %v601
    %839 = vmatpush1.bf16.msra.mxu0 %v600
    %840 = vmatprep.subr.bf16.mxu0 %v609
    %841 = vmatpush1.bf16.msra.mxu0 %v608
    %842 = vmatprep.subr.bf16.mxu0 %v617
    %843 = vmatpush1.bf16.msra.mxu0 %v616
    %844 = vmatprep.subr.bf16.mxu0 %v625
    %845 = vmatpush1.bf16.msra.mxu0 %v624
    %846 = vmatprep.subr.bf16.mxu0 %v633
    %847 = vmatpush1.bf16.msra.mxu0 %v632
    %848 = vmatprep.subr.bf16.mxu0 %v641
    %849 = vmatpush1.bf16.msra.mxu0 %v640
    %850 = vmatprep.subr.bf16.mxu0 %v649
    %851 = vmatpush1.bf16.msra.mxu0 %v648
    %852 = vmatprep.subr.bf16.mxu0 %v657
    %853 = vmatpush1.bf16.msra.mxu0 %v656
    %854 = vmatprep.subr.bf16.mxu0 %v665
    %855 = vmatpush1.bf16.msra.mxu0 %v664
    %856 = vmatprep.subr.bf16.mxu0 %v673
    %857 = vmatpush1.bf16.msra.mxu0 %v672
    %858 = vmatprep.subr.bf16.mxu0 %v681
    %859 = vmatpush1.bf16.msra.mxu0 %v680
    %860 = vmatprep.subr.bf16.mxu0 %v689
    %861 = vmatpush1.bf16.msra.mxu0 %v688
    %862 = vmatprep.subr.bf16.mxu0 %v697
    %863 = vmatpush1.bf16.msra.mxu0 %v696
    %864 = vmatprep.mubr.bf16.mxu0 %v63
    %865 = vmatmul.mubr.bf16.gmra.mrb[0].mxu0 %v63
    %v866 = vpop.f32.mrb[0].mxu0
    %v867 = vadd.f32 0.0, %v866
    %v868 = vpop.f32.mrb[0].mxu0
    %v869 = vadd.f32 0.0, %v868
    %v870 = vpop.f32.mrb[0].mxu0
    %v871 = vpop.f32.mrb[0].mxu0
    %872 = vdwg.mxu0
    %873 = vmatprep.subr.bf16.mxu0 %v579
    %874 = vmatpush1.bf16.msra.mxu0 %v578
    %875 = vmatprep.subr.bf16.mxu0 %v587
    %876 = vmatpush1.bf16.msra.mxu0 %v586
    %877 = vmatprep.subr.bf16.mxu0 %v595
    %878 = vmatpush1.bf16.msra.mxu0 %v594
    %879 = vmatprep.subr.bf16.mxu0 %v603
    %880 = vmatpush1.bf16.msra.mxu0 %v602
    %881 = vmatprep.subr.bf16.mxu0 %v611
    %882 = vmatpush1.bf16.msra.mxu0 %v610
    %883 = vmatprep.subr.bf16.mxu0 %v619
    %884 = vmatpush1.bf16.msra.mxu0 %v618
    %885 = vmatprep.subr.bf16.mxu0 %v627
    %886 = vmatpush1.bf16.msra.mxu0 %v626
    %887 = vmatprep.subr.bf16.mxu0 %v635
    %888 = vmatpush1.bf16.msra.mxu0 %v634
    %889 = vmatprep.subr.bf16.mxu0 %v643
    %890 = vmatpush1.bf16.msra.mxu0 %v642
    %891 = vmatprep.subr.bf16.mxu0 %v651
    %892 = vmatpush1.bf16.msra.mxu0 %v650
    %893 = vmatprep.subr.bf16.mxu0 %v659
    %894 = vmatpush1.bf16.msra.mxu0 %v658
    %895 = vmatprep.subr.bf16.mxu0 %v667
    %896 = vmatpush1.bf16.msra.mxu0 %v666
    %897 = vmatprep.subr.bf16.mxu0 %v675
    %898 = vmatpush1.bf16.msra.mxu0 %v674
    %899 = vmatprep.subr.bf16.mxu0 %v683
    %900 = vmatpush1.bf16.msra.mxu0 %v682
    %901 = vmatprep.subr.bf16.mxu0 %v691
    %902 = vmatpush1.bf16.msra.mxu0 %v690
    %903 = vmatprep.subr.bf16.mxu0 %v699
    %904 = vmatpush1.bf16.msra.mxu0 %v698
    %905 = vmatprep.mubr.bf16.mxu0 %v63
    %906 = vmatmul.mubr.bf16.gmra.mrb[0].mxu0 %v63
    %v907 = vpop.f32.mrb[0].mxu0
    %v908 = vadd.f32 0.0, %v907
    %v909 = vpop.f32.mrb[0].mxu0
    %v910 = vadd.f32 0.0, %v909
    %v911 = vpop.f32.mrb[0].mxu0
    %v912 = vpop.f32.mrb[0].mxu0
    %913 = vdwg.mxu0
    %914 = vmatprep.subr.bf16.mxu0 %v581
    %915 = vmatpush1.bf16.msra.mxu0 %v580
    %916 = vmatprep.subr.bf16.mxu0 %v589
    %917 = vmatpush1.bf16.msra.mxu0 %v588
    %918 = vmatprep.subr.bf16.mxu0 %v597
    %919 = vmatpush1.bf16.msra.mxu0 %v596
    %920 = vmatprep.subr.bf16.mxu0 %v605
    %921 = vmatpush1.bf16.msra.mxu0 %v604
    %922 = vmatprep.subr.bf16.mxu0 %v613
    %923 = vmatpush1.bf16.msra.mxu0 %v612
    %924 = vmatprep.subr.bf16.mxu0 %v621
    %925 = vmatpush1.bf16.msra.mxu0 %v620
    %926 = vmatprep.subr.bf16.mxu0 %v629
    %927 = vmatpush1.bf16.msra.mxu0 %v628
    %928 = vmatprep.subr.bf16.mxu0 %v637
    %929 = vmatpush1.bf16.msra.mxu0 %v636
    %930 = vmatprep.subr.bf16.mxu0 %v645
    %931 = vmatpush1.bf16.msra.mxu0 %v644
    %932 = vmatprep.subr.bf16.mxu0 %v653
    %933 = vmatpush1.bf16.msra.mxu0 %v652
    %934 = vmatprep.subr.bf16.mxu0 %v661
    %935 = vmatpush1.bf16.msra.mxu0 %v660
    %936 = vmatprep.subr.bf16.mxu0 %v669
    %937 = vmatpush1.bf16.msra.mxu0 %v668
    %938 = vmatprep.subr.bf16.mxu0 %v677
    %939 = vmatpush1.bf16.msra.mxu0 %v676
    %940 = vmatprep.subr.bf16.mxu0 %v685
    %941 = vmatpush1.bf16.msra.mxu0 %v684
    %942 = vmatprep.subr.bf16.mxu0 %v693
    %943 = vmatpush1.bf16.msra.mxu0 %v692
    %944 = vmatprep.subr.bf16.mxu0 %v701
    %945 = vmatpush1.bf16.msra.mxu0 %v700
    %946 = vmatprep.mubr.bf16.mxu0 %v63
    %947 = vmatmul.mubr.bf16.gmra.mrb[0].mxu0 %v63
    %v948 = vpop.f32.mrb[0].mxu0
    %v949 = vadd.f32 0.0, %v948
    %v950 = vpop.f32.mrb[0].mxu0
    %v951 = vadd.f32 0.0, %v950
    %v952 = vpop.f32.mrb[0].mxu0
    %v953 = vpop.f32.mrb[0].mxu0
    %954 = vdwg.mxu0
    %955 = vmatprep.subr.bf16.mxu0 %v583
    %956 = vmatpush1.bf16.msra.mxu0 %v582
    %957 = vmatprep.subr.bf16.mxu0 %v591
    %958 = vmatpush1.bf16.msra.mxu0 %v590
    %959 = vmatprep.subr.bf16.mxu0 %v599
    %960 = vmatpush1.bf16.msra.mxu0 %v598
    %961 = vmatprep.subr.bf16.mxu0 %v607
    %962 = vmatpush1.bf16.msra.mxu0 %v606
    %963 = vmatprep.subr.bf16.mxu0 %v615
    %964 = vmatpush1.bf16.msra.mxu0 %v614
    %965 = vmatprep.subr.bf16.mxu0 %v623
    %966 = vmatpush1.bf16.msra.mxu0 %v622
    %967 = vmatprep.subr.bf16.mxu0 %v631
    %968 = vmatpush1.bf16.msra.mxu0 %v630
    %969 = vmatprep.subr.bf16.mxu0 %v639
    %970 = vmatpush1.bf16.msra.mxu0 %v638
    %971 = vmatprep.subr.bf16.mxu0 %v647
    %972 = vmatpush1.bf16.msra.mxu0 %v646
    %973 = vmatprep.subr.bf16.mxu0 %v655
    %974 = vmatpush1.bf16.msra.mxu0 %v654
    %975 = vmatprep.subr.bf16.mxu0 %v663
    %976 = vmatpush1.bf16.msra.mxu0 %v662
    %977 = vmatprep.subr.bf16.mxu0 %v671
    %978 = vmatpush1.bf16.msra.mxu0 %v670
    %979 = vmatprep.subr.bf16.mxu0 %v679
    %980 = vmatpush1.bf16.msra.mxu0 %v678
    %981 = vmatprep.subr.bf16.mxu0 %v687
    %982 = vmatpush1.bf16.msra.mxu0 %v686
    %983 = vmatprep.subr.bf16.mxu0 %v695
    %984 = vmatpush1.bf16.msra.mxu0 %v694
    %985 = vmatprep.subr.bf16.mxu0 %v703
    %986 = vmatpush1.bf16.msra.mxu0 %v702
    %987 = vmatprep.mubr.bf16.mxu0 %v63
    %988 = vmatmul.mubr.bf16.gmra.mrb[0].mxu0 %v63
    %v989 = vpop.f32.mrb[0].mxu0
    %v990 = vadd.f32 0.0, %v989
    %v991 = vpop.f32.mrb[0].mxu0
    %v992 = vadd.f32 0.0, %v991
    %v993 = vpop.f32.mrb[0].mxu0
    %v994 = vpop.f32.mrb[0].mxu0
    %995 = vdwg.mxu0
    %v996 = vld [vmem:[%s0] sm:$0x3]
    %998 = vset.pattern.permute.xlu0 0
    %999 = vperm.xlu0 %998, %v996
    %v1000 = vpop.permute.xlu0 %999
    %v1003 = vlaneseq
    %v1004 = vshrl.u32 %v1003, 7
    %v1005 = vsub.s32 0, %v1004
    %v1006 = vrot.slane %v60, %v1005
    %v1007 = vlaneseq
    %v1008 = vshrl.u32 %v1007, 7
    %v1009 = vsub.s32 1, %v1008
    %v1010 = vrot.slane %v60, %v1009
    %v1011 = vlaneseq
    %v1012 = vshrl.u32 %v1011, 7
    %v1013 = vsub.s32 2, %v1012
    %v1014 = vrot.slane %v60, %v1013
    %v1015 = vlaneseq
    %v1016 = vshrl.u32 %v1015, 7
    %v1017 = vsub.s32 3, %v1016
    %v1018 = vrot.slane %v60, %v1017
    %v1023 = vmul.f32 %v1000, %v1006
    %v1024 = vmul.f32 %v1000, %v1010
    %v1025 = vmul.f32 %v1000, %v1014
    %v1026 = vmul.f32 %v1000, %v1018
    %v1028 = vlaneseq
    %v1029 = vshrl.u32 %v1028, 7
    %v1030 = vsub.s32 0, %v1029
    %v1031 = vrot.slane %v61, %v1030
    %v1032 = vlaneseq
    %v1033 = vshrl.u32 %v1032, 7
    %v1034 = vsub.s32 1, %v1033
    %v1035 = vrot.slane %v61, %v1034
    %v1036 = vlaneseq
    %v1037 = vshrl.u32 %v1036, 7
    %v1038 = vsub.s32 2, %v1037
    %v1039 = vrot.slane %v61, %v1038
    %v1040 = vlaneseq
    %v1041 = vshrl.u32 %v1040, 7
    %v1042 = vsub.s32 3, %v1041
    %v1043 = vrot.slane %v61, %v1042
    %v1048 = vadd.f32 %v1023, %v1031
    %v1049 = vadd.f32 %v1024, %v1035
    %v1050 = vadd.f32 %v1025, %v1039
    %v1051 = vadd.f32 %v1026, %v1043
    %v1052 = vadd.f32 %v1048, %v867
    %v1053 = vadd.f32 %v1049, %v869
    %v1054 = vadd.f32 %v1050, %v908
    %v1055 = vadd.f32 %v1051, %v910
    %v1056 = vxor.u32 %v1052, 2147483648
    %v1057 = vxor.u32 %v1053, 2147483648
    %v1058 = vxor.u32 %v1054, 2147483648
    %v1059 = vmul.f32 %v1056, 1.442695
    %v1060 = vpow.pop %v1059
    %v1061 = vmul.f32 %v1057, 1.442695
    %v1062 = vpow.pop %v1061
    %v1063 = vmul.f32 %v1058, 1.442695
    %v1064 = vpow.pop %v1063
    %v1065 = vadd.f32 %v1060, 1.0
    %v1066 = vadd.f32 %v1062, 1.0
    %v1067 = vadd.f32 %v1064, 1.0
    %v1068 = vrcp.pop %v1065
    %v1069 = vmul.f32 1.0, %v1068
    %v1070 = vrcp.pop %v1066
    %v1071 = vmul.f32 1.0, %v1070
    %v1072 = vrcp.pop %v1067
    %v1073 = vmul.f32 1.0, %v1072
    %v1074 = vtanh.pop %v1055
    %v1075 = vmul.f32 %v1071, 0.0
    %v1076 = vmul.f32 %v1069, %v1074
    %v1077 = vadd.f32 %v1075, %v1076
    %v1078 = vtanh.pop %v1077
    %v1079 = vmul.f32 %v1073, %v1078
    %v1080 = vpack.c.bf16 %v1079, %v1079
    %v1081 = vld [vmem:[#allocation5] sm:$0xff]
    %v1082 = vld [vmem:[#allocation5 + $0x8] sm:$0xff]
    %v1083 = vld [vmem:[#allocation5 + $0x10] sm:$0xff]
    %v1084 = vld [vmem:[#allocation5 + $0x18] sm:$0xff]
    %v1085 = vld [vmem:[#allocation5 + $0x20] sm:$0xff]
    %v1086 = vld [vmem:[#allocation5 + $0x28] sm:$0xff]
    %v1087 = vld [vmem:[#allocation5 + $0x30] sm:$0xff]
    %v1088 = vld [vmem:[#allocation5 + $0x38] sm:$0xff]
    %v1089 = vld [vmem:[#allocation5 + $0x40] sm:$0xff]
    %v1090 = vld [vmem:[#allocation5 + $0x48] sm:$0xff]
    %v1091 = vld [vmem:[#allocation5 + $0x50] sm:$0xff]
    %v1092 = vld [vmem:[#allocation5 + $0x58] sm:$0xff]
    %v1093 = vld [vmem:[#allocation5 + $0x60] sm:$0xff]
    %v1094 = vld [vmem:[#allocation5 + $0x68] sm:$0xff]
    %v1095 = vld [vmem:[#allocation5 + $0x70] sm:$0xff]
    %v1096 = vld [vmem:[#allocation5 + $0x78] sm:$0xff]
    %v1097 = vld [vmem:[#allocation5 + $0x80] sm:$0xff]
    %v1098 = vld [vmem:[#allocation5 + $0x88] sm:$0xff]
    %v1099 = vld [vmem:[#allocation5 + $0x90] sm:$0xff]
    %v1100 = vld [vmem:[#allocation5 + $0x98] sm:$0xff]
    %v1101 = vld [vmem:[#allocation5 + $0xa0] sm:$0xff]
    %v1102 = vld [vmem:[#allocation5 + $0xa8] sm:$0xff]
    %v1103 = vld [vmem:[#allocation5 + $0xb0] sm:$0xff]
    %v1104 = vld [vmem:[#allocation5 + $0xb8] sm:$0xff]
    %v1105 = vld [vmem:[#allocation5 + $0xc0] sm:$0xff]
    %v1106 = vld [vmem:[#allocation5 + $0xc8] sm:$0xff]
    %v1107 = vld [vmem:[#allocation5 + $0xd0] sm:$0xff]
    %v1108 = vld [vmem:[#allocation5 + $0xd8] sm:$0xff]
    %v1109 = vld [vmem:[#allocation5 + $0xe0] sm:$0xff]
    %v1110 = vld [vmem:[#allocation5 + $0xe8] sm:$0xff]
    %v1111 = vld [vmem:[#allocation5 + $0xf0] sm:$0xff]
    %v1112 = vld [vmem:[#allocation5 + $0xf8] sm:$0xff]
    %v1145 = vunpack.c.l.b16 %v1081
    %v1146 = vunpack.c.h.b16 %v1081
    %v1147 = vunpack.c.l.b16 %v1082
    %v1148 = vunpack.c.h.b16 %v1082
    %v1149 = vunpack.c.l.b16 %v1083
    %v1150 = vunpack.c.h.b16 %v1083
    %v1151 = vunpack.c.l.b16 %v1084
    %v1152 = vunpack.c.h.b16 %v1084
    %v1153 = vunpack.c.l.b16 %v1085
    %v1154 = vunpack.c.h.b16 %v1085
    %v1155 = vunpack.c.l.b16 %v1086
    %v1156 = vunpack.c.h.b16 %v1086
    %v1157 = vunpack.c.l.b16 %v1087
    %v1158 = vunpack.c.h.b16 %v1087
    %v1159 = vunpack.c.l.b16 %v1088
    %v1160 = vunpack.c.h.b16 %v1088
    %v1161 = vunpack.c.l.b16 %v1089
    %v1162 = vunpack.c.h.b16 %v1089
    %v1163 = vunpack.c.l.b16 %v1090
    %v1164 = vunpack.c.h.b16 %v1090
    %v1165 = vunpack.c.l.b16 %v1091
    %v1166 = vunpack.c.h.b16 %v1091
    %v1167 = vunpack.c.l.b16 %v1092
    %v1168 = vunpack.c.h.b16 %v1092
    %v1169 = vunpack.c.l.b16 %v1093
    %v1170 = vunpack.c.h.b16 %v1093
    %v1171 = vunpack.c.l.b16 %v1094
    %v1172 = vunpack.c.h.b16 %v1094
    %v1173 = vunpack.c.l.b16 %v1095
    %v1174 = vunpack.c.h.b16 %v1095
    %v1175 = vunpack.c.l.b16 %v1096
    %v1176 = vunpack.c.h.b16 %v1096
    %v1177 = vunpack.c.l.b16 %v1097
    %v1178 = vunpack.c.h.b16 %v1097
    %v1179 = vunpack.c.l.b16 %v1098
    %v1180 = vunpack.c.h.b16 %v1098
    %v1181 = vunpack.c.l.b16 %v1099
    %v1182 = vunpack.c.h.b16 %v1099
    %v1183 = vunpack.c.l.b16 %v1100
    %v1184 = vunpack.c.h.b16 %v1100
    %v1185 = vunpack.c.l.b16 %v1101
    %v1186 = vunpack.c.h.b16 %v1101
    %v1187 = vunpack.c.l.b16 %v1102
    %v1188 = vunpack.c.h.b16 %v1102
    %v1189 = vunpack.c.l.b16 %v1103
    %v1190 = vunpack.c.h.b16 %v1103
    %v1191 = vunpack.c.l.b16 %v1104
    %v1192 = vunpack.c.h.b16 %v1104
    %v1193 = vunpack.c.l.b16 %v1105
    %v1194 = vunpack.c.h.b16 %v1105
    %v1195 = vunpack.c.l.b16 %v1106
    %v1196 = vunpack.c.h.b16 %v1106
    %v1197 = vunpack.c.l.b16 %v1107
    %v1198 = vunpack.c.h.b16 %v1107
    %v1199 = vunpack.c.l.b16 %v1108
    %v1200 = vunpack.c.h.b16 %v1108
    %v1201 = vunpack.c.l.b16 %v1109
    %v1202 = vunpack.c.h.b16 %v1109
    %v1203 = vunpack.c.l.b16 %v1110
    %v1204 = vunpack.c.h.b16 %v1110
    %v1205 = vunpack.c.l.b16 %v1111
    %v1206 = vunpack.c.h.b16 %v1111
    %v1207 = vunpack.c.l.b16 %v1112
    %v1208 = vunpack.c.h.b16 %v1112
    %v1209 = vpack.c.b16 %v1149, %v1145
    %v1210 = vpack.c.b16 %v1150, %v1146
    %v1211 = vpack.c.b16 %v1151, %v1147
    %v1212 = vpack.c.b16 %v1152, %v1148
    %v1213 = vpack.c.b16 %v1157, %v1153
    %v1214 = vpack.c.b16 %v1158, %v1154
    %v1215 = vpack.c.b16 %v1159, %v1155
    %v1216 = vpack.c.b16 %v1160, %v1156
    %v1217 = vpack.c.b16 %v1165, %v1161
    %v1218 = vpack.c.b16 %v1166, %v1162
    %v1219 = vpack.c.b16 %v1167, %v1163
    %v1220 = vpack.c.b16 %v1168, %v1164
    %v1221 = vpack.c.b16 %v1173, %v1169
    %v1222 = vpack.c.b16 %v1174, %v1170
    %v1223 = vpack.c.b16 %v1175, %v1171
    %v1224 = vpack.c.b16 %v1176, %v1172
    %v1225 = vpack.c.b16 %v1181, %v1177
    %v1226 = vpack.c.b16 %v1182, %v1178
    %v1227 = vpack.c.b16 %v1183, %v1179
    %v1228 = vpack.c.b16 %v1184, %v1180
    %v1229 = vpack.c.b16 %v1189, %v1185
    %v1230 = vpack.c.b16 %v1190, %v1186
    %v1231 = vpack.c.b16 %v1191, %v1187
    %v1232 = vpack.c.b16 %v1192, %v1188
    %v1233 = vpack.c.b16 %v1197, %v1193
    %v1234 = vpack.c.b16 %v1198, %v1194
    %v1235 = vpack.c.b16 %v1199, %v1195
    %v1236 = vpack.c.b16 %v1200, %v1196
    %v1237 = vpack.c.b16 %v1205, %v1201
    %v1238 = vpack.c.b16 %v1206, %v1202
    %v1239 = vpack.c.b16 %v1207, %v1203
    %v1240 = vpack.c.b16 %v1208, %v1204
    %1273 = vmatprep.subr.bf16.mxu0 %v1210
    %1274 = vmatpush1.bf16.msra.mxu0 %v1209
    %1275 = vmatprep.subr.bf16.mxu0 %v1214
    %1276 = vmatpush1.bf16.msra.mxu0 %v1213
    %1277 = vmatprep.subr.bf16.mxu0 %v1218
    %1278 = vmatpush1.bf16.msra.mxu0 %v1217
    %1279 = vmatprep.subr.bf16.mxu0 %v1222
    %1280 = vmatpush1.bf16.msra.mxu0 %v1221
    %1281 = vmatprep.subr.bf16.mxu0 %v1226
    %1282 = vmatpush1.bf16.msra.mxu0 %v1225
    %1283 = vmatprep.subr.bf16.mxu0 %v1230
    %1284 = vmatpush1.bf16.msra.mxu0 %v1229
    %1285 = vmatprep.subr.bf16.mxu0 %v1234
    %1286 = vmatpush1.bf16.msra.mxu0 %v1233
    %1287 = vmatprep.subr.bf16.mxu0 %v1238
    %1288 = vmatpush1.bf16.msra.mxu0 %v1237
    %1289 = vmatprep.subr.bf16.mxu0 0
    %1290 = vmatpush1.bf16.msra.mxu0 0
    %1291 = vmatprep.subr.bf16.mxu0 0
    %1292 = vmatpush1.bf16.msra.mxu0 0
    %1293 = vmatprep.subr.bf16.mxu0 0
    %1294 = vmatpush1.bf16.msra.mxu0 0
    %1295 = vmatprep.subr.bf16.mxu0 0
    %1296 = vmatpush1.bf16.msra.mxu0 0
    %1297 = vmatprep.subr.bf16.mxu0 0
    %1298 = vmatpush1.bf16.msra.mxu0 0
    %1299 = vmatprep.subr.bf16.mxu0 0
    %1300 = vmatpush1.bf16.msra.mxu0 0
    %1301 = vmatprep.subr.bf16.mxu0 0
    %1302 = vmatpush1.bf16.msra.mxu0 0
    %1303 = vmatprep.subr.bf16.mxu0 0
    %1304 = vmatpush1.bf16.msra.mxu0 0
    %1305 = vmatprep.mubr.bf16.mxu0 0
    %1306 = vmatmul.mubr.bf16.gmra.mrb[0].mxu0 %v1080
    %v1307 = vpop.f32.mrb[0].mxu0
    %v1308 = vadd.f32 %v949, %v1307
    %v1309 = vpop.f32.mrb[0].mxu0
    %v1310 = vadd.f32 %v951, %v1309
    %v1311 = vpop.f32.mrb[0].mxu0
    %v1312 = vpop.f32.mrb[0].mxu0
    %1313 = vdwg.mxu0
    %1314 = vmatprep.subr.bf16.mxu0 %v1212
    %1315 = vmatpush1.bf16.msra.mxu0 %v1211
    %1316 = vmatprep.subr.bf16.mxu0 %v1216
    %1317 = vmatpush1.bf16.msra.mxu0 %v1215
    %1318 = vmatprep.subr.bf16.mxu0 %v1220
    %1319 = vmatpush1.bf16.msra.mxu0 %v1219
    %1320 = vmatprep.subr.bf16.mxu0 %v1224
    %1321 = vmatpush1.bf16.msra.mxu0 %v1223
    %1322 = vmatprep.subr.bf16.mxu0 %v1228
    %1323 = vmatpush1.bf16.msra.mxu0 %v1227
    %1324 = vmatprep.subr.bf16.mxu0 %v1232
    %1325 = vmatpush1.bf16.msra.mxu0 %v1231
    %1326 = vmatprep.subr.bf16.mxu0 %v1236
    %1327 = vmatpush1.bf16.msra.mxu0 %v1235
    %1328 = vmatprep.subr.bf16.mxu0 %v1240
    %1329 = vmatpush1.bf16.msra.mxu0 %v1239
    %1330 = vmatprep.subr.bf16.mxu0 0
    %1331 = vmatpush1.bf16.msra.mxu0 0
    %1332 = vmatprep.subr.bf16.mxu0 0
    %1333 = vmatpush1.bf16.msra.mxu0 0
    %1334 = vmatprep.subr.bf16.mxu0 0
    %1335 = vmatpush1.bf16.msra.mxu0 0
    %1336 = vmatprep.subr.bf16.mxu0 0
    %1337 = vmatpush1.bf16.msra.mxu0 0
    %1338 = vmatprep.subr.bf16.mxu0 0
    %1339 = vmatpush1.bf16.msra.mxu0 0
    %1340 = vmatprep.subr.bf16.mxu0 0
    %1341 = vmatpush1.bf16.msra.mxu0 0
    %1342 = vmatprep.subr.bf16.mxu0 0
    %1343 = vmatpush1.bf16.msra.mxu0 0
    %1344 = vmatprep.subr.bf16.mxu0 0
    %1345 = vmatpush1.bf16.msra.mxu0 0
    %1346 = vmatprep.mubr.bf16.mxu0 0
    %1347 = vmatmul.mubr.bf16.gmra.mrb[0].mxu0 %v1080
    %v1348 = vpop.f32.mrb[0].mxu0
    %v1349 = vadd.f32 %v990, %v1348
    %v1350 = vpop.f32.mrb[0].mxu0
    %v1351 = vadd.f32 %v992, %v1350
    %v1352 = vpop.f32.mrb[0].mxu0
    %v1353 = vpop.f32.mrb[0].mxu0
    %1354 = vdwg.mxu0
    %v1356 = vlaneseq
    %v1357 = vshrl.u32 %v1356, 7
    %v1358 = vsub.s32 0, %v1357
    %v1359 = vrot.slane %v62, %v1358
    %v1360 = vlaneseq
    %v1361 = vshrl.u32 %v1360, 7
    %v1362 = vsub.s32 1, %v1361
    %v1363 = vrot.slane %v62, %v1362
    %v1364 = vlaneseq
    %v1365 = vshrl.u32 %v1364, 7
    %v1366 = vsub.s32 2, %v1365
    %v1367 = vrot.slane %v62, %v1366
    %v1368 = vlaneseq
    %v1369 = vshrl.u32 %v1368, 7
    %v1370 = vsub.s32 3, %v1369
    %v1371 = vrot.slane %v62, %v1370
    %v1376 = vadd.f32 %v1308, %v1359
    %v1377 = vadd.f32 %v1310, %v1363
    %v1378 = vadd.f32 %v1349, %v1367
    %v1379 = vadd.f32 %v1351, %v1371
    %v1380 = vxor.u32 %v1376, 2147483648
    %v1381 = vxor.u32 %v1377, 2147483648
    %v1382 = vxor.u32 %v1378, 2147483648
    %v1383 = vmul.f32 %v1380, 1.442695
    %v1384 = vpow.pop %v1383
    %v1385 = vmul.f32 %v1381, 1.442695
    %v1386 = vpow.pop %v1385
    %v1387 = vmul.f32 %v1382, 1.442695
    %v1388 = vpow.pop %v1387
    %v1389 = vadd.f32 %v1384, 1.0
    %v1390 = vadd.f32 %v1386, 1.0
    %v1391 = vadd.f32 %v1388, 1.0
    %v1392 = vrcp.pop %v1389
    %v1393 = vmul.f32 1.0, %v1392
    %v1394 = vrcp.pop %v1390
    %v1395 = vmul.f32 1.0, %v1394
    %v1396 = vrcp.pop %v1391
    %v1397 = vmul.f32 1.0, %v1396
    %v1398 = vtanh.pop %v1379
    %v1399 = vmul.f32 %v1395, 0.0
    %v1400 = vmul.f32 %v1393, %v1398
    %v1401 = vadd.f32 %v1399, %v1400
    %v1402 = vtanh.pop %v1401
    %v1403 = vmul.f32 %v1397, %v1402
    %v1404 = vpack.c.bf16 %v1403, %v1403
    %1405 = vmatprep.subr.bf16.mxu0 %v577
    %1406 = vmatpush1.bf16.msra.mxu0 %v576
    %1407 = vmatprep.subr.bf16.mxu0 %v585
    %1408 = vmatpush1.bf16.msra.mxu0 %v584
    %1409 = vmatprep.subr.bf16.mxu0 %v593
    %1410 = vmatpush1.bf16.msra.mxu0 %v592
    %1411 = vmatprep.subr.bf16.mxu0 %v601
    %1412 = vmatpush1.bf16.msra.mxu0 %v600
    %1413 = vmatprep.subr.bf16.mxu0 %v609
    %1414 = vmatpush1.bf16.msra.mxu0 %v608
    %1415 = vmatprep.subr.bf16.mxu0 %v617
    %1416 = vmatpush1.bf16.msra.mxu0 %v616
    %1417 = vmatprep.subr.bf16.mxu0 %v625
    %1418 = vmatpush1.bf16.msra.mxu0 %v624
    %1419 = vmatprep.subr.bf16.mxu0 %v633
    %1420 = vmatpush1.bf16.msra.mxu0 %v632
    %1421 = vmatprep.subr.bf16.mxu0 %v641
    %1422 = vmatpush1.bf16.msra.mxu0 %v640
    %1423 = vmatprep.subr.bf16.mxu0 %v649
    %1424 = vmatpush1.bf16.msra.mxu0 %v648
    %1425 = vmatprep.subr.bf16.mxu0 %v657
    %1426 = vmatpush1.bf16.msra.mxu0 %v656
    %1427 = vmatprep.subr.bf16.mxu0 %v665
    %1428 = vmatpush1.bf16.msra.mxu0 %v664
    %1429 = vmatprep.subr.bf16.mxu0 %v673
    %1430 = vmatpush1.bf16.msra.mxu0 %v672
    %1431 = vmatprep.subr.bf16.mxu0 %v681
    %1432 = vmatpush1.bf16.msra.mxu0 %v680
    %1433 = vmatprep.subr.bf16.mxu0 %v689
    %1434 = vmatpush1.bf16.msra.mxu0 %v688
    %1435 = vmatprep.subr.bf16.mxu0 %v697
    %1436 = vmatpush1.bf16.msra.mxu0 %v696
    %1437 = vmatprep.mubr.bf16.mxu0 %v1404
    %1438 = vmatmul.mubr.bf16.gmra.mrb[0].mxu0 %v1080
    %v1439 = vpop.f32.mrb[0].mxu0
    %v1440 = vadd.f32 0.0, %v1439
    %v1441 = vpop.f32.mrb[0].mxu0
    %v1442 = vadd.f32 0.0, %v1441
    %v1443 = vpop.f32.mrb[0].mxu0
    %v1444 = vpop.f32.mrb[0].mxu0
    %1445 = vdwg.mxu0
    %1446 = vmatprep.subr.bf16.mxu0 %v579
    %1447 = vmatpush1.bf16.msra.mxu0 %v578
    %1448 = vmatprep.subr.bf16.mxu0 %v587
    %1449 = vmatpush1.bf16.msra.mxu0 %v586
    %1450 = vmatprep.subr.bf16.mxu0 %v595
    %1451 = vmatpush1.bf16.msra.mxu0 %v594
    %1452 = vmatprep.subr.bf16.mxu0 %v603
    %1453 = vmatpush1.bf16.msra.mxu0 %v602
    %1454 = vmatprep.subr.bf16.mxu0 %v611
    %1455 = vmatpush1.bf16.msra.mxu0 %v610
    %1456 = vmatprep.subr.bf16.mxu0 %v619
    %1457 = vmatpush1.bf16.msra.mxu0 %v618
    %1458 = vmatprep.subr.bf16.mxu0 %v627
    %1459 = vmatpush1.bf16.msra.mxu0 %v626
    %1460 = vmatprep.subr.bf16.mxu0 %v635
    %1461 = vmatpush1.bf16.msra.mxu0 %v634
    %1462 = vmatprep.subr.bf16.mxu0 %v643
    %1463 = vmatpush1.bf16.msra.mxu0 %v642
    %1464 = vmatprep.subr.bf16.mxu0 %v651
    %1465 = vmatpush1.bf16.msra.mxu0 %v650
    %1466 = vmatprep.subr.bf16.mxu0 %v659
    %1467 = vmatpush1.bf16.msra.mxu0 %v658
    %1468 = vmatprep.subr.bf16.mxu0 %v667
    %1469 = vmatpush1.bf16.msra.mxu0 %v666
    %1470 = vmatprep.subr.bf16.mxu0 %v675
    %1471 = vmatpush1.bf16.msra.mxu0 %v674
    %1472 = vmatprep.subr.bf16.mxu0 %v683
    %1473 = vmatpush1.bf16.msra.mxu0 %v682
    %1474 = vmatprep.subr.bf16.mxu0 %v691
    %1475 = vmatpush1.bf16.msra.mxu0 %v690
    %1476 = vmatprep.subr.bf16.mxu0 %v699
    %1477 = vmatpush1.bf16.msra.mxu0 %v698
    %1478 = vmatprep.mubr.bf16.mxu0 %v1404
    %1479 = vmatmul.mubr.bf16.gmra.mrb[0].mxu0 %v1080
    %v1480 = vpop.f32.mrb[0].mxu0
    %v1481 = vadd.f32 0.0, %v1480
    %v1482 = vpop.f32.mrb[0].mxu0
    %v1483 = vadd.f32 0.0, %v1482
    %v1484 = vpop.f32.mrb[0].mxu0
    %v1485 = vpop.f32.mrb[0].mxu0
    %1486 = vdwg.mxu0
    %1487 = vmatprep.subr.bf16.mxu0 %v581
    %1488 = vmatpush1.bf16.msra.mxu0 %v580
    %1489 = vmatprep.subr.bf16.mxu0 %v589
    %1490 = vmatpush1.bf16.msra.mxu0 %v588
    %1491 = vmatprep.subr.bf16.mxu0 %v597
    %1492 = vmatpush1.bf16.msra.mxu0 %v596
    %1493 = vmatprep.subr.bf16.mxu0 %v605
    %1494 = vmatpush1.bf16.msra.mxu0 %v604
    %1495 = vmatprep.subr.bf16.mxu0 %v613
    %1496 = vmatpush1.bf16.msra.mxu0 %v612
    %1497 = vmatprep.subr.bf16.mxu0 %v621
    %1498 = vmatpush1.bf16.msra.mxu0 %v620
    %1499 = vmatprep.subr.bf16.mxu0 %v629
    %1500 = vmatpush1.bf16.msra.mxu0 %v628
    %1501 = vmatprep.subr.bf16.mxu0 %v637
    %1502 = vmatpush1.bf16.msra.mxu0 %v636
    %1503 = vmatprep.subr.bf16.mxu0 %v645
    %1504 = vmatpush1.bf16.msra.mxu0 %v644
    %1505 = vmatprep.subr.bf16.mxu0 %v653
    %1506 = vmatpush1.bf16.msra.mxu0 %v652
    %1507 = vmatprep.subr.bf16.mxu0 %v661
    %1508 = vmatpush1.bf16.msra.mxu0 %v660
    %1509 = vmatprep.subr.bf16.mxu0 %v669
    %1510 = vmatpush1.bf16.msra.mxu0 %v668
    %1511 = vmatprep.subr.bf16.mxu0 %v677
    %1512 = vmatpush1.bf16.msra.mxu0 %v676
    %1513 = vmatprep.subr.bf16.mxu0 %v685
    %1514 = vmatpush1.bf16.msra.mxu0 %v684
    %1515 = vmatprep.subr.bf16.mxu0 %v693
    %1516 = vmatpush1.bf16.msra.mxu0 %v692
    %1517 = vmatprep.subr.bf16.mxu0 %v701
    %1518 = vmatpush1.bf16.msra.mxu0 %v700
    %1519 = vmatprep.mubr.bf16.mxu0 %v1404
    %1520 = vmatmul.mubr.bf16.gmra.mrb[0].mxu0 %v1080
    %v1521 = vpop.f32.mrb[0].mxu0
    %v1522 = vadd.f32 0.0, %v1521
    %v1523 = vpop.f32.mrb[0].mxu0
    %v1524 = vadd.f32 0.0, %v1523
    %v1525 = vpop.f32.mrb[0].mxu0
    %v1526 = vpop.f32.mrb[0].mxu0
    %1527 = vdwg.mxu0
    %1528 = vmatprep.subr.bf16.mxu0 %v583
    %1529 = vmatpush1.bf16.msra.mxu0 %v582
    %1530 = vmatprep.subr.bf16.mxu0 %v591
    %1531 = vmatpush1.bf16.msra.mxu0 %v590
    %1532 = vmatprep.subr.bf16.mxu0 %v599
    %1533 = vmatpush1.bf16.msra.mxu0 %v598
    %1534 = vmatprep.subr.bf16.mxu0 %v607
    %1535 = vmatpush1.bf16.msra.mxu0 %v606
    %1536 = vmatprep.subr.bf16.mxu0 %v615
    %1537 = vmatpush1.bf16.msra.mxu0 %v614
    %1538 = vmatprep.subr.bf16.mxu0 %v623
    %1539 = vmatpush1.bf16.msra.mxu0 %v622
    %1540 = vmatprep.subr.bf16.mxu0 %v631
    %1541 = vmatpush1.bf16.msra.mxu0 %v630
    %1542 = vmatprep.subr.bf16.mxu0 %v639
    %1543 = vmatpush1.bf16.msra.mxu0 %v638
    %1544 = vmatprep.subr.bf16.mxu0 %v647
    %1545 = vmatpush1.bf16.msra.mxu0 %v646
    %1546 = vmatprep.subr.bf16.mxu0 %v655
    %1547 = vmatpush1.bf16.msra.mxu0 %v654
    %1548 = vmatprep.subr.bf16.mxu0 %v663
    %1549 = vmatpush1.bf16.msra.mxu0 %v662
    %1550 = vmatprep.subr.bf16.mxu0 %v671
    %1551 = vmatpush1.bf16.msra.mxu0 %v670
    %1552 = vmatprep.subr.bf16.mxu0 %v679
    %1553 = vmatpush1.bf16.msra.mxu0 %v678
    %1554 = vmatprep.subr.bf16.mxu0 %v687
    %1555 = vmatpush1.bf16.msra.mxu0 %v686
    %1556 = vmatprep.subr.bf16.mxu0 %v695
    %1557 = vmatpush1.bf16.msra.mxu0 %v694
    %1558 = vmatprep.subr.bf16.mxu0 %v703
    %1559 = vmatpush1.bf16.msra.mxu0 %v702
    %1560 = vmatprep.mubr.bf16.mxu0 %v1404
    %1561 = vmatmul.mubr.bf16.gmra.mrb[0].mxu0 %v1080
    %v1562 = vpop.f32.mrb[0].mxu0
    %v1563 = vadd.f32 0.0, %v1562
    %v1564 = vpop.f32.mrb[0].mxu0
    %v1565 = vadd.f32 0.0, %v1564
    %v1566 = vpop.f32.mrb[0].mxu0
    %v1567 = vpop.f32.mrb[0].mxu0
    %1568 = vdwg.mxu0
    %s1569 = scalar_lea.vmem %s0, 2
    %v1570 = vld [vmem:[%s1569] sm:$0x3]
    %1572 = vset.pattern.permute.xlu0 0
    %1573 = vperm.xlu0 %1572, %v1570
    %v1574 = vpop.permute.xlu0 %1573
    %v1576 = vmul.f32 %v1574, %v1006
    %v1577 = vmul.f32 %v1574, %v1010
    %v1578 = vmul.f32 %v1574, %v1014
    %v1579 = vmul.f32 %v1574, %v1018
    %v1580 = vadd.f32 %v1576, %v1031
    %v1581 = vadd.f32 %v1577, %v1035
    %v1582 = vadd.f32 %v1578, %v1039
    %v1583 = vadd.f32 %v1579, %v1043
    %v1584 = vadd.f32 %v1580, %v1440
    %v1585 = vadd.f32 %v1581, %v1442
    %v1586 = vadd.f32 %v1582, %v1481
    %v1587 = vadd.f32 %v1583, %v1483
    %v1588 = vxor.u32 %v1584, 2147483648
    %v1589 = vxor.u32 %v1585, 2147483648
    %v1590 = vxor.u32 %v1586, 2147483648
    %v1591 = vmul.f32 %v1588, 1.442695
    %v1592 = vpow.pop %v1591
    %v1593 = vmul.f32 %v1589, 1.442695
    %v1594 = vpow.pop %v1593
    %v1595 = vmul.f32 %v1590, 1.442695
    %v1596 = vpow.pop %v1595
    %v1597 = vadd.f32 %v1592, 1.0
    %v1598 = vadd.f32 %v1594, 1.0
    %v1599 = vadd.f32 %v1596, 1.0
    %v1600 = vrcp.pop %v1597
    %v1601 = vmul.f32 1.0, %v1600
    %v1602 = vrcp.pop %v1598
    %v1603 = vmul.f32 1.0, %v1602
    %v1604 = vrcp.pop %v1599
    %v1605 = vmul.f32 1.0, %v1604
    %v1606 = vtanh.pop %v1587
    %v1607 = vmul.f32 %v1603, %v1077
    %v1608 = vmul.f32 %v1601, %v1606
    %v1609 = vadd.f32 %v1607, %v1608
    %v1610 = vtanh.pop %v1609
    %v1611 = vmul.f32 %v1605, %v1610
    %v1612 = vpack.c.bf16 %v1611, %v1611
    %1613 = vmatprep.subr.bf16.mxu0 %v1210
    %1614 = vmatpush1.bf16.msra.mxu0 %v1209
    %1615 = vmatprep.subr.bf16.mxu0 %v1214
    %1616 = vmatpush1.bf16.msra.mxu0 %v1213
    %1617 = vmatprep.subr.bf16.mxu0 %v1218
    %1618 = vmatpush1.bf16.msra.mxu0 %v1217
    %1619 = vmatprep.subr.bf16.mxu0 %v1222
    %1620 = vmatpush1.bf16.msra.mxu0 %v1221
    %1621 = vmatprep.subr.bf16.mxu0 %v1226
    %1622 = vmatpush1.bf16.msra.mxu0 %v1225
    %1623 = vmatprep.subr.bf16.mxu0 %v1230
    %1624 = vmatpush1.bf16.msra.mxu0 %v1229
    %1625 = vmatprep.subr.bf16.mxu0 %v1234
    %1626 = vmatpush1.bf16.msra.mxu0 %v1233
    %1627 = vmatprep.subr.bf16.mxu0 %v1238
    %1628 = vmatpush1.bf16.msra.mxu0 %v1237
    %1629 = vmatprep.subr.bf16.mxu0 0
    %1630 = vmatpush1.bf16.msra.mxu0 0
    %1631 = vmatprep.subr.bf16.mxu0 0
    %1632 = vmatpush1.bf16.msra.mxu0 0
    %1633 = vmatprep.subr.bf16.mxu0 0
    %1634 = vmatpush1.bf16.msra.mxu0 0
    %1635 = vmatprep.subr.bf16.mxu0 0
    %1636 = vmatpush1.bf16.msra.mxu0 0
    %1637 = vmatprep.subr.bf16.mxu0 0
    %1638 = vmatpush1.bf16.msra.mxu0 0
    %1639 = vmatprep.subr.bf16.mxu0 0
    %1640 = vmatpush1.bf16.msra.mxu0 0
    %1641 = vmatprep.subr.bf16.mxu0 0
    %1642 = vmatpush1.bf16.msra.mxu0 0
    %1643 = vmatprep.subr.bf16.mxu0 0
    %1644 = vmatpush1.bf16.msra.mxu0 0
    %1645 = vmatprep.mubr.bf16.mxu0 0
    %1646 = vmatmul.mubr.bf16.gmra.mrb[0].mxu0 %v1612
    %v1647 = vpop.f32.mrb[0].mxu0
    %v1648 = vadd.f32 %v1522, %v1647
    %v1649 = vpop.f32.mrb[0].mxu0
    %v1650 = vadd.f32 %v1524, %v1649
    %v1651 = vpop.f32.mrb[0].mxu0
    %v1652 = vpop.f32.mrb[0].mxu0
    %1653 = vdwg.mxu0
    %1654 = vmatprep.subr.bf16.mxu0 %v1212
    %1655 = vmatpush1.bf16.msra.mxu0 %v1211
    %1656 = vmatprep.subr.bf16.mxu0 %v1216
    %1657 = vmatpush1.bf16.msra.mxu0 %v1215
    %1658 = vmatprep.subr.bf16.mxu0 %v1220
    %1659 = vmatpush1.bf16.msra.mxu0 %v1219
    %1660 = vmatprep.subr.bf16.mxu0 %v1224
    %1661 = vmatpush1.bf16.msra.mxu0 %v1223
    %1662 = vmatprep.subr.bf16.mxu0 %v1228
    %1663 = vmatpush1.bf16.msra.mxu0 %v1227
    %1664 = vmatprep.subr.bf16.mxu0 %v1232
    %1665 = vmatpush1.bf16.msra.mxu0 %v1231
    %1666 = vmatprep.subr.bf16.mxu0 %v1236
    %1667 = vmatpush1.bf16.msra.mxu0 %v1235
    %1668 = vmatprep.subr.bf16.mxu0 %v1240
    %1669 = vmatpush1.bf16.msra.mxu0 %v1239
    %1670 = vmatprep.subr.bf16.mxu0 0
    %1671 = vmatpush1.bf16.msra.mxu0 0
    %1672 = vmatprep.subr.bf16.mxu0 0
    %1673 = vmatpush1.bf16.msra.mxu0 0
    %1674 = vmatprep.subr.bf16.mxu0 0
    %1675 = vmatpush1.bf16.msra.mxu0 0
    %1676 = vmatprep.subr.bf16.mxu0 0
    %1677 = vmatpush1.bf16.msra.mxu0 0
    %1678 = vmatprep.subr.bf16.mxu0 0
    %1679 = vmatpush1.bf16.msra.mxu0 0
    %1680 = vmatprep.subr.bf16.mxu0 0
    %1681 = vmatpush1.bf16.msra.mxu0 0
    %1682 = vmatprep.subr.bf16.mxu0 0
    %1683 = vmatpush1.bf16.msra.mxu0 0
    %1684 = vmatprep.subr.bf16.mxu0 0
    %1685 = vmatpush1.bf16.msra.mxu0 0
    %1686 = vmatprep.mubr.bf16.mxu0 0
    %1687 = vmatmul.mubr.bf16.gmra.mrb[0].mxu0 %v1612
    %v1688 = vpop.f32.mrb[0].mxu0
    %v1689 = vadd.f32 %v1563, %v1688
    %v1690 = vpop.f32.mrb[0].mxu0
    %v1691 = vadd.f32 %v1565, %v1690
    %v1692 = vpop.f32.mrb[0].mxu0
    %v1693 = vpop.f32.mrb[0].mxu0
    %1694 = vdwg.mxu0
    %v1695 = vadd.f32 %v1648, %v1359
    %v1696 = vadd.f32 %v1650, %v1363
    %v1697 = vadd.f32 %v1689, %v1367
    %v1698 = vadd.f32 %v1691, %v1371
    %v1699 = vxor.u32 %v1695, 2147483648
    %v1700 = vxor.u32 %v1696, 2147483648
    %v1701 = vxor.u32 %v1697, 2147483648
    %v1702 = vmul.f32 %v1699, 1.442695
    %v1703 = vpow.pop %v1702
    %v1704 = vmul.f32 %v1700, 1.442695
    %v1705 = vpow.pop %v1704
    %v1706 = vmul.f32 %v1701, 1.442695
    %v1707 = vpow.pop %v1706
    %v1708 = vadd.f32 %v1703, 1.0
    %v1709 = vadd.f32 %v1705, 1.0
    %v1710 = vadd.f32 %v1707, 1.0
    %v1711 = vrcp.pop %v1708
    %v1712 = vmul.f32 1.0, %v1711
    %v1713 = vrcp.pop %v1709
    %v1714 = vmul.f32 1.0, %v1713
    %v1715 = vrcp.pop %v1710
    %v1716 = vmul.f32 1.0, %v1715
    %v1717 = vtanh.pop %v1698
    %v1718 = vmul.f32 %v1714, %v1401
    %v1719 = vmul.f32 %v1712, %v1717
    %v1720 = vadd.f32 %v1718, %v1719
    %v1721 = vtanh.pop %v1720
    %v1722 = vmul.f32 %v1716, %v1721
    %v1723 = vpack.c.bf16 %v1722, %v1722
    %1724 = vmatprep.subr.bf16.mxu0 %v577
    %1725 = vmatpush1.bf16.msra.mxu0 %v576
    %1726 = vmatprep.subr.bf16.mxu0 %v585
    %1727 = vmatpush1.bf16.msra.mxu0 %v584
    %1728 = vmatprep.subr.bf16.mxu0 %v593
    %1729 = vmatpush1.bf16.msra.mxu0 %v592
    %1730 = vmatprep.subr.bf16.mxu0 %v601
    %1731 = vmatpush1.bf16.msra.mxu0 %v600
    %1732 = vmatprep.subr.bf16.mxu0 %v609
    %1733 = vmatpush1.bf16.msra.mxu0 %v608
    %1734 = vmatprep.subr.bf16.mxu0 %v617
    %1735 = vmatpush1.bf16.msra.mxu0 %v616
    %1736 = vmatprep.subr.bf16.mxu0 %v625
    %1737 = vmatpush1.bf16.msra.mxu0 %v624
    %1738 = vmatprep.subr.bf16.mxu0 %v633
    %1739 = vmatpush1.bf16.msra.mxu0 %v632
    %1740 = vmatprep.subr.bf16.mxu0 %v641
    %1741 = vmatpush1.bf16.msra.mxu0 %v640
    %1742 = vmatprep.subr.bf16.mxu0 %v649
    %1743 = vmatpush1.bf16.msra.mxu0 %v648
    %1744 = vmatprep.subr.bf16.mxu0 %v657
    %1745 = vmatpush1.bf16.msra.mxu0 %v656
    %1746 = vmatprep.subr.bf16.mxu0 %v665
    %1747 = vmatpush1.bf16.msra.mxu0 %v664
    %1748 = vmatprep.subr.bf16.mxu0 %v673
    %1749 = vmatpush1.bf16.msra.mxu0 %v672
    %1750 = vmatprep.subr.bf16.mxu0 %v681
    %1751 = vmatpush1.bf16.msra.mxu0 %v680
    %1752 = vmatprep.subr.bf16.mxu0 %v689
    %1753 = vmatpush1.bf16.msra.mxu0 %v688
    %1754 = vmatprep.subr.bf16.mxu0 %v697
    %1755 = vmatpush1.bf16.msra.mxu0 %v696
    %1756 = vmatprep.mubr.bf16.mxu0 %v1723
    %1757 = vmatmul.mubr.bf16.gmra.mrb[0].mxu0 %v1612
    %v1758 = vpop.f32.mrb[0].mxu0
    %v1759 = vadd.f32 0.0, %v1758
    %v1760 = vpop.f32.mrb[0].mxu0
    %v1761 = vadd.f32 0.0, %v1760
    %v1762 = vpop.f32.mrb[0].mxu0
    %v1763 = vpop.f32.mrb[0].mxu0
    %1764 = vdwg.mxu0
    %1765 = vmatprep.subr.bf16.mxu0 %v579
    %1766 = vmatpush1.bf16.msra.mxu0 %v578
    %1767 = vmatprep.subr.bf16.mxu0 %v587
    %1768 = vmatpush1.bf16.msra.mxu0 %v586
    %1769 = vmatprep.subr.bf16.mxu0 %v595
    %1770 = vmatpush1.bf16.msra.mxu0 %v594
    %1771 = vmatprep.subr.bf16.mxu0 %v603
    %1772 = vmatpush1.bf16.msra.mxu0 %v602
    %1773 = vmatprep.subr.bf16.mxu0 %v611
    %1774 = vmatpush1.bf16.msra.mxu0 %v610
    %1775 = vmatprep.subr.bf16.mxu0 %v619
    %1776 = vmatpush1.bf16.msra.mxu0 %v618
    %1777 = vmatprep.subr.bf16.mxu0 %v627
    %1778 = vmatpush1.bf16.msra.mxu0 %v626
    %1779 = vmatprep.subr.bf16.mxu0 %v635
    %1780 = vmatpush1.bf16.msra.mxu0 %v634
    %1781 = vmatprep.subr.bf16.mxu0 %v643
    %1782 = vmatpush1.bf16.msra.mxu0 %v642
    %1783 = vmatprep.subr.bf16.mxu0 %v651
    %1784 = vmatpush1.bf16.msra.mxu0 %v650
    %1785 = vmatprep.subr.bf16.mxu0 %v659
    %1786 = vmatpush1.bf16.msra.mxu0 %v658
    %1787 = vmatprep.subr.bf16.mxu0 %v667
    %1788 = vmatpush1.bf16.msra.mxu0 %v666
    %1789 = vmatprep.subr.bf16.mxu0 %v675
    %1790 = vmatpush1.bf16.msra.mxu0 %v674
    %1791 = vmatprep.subr.bf16.mxu0 %v683
    %1792 = vmatpush1.bf16.msra.mxu0 %v682
    %1793 = vmatprep.subr.bf16.mxu0 %v691
    %1794 = vmatpush1.bf16.msra.mxu0 %v690
    %1795 = vmatprep.subr.bf16.mxu0 %v699
    %1796 = vmatpush1.bf16.msra.mxu0 %v698
    %1797 = vmatprep.mubr.bf16.mxu0 %v1723
    %1798 = vmatmul.mubr.bf16.gmra.mrb[0].mxu0 %v1612
    %v1799 = vpop.f32.mrb[0].mxu0
    %v1800 = vadd.f32 0.0, %v1799
    %v1801 = vpop.f32.mrb[0].mxu0
    %v1802 = vadd.f32 0.0, %v1801
    %v1803 = vpop.f32.mrb[0].mxu0
    %v1804 = vpop.f32.mrb[0].mxu0
    %1805 = vdwg.mxu0
    %1806 = vmatprep.subr.bf16.mxu0 %v581
    %1807 = vmatpush1.bf16.msra.mxu0 %v580
    %1808 = vmatprep.subr.bf16.mxu0 %v589
    %1809 = vmatpush1.bf16.msra.mxu0 %v588
    %1810 = vmatprep.subr.bf16.mxu0 %v597
    %1811 = vmatpush1.bf16.msra.mxu0 %v596
    %1812 = vmatprep.subr.bf16.mxu0 %v605
    %1813 = vmatpush1.bf16.msra.mxu0 %v604
    %1814 = vmatprep.subr.bf16.mxu0 %v613
    %1815 = vmatpush1.bf16.msra.mxu0 %v612
    %1816 = vmatprep.subr.bf16.mxu0 %v621
    %1817 = vmatpush1.bf16.msra.mxu0 %v620
    %1818 = vmatprep.subr.bf16.mxu0 %v629
    %1819 = vmatpush1.bf16.msra.mxu0 %v628
    %1820 = vmatprep.subr.bf16.mxu0 %v637
    %1821 = vmatpush1.bf16.msra.mxu0 %v636
    %1822 = vmatprep.subr.bf16.mxu0 %v645
    %1823 = vmatpush1.bf16.msra.mxu0 %v644
    %1824 = vmatprep.subr.bf16.mxu0 %v653
    %1825 = vmatpush1.bf16.msra.mxu0 %v652
    %1826 = vmatprep.subr.bf16.mxu0 %v661
    %1827 = vmatpush1.bf16.msra.mxu0 %v660
    %1828 = vmatprep.subr.bf16.mxu0 %v669
    %1829 = vmatpush1.bf16.msra.mxu0 %v668
    %1830 = vmatprep.subr.bf16.mxu0 %v677
    %1831 = vmatpush1.bf16.msra.mxu0 %v676
    %1832 = vmatprep.subr.bf16.mxu0 %v685
    %1833 = vmatpush1.bf16.msra.mxu0 %v684
    %1834 = vmatprep.subr.bf16.mxu0 %v693
    %1835 = vmatpush1.bf16.msra.mxu0 %v692
    %1836 = vmatprep.subr.bf16.mxu0 %v701
    %1837 = vmatpush1.bf16.msra.mxu0 %v700
    %1838 = vmatprep.mubr.bf16.mxu0 %v1723
    %1839 = vmatmul.mubr.bf16.gmra.mrb[0].mxu0 %v1612
    %v1840 = vpop.f32.mrb[0].mxu0
    %v1841 = vadd.f32 0.0, %v1840
    %v1842 = vpop.f32.mrb[0].mxu0
    %v1843 = vadd.f32 0.0, %v1842
    %v1844 = vpop.f32.mrb[0].mxu0
    %v1845 = vpop.f32.mrb[0].mxu0
    %1846 = vdwg.mxu0
    %1847 = vmatprep.subr.bf16.mxu0 %v583
    %1848 = vmatpush1.bf16.msra.mxu0 %v582
    %1849 = vmatprep.subr.bf16.mxu0 %v591
    %1850 = vmatpush1.bf16.msra.mxu0 %v590
    %1851 = vmatprep.subr.bf16.mxu0 %v599
    %1852 = vmatpush1.bf16.msra.mxu0 %v598
    %1853 = vmatprep.subr.bf16.mxu0 %v607
    %1854 = vmatpush1.bf16.msra.mxu0 %v606
    %1855 = vmatprep.subr.bf16.mxu0 %v615
    %1856 = vmatpush1.bf16.msra.mxu0 %v614
    %1857 = vmatprep.subr.bf16.mxu0 %v623
    %1858 = vmatpush1.bf16.msra.mxu0 %v622
    %1859 = vmatprep.subr.bf16.mxu0 %v631
    %1860 = vmatpush1.bf16.msra.mxu0 %v630
    %1861 = vmatprep.subr.bf16.mxu0 %v639
    %1862 = vmatpush1.bf16.msra.mxu0 %v638
    %1863 = vmatprep.subr.bf16.mxu0 %v647
    %1864 = vmatpush1.bf16.msra.mxu0 %v646
    %1865 = vmatprep.subr.bf16.mxu0 %v655
    %1866 = vmatpush1.bf16.msra.mxu0 %v654
    %1867 = vmatprep.subr.bf16.mxu0 %v663
    %1868 = vmatpush1.bf16.msra.mxu0 %v662
    %1869 = vmatprep.subr.bf16.mxu0 %v671
    %1870 = vmatpush1.bf16.msra.mxu0 %v670
    %1871 = vmatprep.subr.bf16.mxu0 %v679
    %1872 = vmatpush1.bf16.msra.mxu0 %v678
    %1873 = vmatprep.subr.bf16.mxu0 %v687
    %1874 = vmatpush1.bf16.msra.mxu0 %v686
    %1875 = vmatprep.subr.bf16.mxu0 %v695
    %1876 = vmatpush1.bf16.msra.mxu0 %v694
    %1877 = vmatprep.subr.bf16.mxu0 %v703
    %1878 = vmatpush1.bf16.msra.mxu0 %v702
    %1879 = vmatprep.mubr.bf16.mxu0 %v1723
    %1880 = vmatmul.mubr.bf16.gmra.mrb[0].mxu0 %v1612
    %v1881 = vpop.f32.mrb[0].mxu0
    %v1882 = vadd.f32 0.0, %v1881
    %v1883 = vpop.f32.mrb[0].mxu0
    %v1884 = vadd.f32 0.0, %v1883
    %v1885 = vpop.f32.mrb[0].mxu0
    %v1886 = vpop.f32.mrb[0].mxu0
    %1887 = vdwg.mxu0
    %s1888 = scalar_lea.vmem %s0, 4
    %v1889 = vld [vmem:[%s1888] sm:$0x3]
    %1891 = vset.pattern.permute.xlu0 0
    %1892 = vperm.xlu0 %1891, %v1889
    %v1893 = vpop.permute.xlu0 %1892
    %v1895 = vmul.f32 %v1893, %v1006
    %v1896 = vmul.f32 %v1893, %v1010
    %v1897 = vmul.f32 %v1893, %v1014
    %v1898 = vmul.f32 %v1893, %v1018
    %v1899 = vadd.f32 %v1895, %v1031
    %v1900 = vadd.f32 %v1896, %v1035
    %v1901 = vadd.f32 %v1897, %v1039
    %v1902 = vadd.f32 %v1898, %v1043
    %v1903 = vadd.f32 %v1899, %v1759
    %v1904 = vadd.f32 %v1900, %v1761
    %v1905 = vadd.f32 %v1901, %v1800
    %v1906 = vadd.f32 %v1902, %v1802
    %v1907 = vxor.u32 %v1903, 2147483648
    %v1908 = vxor.u32 %v1904, 2147483648
    %v1909 = vxor.u32 %v1905, 2147483648
    %v1910 = vmul.f32 %v1907, 1.442695
    %v1911 = vpow.pop %v1910
    %v1912 = vmul.f32 %v1908, 1.442695
    %v1913 = vpow.pop %v1912
    %v1914 = vmul.f32 %v1909, 1.442695
    %v1915 = vpow.pop %v1914
    %v1916 = vadd.f32 %v1911, 1.0
    %v1917 = vadd.f32 %v1913, 1.0
    %v1918 = vadd.f32 %v1915, 1.0
    %v1919 = vrcp.pop %v1916
    %v1920 = vmul.f32 1.0, %v1919
    %v1921 = vrcp.pop %v1917
    %v1922 = vmul.f32 1.0, %v1921
    %v1923 = vrcp.pop %v1918
    %v1924 = vmul.f32 1.0, %v1923
    %v1925 = vtanh.pop %v1906
    %v1926 = vmul.f32 %v1922, %v1609
    %v1927 = vmul.f32 %v1920, %v1925
    %v1928 = vadd.f32 %v1926, %v1927
    %v1929 = vtanh.pop %v1928
    %v1930 = vmul.f32 %v1924, %v1929
    %v1931 = vpack.c.bf16 %v1930, %v1930
    %1932 = vmatprep.subr.bf16.mxu0 %v1210
    %1933 = vmatpush1.bf16.msra.mxu0 %v1209
    %1934 = vmatprep.subr.bf16.mxu0 %v1214
    %1935 = vmatpush1.bf16.msra.mxu0 %v1213
    %1936 = vmatprep.subr.bf16.mxu0 %v1218
    %1937 = vmatpush1.bf16.msra.mxu0 %v1217
    %1938 = vmatprep.subr.bf16.mxu0 %v1222
    %1939 = vmatpush1.bf16.msra.mxu0 %v1221
    %1940 = vmatprep.subr.bf16.mxu0 %v1226
    %1941 = vmatpush1.bf16.msra.mxu0 %v1225
    %1942 = vmatprep.subr.bf16.mxu0 %v1230
    %1943 = vmatpush1.bf16.msra.mxu0 %v1229
    %1944 = vmatprep.subr.bf16.mxu0 %v1234
    %1945 = vmatpush1.bf16.msra.mxu0 %v1233
    %1946 = vmatprep.subr.bf16.mxu0 %v1238
    %1947 = vmatpush1.bf16.msra.mxu0 %v1237
    %1948 = vmatprep.subr.bf16.mxu0 0
    %1949 = vmatpush1.bf16.msra.mxu0 0
    %1950 = vmatprep.subr.bf16.mxu0 0
    %1951 = vmatpush1.bf16.msra.mxu0 0
    %1952 = vmatprep.subr.bf16.mxu0 0
    %1953 = vmatpush1.bf16.msra.mxu0 0
    %1954 = vmatprep.subr.bf16.mxu0 0
    %1955 = vmatpush1.bf16.msra.mxu0 0
    %1956 = vmatprep.subr.bf16.mxu0 0
    %1957 = vmatpush1.bf16.msra.mxu0 0
    %1958 = vmatprep.subr.bf16.mxu0 0
    %1959 = vmatpush1.bf16.msra.mxu0 0
    %1960 = vmatprep.subr.bf16.mxu0 0
    %1961 = vmatpush1.bf16.msra.mxu0 0
    %1962 = vmatprep.subr.bf16.mxu0 0
    %1963 = vmatpush1.bf16.msra.mxu0 0
    %1964 = vmatprep.mubr.bf16.mxu0 0
    %1965 = vmatmul.mubr.bf16.gmra.mrb[0].mxu0 %v1931
    %v1966 = vpop.f32.mrb[0].mxu0
    %v1967 = vadd.f32 %v1841, %v1966
    %v1968 = vpop.f32.mrb[0].mxu0
    %v1969 = vadd.f32 %v1843, %v1968
    %v1970 = vpop.f32.mrb[0].mxu0
    %v1971 = vpop.f32.mrb[0].mxu0
    %1972 = vdwg.mxu0
    %1973 = vmatprep.subr.bf16.mxu0 %v1212
    %1974 = vmatpush1.bf16.msra.mxu0 %v1211
    %1975 = vmatprep.subr.bf16.mxu0 %v1216
    %1976 = vmatpush1.bf16.msra.mxu0 %v1215
    %1977 = vmatprep.subr.bf16.mxu0 %v1220
    %1978 = vmatpush1.bf16.msra.mxu0 %v1219
    %1979 = vmatprep.subr.bf16.mxu0 %v1224
    %1980 = vmatpush1.bf16.msra.mxu0 %v1223
    %1981 = vmatprep.subr.bf16.mxu0 %v1228
    %1982 = vmatpush1.bf16.msra.mxu0 %v1227
    %1983 = vmatprep.subr.bf16.mxu0 %v1232
    %1984 = vmatpush1.bf16.msra.mxu0 %v1231
    %1985 = vmatprep.subr.bf16.mxu0 %v1236
    %1986 = vmatpush1.bf16.msra.mxu0 %v1235
    %1987 = vmatprep.subr.bf16.mxu0 %v1240
    %1988 = vmatpush1.bf16.msra.mxu0 %v1239
    %1989 = vmatprep.subr.bf16.mxu0 0
    %1990 = vmatpush1.bf16.msra.mxu0 0
    %1991 = vmatprep.subr.bf16.mxu0 0
    %1992 = vmatpush1.bf16.msra.mxu0 0
    %1993 = vmatprep.subr.bf16.mxu0 0
    %1994 = vmatpush1.bf16.msra.mxu0 0
    %1995 = vmatprep.subr.bf16.mxu0 0
    %1996 = vmatpush1.bf16.msra.mxu0 0
    %1997 = vmatprep.subr.bf16.mxu0 0
    %1998 = vmatpush1.bf16.msra.mxu0 0
    %1999 = vmatprep.subr.bf16.mxu0 0
    %2000 = vmatpush1.bf16.msra.mxu0 0
    %2001 = vmatprep.subr.bf16.mxu0 0
    %2002 = vmatpush1.bf16.msra.mxu0 0
    %2003 = vmatprep.subr.bf16.mxu0 0
    %2004 = vmatpush1.bf16.msra.mxu0 0
    %2005 = vmatprep.mubr.bf16.mxu0 0
    %2006 = vmatmul.mubr.bf16.gmra.mrb[0].mxu0 %v1931
    %v2007 = vpop.f32.mrb[0].mxu0
    %v2008 = vadd.f32 %v1882, %v2007
    %v2009 = vpop.f32.mrb[0].mxu0
    %v2010 = vadd.f32 %v1884, %v2009
    %v2011 = vpop.f32.mrb[0].mxu0
    %v2012 = vpop.f32.mrb[0].mxu0
    %2013 = vdwg.mxu0
    %v2014 = vadd.f32 %v1967, %v1359
    %v2015 = vadd.f32 %v1969, %v1363
    %v2016 = vadd.f32 %v2008, %v1367
    %v2017 = vadd.f32 %v2010, %v1371
    %v2018 = vxor.u32 %v2014, 2147483648
    %v2019 = vxor.u32 %v2015, 2147483648
    %v2020 = vxor.u32 %v2016, 2147483648
    %v2021 = vmul.f32 %v2018, 1.442695
    %v2022 = vpow.pop %v2021
    %v2023 = vmul.f32 %v2019, 1.442695
    %v2024 = vpow.pop %v2023
    %v2025 = vmul.f32 %v2020, 1.442695
    %v2026 = vpow.pop %v2025
    %v2027 = vadd.f32 %v2022, 1.0
    %v2028 = vadd.f32 %v2024, 1.0
    %v2029 = vadd.f32 %v2026, 1.0
    %v2030 = vrcp.pop %v2027
    %v2031 = vmul.f32 1.0, %v2030
    %v2032 = vrcp.pop %v2028
    %v2033 = vmul.f32 1.0, %v2032
    %v2034 = vrcp.pop %v2029
    %v2035 = vmul.f32 1.0, %v2034
    %v2036 = vtanh.pop %v2017
    %v2037 = vmul.f32 %v2033, %v1720
    %v2038 = vmul.f32 %v2031, %v2036
    %v2039 = vadd.f32 %v2037, %v2038
    %v2040 = vtanh.pop %v2039
    %v2041 = vmul.f32 %v2035, %v2040
    %v2042 = vpack.c.bf16 %v2041, %v2041
    %2043 = vmatprep.subr.bf16.mxu0 %v577
    %2044 = vmatpush1.bf16.msra.mxu0 %v576
    %2045 = vmatprep.subr.bf16.mxu0 %v585
    %2046 = vmatpush1.bf16.msra.mxu0 %v584
    %2047 = vmatprep.subr.bf16.mxu0 %v593
    %2048 = vmatpush1.bf16.msra.mxu0 %v592
    %2049 = vmatprep.subr.bf16.mxu0 %v601
    %2050 = vmatpush1.bf16.msra.mxu0 %v600
    %2051 = vmatprep.subr.bf16.mxu0 %v609
    %2052 = vmatpush1.bf16.msra.mxu0 %v608
    %2053 = vmatprep.subr.bf16.mxu0 %v617
    %2054 = vmatpush1.bf16.msra.mxu0 %v616
    %2055 = vmatprep.subr.bf16.mxu0 %v625
    %2056 = vmatpush1.bf16.msra.mxu0 %v624
    %2057 = vmatprep.subr.bf16.mxu0 %v633
    %2058 = vmatpush1.bf16.msra.mxu0 %v632
    %2059 = vmatprep.subr.bf16.mxu0 %v641
    %2060 = vmatpush1.bf16.msra.mxu0 %v640
    %2061 = vmatprep.subr.bf16.mxu0 %v649
    %2062 = vmatpush1.bf16.msra.mxu0 %v648
    %2063 = vmatprep.subr.bf16.mxu0 %v657
    %2064 = vmatpush1.bf16.msra.mxu0 %v656
    %2065 = vmatprep.subr.bf16.mxu0 %v665
    %2066 = vmatpush1.bf16.msra.mxu0 %v664
    %2067 = vmatprep.subr.bf16.mxu0 %v673
    %2068 = vmatpush1.bf16.msra.mxu0 %v672
    %2069 = vmatprep.subr.bf16.mxu0 %v681
    %2070 = vmatpush1.bf16.msra.mxu0 %v680
    %2071 = vmatprep.subr.bf16.mxu0 %v689
    %2072 = vmatpush1.bf16.msra.mxu0 %v688
    %2073 = vmatprep.subr.bf16.mxu0 %v697
    %2074 = vmatpush1.bf16.msra.mxu0 %v696
    %2075 = vmatprep.mubr.bf16.mxu0 %v2042
    %2076 = vmatmul.mubr.bf16.gmra.mrb[0].mxu0 %v1931
    %v2077 = vpop.f32.mrb[0].mxu0
    %v2078 = vadd.f32 0.0, %v2077
    %v2079 = vpop.f32.mrb[0].mxu0
    %v2080 = vadd.f32 0.0, %v2079
    %v2081 = vpop.f32.mrb[0].mxu0
    %v2082 = vpop.f32.mrb[0].mxu0
    %2083 = vdwg.mxu0
    %2084 = vmatprep.subr.bf16.mxu0 %v579
    %2085 = vmatpush1.bf16.msra.mxu0 %v578
    %2086 = vmatprep.subr.bf16.mxu0 %v587
    %2087 = vmatpush1.bf16.msra.mxu0 %v586
    %2088 = vmatprep.subr.bf16.mxu0 %v595
    %2089 = vmatpush1.bf16.msra.mxu0 %v594
    %2090 = vmatprep.subr.bf16.mxu0 %v603
    %2091 = vmatpush1.bf16.msra.mxu0 %v602
    %2092 = vmatprep.subr.bf16.mxu0 %v611
    %2093 = vmatpush1.bf16.msra.mxu0 %v610
    %2094 = vmatprep.subr.bf16.mxu0 %v619
    %2095 = vmatpush1.bf16.msra.mxu0 %v618
    %2096 = vmatprep.subr.bf16.mxu0 %v627
    %2097 = vmatpush1.bf16.msra.mxu0 %v626
    %2098 = vmatprep.subr.bf16.mxu0 %v635
    %2099 = vmatpush1.bf16.msra.mxu0 %v634
    %2100 = vmatprep.subr.bf16.mxu0 %v643
    %2101 = vmatpush1.bf16.msra.mxu0 %v642
    %2102 = vmatprep.subr.bf16.mxu0 %v651
    %2103 = vmatpush1.bf16.msra.mxu0 %v650
    %2104 = vmatprep.subr.bf16.mxu0 %v659
    %2105 = vmatpush1.bf16.msra.mxu0 %v658
    %2106 = vmatprep.subr.bf16.mxu0 %v667
    %2107 = vmatpush1.bf16.msra.mxu0 %v666
    %2108 = vmatprep.subr.bf16.mxu0 %v675
    %2109 = vmatpush1.bf16.msra.mxu0 %v674
    %2110 = vmatprep.subr.bf16.mxu0 %v683
    %2111 = vmatpush1.bf16.msra.mxu0 %v682
    %2112 = vmatprep.subr.bf16.mxu0 %v691
    %2113 = vmatpush1.bf16.msra.mxu0 %v690
    %2114 = vmatprep.subr.bf16.mxu0 %v699
    %2115 = vmatpush1.bf16.msra.mxu0 %v698
    %2116 = vmatprep.mubr.bf16.mxu0 %v2042
    %2117 = vmatmul.mubr.bf16.gmra.mrb[0].mxu0 %v1931
    %v2118 = vpop.f32.mrb[0].mxu0
    %v2119 = vadd.f32 0.0, %v2118
    %v2120 = vpop.f32.mrb[0].mxu0
    %v2121 = vadd.f32 0.0, %v2120
    %v2122 = vpop.f32.mrb[0].mxu0
    %v2123 = vpop.f32.mrb[0].mxu0
    %2124 = vdwg.mxu0
    %2125 = vmatprep.subr.bf16.mxu0 %v581
    %2126 = vmatpush1.bf16.msra.mxu0 %v580
    %2127 = vmatprep.subr.bf16.mxu0 %v589
    %2128 = vmatpush1.bf16.msra.mxu0 %v588
    %2129 = vmatprep.subr.bf16.mxu0 %v597
    %2130 = vmatpush1.bf16.msra.mxu0 %v596
    %2131 = vmatprep.subr.bf16.mxu0 %v605
    %2132 = vmatpush1.bf16.msra.mxu0 %v604
    %2133 = vmatprep.subr.bf16.mxu0 %v613
    %2134 = vmatpush1.bf16.msra.mxu0 %v612
    %2135 = vmatprep.subr.bf16.mxu0 %v621
    %2136 = vmatpush1.bf16.msra.mxu0 %v620
    %2137 = vmatprep.subr.bf16.mxu0 %v629
    %2138 = vmatpush1.bf16.msra.mxu0 %v628
    %2139 = vmatprep.subr.bf16.mxu0 %v637
    %2140 = vmatpush1.bf16.msra.mxu0 %v636
    %2141 = vmatprep.subr.bf16.mxu0 %v645
    %2142 = vmatpush1.bf16.msra.mxu0 %v644
    %2143 = vmatprep.subr.bf16.mxu0 %v653
    %2144 = vmatpush1.bf16.msra.mxu0 %v652
    %2145 = vmatprep.subr.bf16.mxu0 %v661
    %2146 = vmatpush1.bf16.msra.mxu0 %v660
    %2147 = vmatprep.subr.bf16.mxu0 %v669
    %2148 = vmatpush1.bf16.msra.mxu0 %v668
    %2149 = vmatprep.subr.bf16.mxu0 %v677
    %2150 = vmatpush1.bf16.msra.mxu0 %v676
    %2151 = vmatprep.subr.bf16.mxu0 %v685
    %2152 = vmatpush1.bf16.msra.mxu0 %v684
    %2153 = vmatprep.subr.bf16.mxu0 %v693
    %2154 = vmatpush1.bf16.msra.mxu0 %v692
    %2155 = vmatprep.subr.bf16.mxu0 %v701
    %2156 = vmatpush1.bf16.msra.mxu0 %v700
    %2157 = vmatprep.mubr.bf16.mxu0 %v2042
    %2158 = vmatmul.mubr.bf16.gmra.mrb[0].mxu0 %v1931
    %v2159 = vpop.f32.mrb[0].mxu0
    %v2160 = vadd.f32 0.0, %v2159
    %v2161 = vpop.f32.mrb[0].mxu0
    %v2162 = vadd.f32 0.0, %v2161
    %v2163 = vpop.f32.mrb[0].mxu0
    %v2164 = vpop.f32.mrb[0].mxu0
    %2165 = vdwg.mxu0
    %2166 = vmatprep.subr.bf16.mxu0 %v583
    %2167 = vmatpush1.bf16.msra.mxu0 %v582
    %2168 = vmatprep.subr.bf16.mxu0 %v591
    %2169 = vmatpush1.bf16.msra.mxu0 %v590
    %2170 = vmatprep.subr.bf16.mxu0 %v599
    %2171 = vmatpush1.bf16.msra.mxu0 %v598
    %2172 = vmatprep.subr.bf16.mxu0 %v607
    %2173 = vmatpush1.bf16.msra.mxu0 %v606
    %2174 = vmatprep.subr.bf16.mxu0 %v615
    %2175 = vmatpush1.bf16.msra.mxu0 %v614
    %2176 = vmatprep.subr.bf16.mxu0 %v623
    %2177 = vmatpush1.bf16.msra.mxu0 %v622
    %2178 = vmatprep.subr.bf16.mxu0 %v631
    %2179 = vmatpush1.bf16.msra.mxu0 %v630
    %2180 = vmatprep.subr.bf16.mxu0 %v639
    %2181 = vmatpush1.bf16.msra.mxu0 %v638
    %2182 = vmatprep.subr.bf16.mxu0 %v647
    %2183 = vmatpush1.bf16.msra.mxu0 %v646
    %2184 = vmatprep.subr.bf16.mxu0 %v655
    %2185 = vmatpush1.bf16.msra.mxu0 %v654
    %2186 = vmatprep.subr.bf16.mxu0 %v663
    %2187 = vmatpush1.bf16.msra.mxu0 %v662
    %2188 = vmatprep.subr.bf16.mxu0 %v671
    %2189 = vmatpush1.bf16.msra.mxu0 %v670
    %2190 = vmatprep.subr.bf16.mxu0 %v679
    %2191 = vmatpush1.bf16.msra.mxu0 %v678
    %2192 = vmatprep.subr.bf16.mxu0 %v687
    %2193 = vmatpush1.bf16.msra.mxu0 %v686
    %2194 = vmatprep.subr.bf16.mxu0 %v695
    %2195 = vmatpush1.bf16.msra.mxu0 %v694
    %2196 = vmatprep.subr.bf16.mxu0 %v703
    %2197 = vmatpush1.bf16.msra.mxu0 %v702
    %2198 = vmatprep.mubr.bf16.mxu0 %v2042
    %2199 = vmatmul.mubr.bf16.gmra.mrb[0].mxu0 %v1931
    %v2200 = vpop.f32.mrb[0].mxu0
    %v2201 = vadd.f32 0.0, %v2200
    %v2202 = vpop.f32.mrb[0].mxu0
    %v2203 = vadd.f32 0.0, %v2202
    %v2204 = vpop.f32.mrb[0].mxu0
    %v2205 = vpop.f32.mrb[0].mxu0
    %2206 = vdwg.mxu0
    %s2207 = scalar_lea.vmem %s0, 6
    %v2208 = vld [vmem:[%s2207] sm:$0x3]
    %2210 = vset.pattern.permute.xlu0 0
    %2211 = vperm.xlu0 %2210, %v2208
    %v2212 = vpop.permute.xlu0 %2211
    %v2214 = vmul.f32 %v2212, %v1006
    %v2215 = vmul.f32 %v2212, %v1010
    %v2216 = vmul.f32 %v2212, %v1014
    %v2217 = vmul.f32 %v2212, %v1018
    %v2218 = vadd.f32 %v2214, %v1031
    %v2219 = vadd.f32 %v2215, %v1035
    %v2220 = vadd.f32 %v2216, %v1039
    %v2221 = vadd.f32 %v2217, %v1043
    %v2222 = vadd.f32 %v2218, %v2078
    %v2223 = vadd.f32 %v2219, %v2080
    %v2224 = vadd.f32 %v2220, %v2119
    %v2225 = vadd.f32 %v2221, %v2121
    %v2226 = vxor.u32 %v2222, 2147483648
    %v2227 = vxor.u32 %v2223, 2147483648
    %v2228 = vxor.u32 %v2224, 2147483648
    %v2229 = vmul.f32 %v2226, 1.442695
    %v2230 = vpow.pop %v2229
    %v2231 = vmul.f32 %v2227, 1.442695
    %v2232 = vpow.pop %v2231
    %v2233 = vmul.f32 %v2228, 1.442695
    %v2234 = vpow.pop %v2233
    %v2235 = vadd.f32 %v2230, 1.0
    %v2236 = vadd.f32 %v2232, 1.0
    %v2237 = vadd.f32 %v2234, 1.0
    %v2238 = vrcp.pop %v2235
    %v2239 = vmul.f32 1.0, %v2238
    %v2240 = vrcp.pop %v2236
    %v2241 = vmul.f32 1.0, %v2240
    %v2242 = vrcp.pop %v2237
    %v2243 = vmul.f32 1.0, %v2242
    %v2244 = vtanh.pop %v2225
    %v2245 = vmul.f32 %v2241, %v1928
    %v2246 = vmul.f32 %v2239, %v2244
    %v2247 = vadd.f32 %v2245, %v2246
    %v2248 = vtanh.pop %v2247
    %v2249 = vmul.f32 %v2243, %v2248
    %v2250 = vpack.c.bf16 %v2249, %v2249
    %2251 = vmatprep.subr.bf16.mxu0 %v1210
    %2252 = vmatpush1.bf16.msra.mxu0 %v1209
    %2253 = vmatprep.subr.bf16.mxu0 %v1214
    %2254 = vmatpush1.bf16.msra.mxu0 %v1213
    %2255 = vmatprep.subr.bf16.mxu0 %v1218
    %2256 = vmatpush1.bf16.msra.mxu0 %v1217
    %2257 = vmatprep.subr.bf16.mxu0 %v1222
    %2258 = vmatpush1.bf16.msra.mxu0 %v1221
    %2259 = vmatprep.subr.bf16.mxu0 %v1226
    %2260 = vmatpush1.bf16.msra.mxu0 %v1225
    %2261 = vmatprep.subr.bf16.mxu0 %v1230
    %2262 = vmatpush1.bf16.msra.mxu0 %v1229
    %2263 = vmatprep.subr.bf16.mxu0 %v1234
    %2264 = vmatpush1.bf16.msra.mxu0 %v1233
    %2265 = vmatprep.subr.bf16.mxu0 %v1238
    %2266 = vmatpush1.bf16.msra.mxu0 %v1237
    %2267 = vmatprep.subr.bf16.mxu0 0
    %2268 = vmatpush1.bf16.msra.mxu0 0
    %2269 = vmatprep.subr.bf16.mxu0 0
    %2270 = vmatpush1.bf16.msra.mxu0 0
    %2271 = vmatprep.subr.bf16.mxu0 0
    %2272 = vmatpush1.bf16.msra.mxu0 0
    %2273 = vmatprep.subr.bf16.mxu0 0
    %2274 = vmatpush1.bf16.msra.mxu0 0
    %2275 = vmatprep.subr.bf16.mxu0 0
    %2276 = vmatpush1.bf16.msra.mxu0 0
    %2277 = vmatprep.subr.bf16.mxu0 0
    %2278 = vmatpush1.bf16.msra.mxu0 0
    %2279 = vmatprep.subr.bf16.mxu0 0
    %2280 = vmatpush1.bf16.msra.mxu0 0
    %2281 = vmatprep.subr.bf16.mxu0 0
    %2282 = vmatpush1.bf16.msra.mxu0 0
    %2283 = vmatprep.mubr.bf16.mxu0 0
    %2284 = vmatmul.mubr.bf16.gmra.mrb[0].mxu0 %v2250
    %v2285 = vpop.f32.mrb[0].mxu0
    %v2286 = vadd.f32 %v2160, %v2285
    %v2287 = vpop.f32.mrb[0].mxu0
    %v2288 = vadd.f32 %v2162, %v2287
    %v2289 = vpop.f32.mrb[0].mxu0
    %v2290 = vpop.f32.mrb[0].mxu0
    %2291 = vdwg.mxu0
    %2292 = vmatprep.subr.bf16.mxu0 %v1212
    %2293 = vmatpush1.bf16.msra.mxu0 %v1211
    %2294 = vmatprep.subr.bf16.mxu0 %v1216
    %2295 = vmatpush1.bf16.msra.mxu0 %v1215
    %2296 = vmatprep.subr.bf16.mxu0 %v1220
    %2297 = vmatpush1.bf16.msra.mxu0 %v1219
    %2298 = vmatprep.subr.bf16.mxu0 %v1224
    %2299 = vmatpush1.bf16.msra.mxu0 %v1223
    %2300 = vmatprep.subr.bf16.mxu0 %v1228
    %2301 = vmatpush1.bf16.msra.mxu0 %v1227
    %2302 = vmatprep.subr.bf16.mxu0 %v1232
    %2303 = vmatpush1.bf16.msra.mxu0 %v1231
    %2304 = vmatprep.subr.bf16.mxu0 %v1236
    %2305 = vmatpush1.bf16.msra.mxu0 %v1235
    %2306 = vmatprep.subr.bf16.mxu0 %v1240
    %2307 = vmatpush1.bf16.msra.mxu0 %v1239
    %2308 = vmatprep.subr.bf16.mxu0 0
    %2309 = vmatpush1.bf16.msra.mxu0 0
    %2310 = vmatprep.subr.bf16.mxu0 0
    %2311 = vmatpush1.bf16.msra.mxu0 0
    %2312 = vmatprep.subr.bf16.mxu0 0
    %2313 = vmatpush1.bf16.msra.mxu0 0
    %2314 = vmatprep.subr.bf16.mxu0 0
    %2315 = vmatpush1.bf16.msra.mxu0 0
    %2316 = vmatprep.subr.bf16.mxu0 0
    %2317 = vmatpush1.bf16.msra.mxu0 0
    %2318 = vmatprep.subr.bf16.mxu0 0
    %2319 = vmatpush1.bf16.msra.mxu0 0
    %2320 = vmatprep.subr.bf16.mxu0 0
    %2321 = vmatpush1.bf16.msra.mxu0 0
    %2322 = vmatprep.subr.bf16.mxu0 0
    %2323 = vmatpush1.bf16.msra.mxu0 0
    %2324 = vmatprep.mubr.bf16.mxu0 0
    %2325 = vmatmul.mubr.bf16.gmra.mrb[0].mxu0 %v2250
    %v2326 = vpop.f32.mrb[0].mxu0
    %v2327 = vadd.f32 %v2201, %v2326
    %v2328 = vpop.f32.mrb[0].mxu0
    %v2329 = vadd.f32 %v2203, %v2328
    %v2330 = vpop.f32.mrb[0].mxu0
    %v2331 = vpop.f32.mrb[0].mxu0
    %2332 = vdwg.mxu0
    %v2333 = vadd.f32 %v2286, %v1359
    %v2334 = vadd.f32 %v2288, %v1363
    %v2335 = vadd.f32 %v2327, %v1367
    %v2336 = vadd.f32 %v2329, %v1371
    %v2337 = vxor.u32 %v2333, 2147483648
    %v2338 = vxor.u32 %v2334, 2147483648
    %v2339 = vxor.u32 %v2335, 2147483648
    %v2340 = vmul.f32 %v2337, 1.442695
    %v2341 = vpow.pop %v2340
    %v2342 = vmul.f32 %v2338, 1.442695
    %v2343 = vpow.pop %v2342
    %v2344 = vmul.f32 %v2339, 1.442695
    %v2345 = vpow.pop %v2344
    %v2346 = vadd.f32 %v2341, 1.0
    %v2347 = vadd.f32 %v2343, 1.0
    %v2348 = vadd.f32 %v2345, 1.0
    %v2349 = vrcp.pop %v2346
    %v2350 = vmul.f32 1.0, %v2349
    %v2351 = vrcp.pop %v2347
    %v2352 = vmul.f32 1.0, %v2351
    %v2353 = vrcp.pop %v2348
    %v2354 = vmul.f32 1.0, %v2353
    %v2355 = vtanh.pop %v2336
    %v2356 = vmul.f32 %v2352, %v2039
    %v2357 = vmul.f32 %v2350, %v2355
    %v2358 = vadd.f32 %v2356, %v2357
    %v2359 = vtanh.pop %v2358
    %v2360 = vmul.f32 %v2354, %v2359
    %v2361 = vpack.c.bf16 %v2360, %v2360
    %2362 = vmatprep.subr.bf16.mxu0 %v577
    %2363 = vmatpush1.bf16.msra.mxu0 %v576
    %2364 = vmatprep.subr.bf16.mxu0 %v585
    %2365 = vmatpush1.bf16.msra.mxu0 %v584
    %2366 = vmatprep.subr.bf16.mxu0 %v593
    %2367 = vmatpush1.bf16.msra.mxu0 %v592
    %2368 = vmatprep.subr.bf16.mxu0 %v601
    %2369 = vmatpush1.bf16.msra.mxu0 %v600
    %2370 = vmatprep.subr.bf16.mxu0 %v609
    %2371 = vmatpush1.bf16.msra.mxu0 %v608
    %2372 = vmatprep.subr.bf16.mxu0 %v617
    %2373 = vmatpush1.bf16.msra.mxu0 %v616
    %2374 = vmatprep.subr.bf16.mxu0 %v625
    %2375 = vmatpush1.bf16.msra.mxu0 %v624
    %2376 = vmatprep.subr.bf16.mxu0 %v633
    %2377 = vmatpush1.bf16.msra.mxu0 %v632
    %2378 = vmatprep.subr.bf16.mxu0 %v641
    %2379 = vmatpush1.bf16.msra.mxu0 %v640
    %2380 = vmatprep.subr.bf16.mxu0 %v649
    %2381 = vmatpush1.bf16.msra.mxu0 %v648
    %2382 = vmatprep.subr.bf16.mxu0 %v657
    %2383 = vmatpush1.bf16.msra.mxu0 %v656
    %2384 = vmatprep.subr.bf16.mxu0 %v665
    %2385 = vmatpush1.bf16.msra.mxu0 %v664
    %2386 = vmatprep.subr.bf16.mxu0 %v673
    %2387 = vmatpush1.bf16.msra.mxu0 %v672
    %2388 = vmatprep.subr.bf16.mxu0 %v681
    %2389 = vmatpush1.bf16.msra.mxu0 %v680
    %2390 = vmatprep.subr.bf16.mxu0 %v689
    %2391 = vmatpush1.bf16.msra.mxu0 %v688
    %2392 = vmatprep.subr.bf16.mxu0 %v697
    %2393 = vmatpush1.bf16.msra.mxu0 %v696
    %2394 = vmatprep.mubr.bf16.mxu0 %v2361
    %2395 = vmatmul.mubr.bf16.gmra.mrb[0].mxu0 %v2250
    %v2396 = vpop.f32.mrb[0].mxu0
    %v2397 = vadd.f32 0.0, %v2396
    %v2398 = vpop.f32.mrb[0].mxu0
    %v2399 = vadd.f32 0.0, %v2398
    %v2400 = vpop.f32.mrb[0].mxu0
    %v2401 = vpop.f32.mrb[0].mxu0
    %2402 = vdwg.mxu0
    %2403 = vmatprep.subr.bf16.mxu0 %v579
    %2404 = vmatpush1.bf16.msra.mxu0 %v578
    %2405 = vmatprep.subr.bf16.mxu0 %v587
    %2406 = vmatpush1.bf16.msra.mxu0 %v586
    %2407 = vmatprep.subr.bf16.mxu0 %v595
    %2408 = vmatpush1.bf16.msra.mxu0 %v594
    %2409 = vmatprep.subr.bf16.mxu0 %v603
    %2410 = vmatpush1.bf16.msra.mxu0 %v602
    %2411 = vmatprep.subr.bf16.mxu0 %v611
    %2412 = vmatpush1.bf16.msra.mxu0 %v610
    %2413 = vmatprep.subr.bf16.mxu0 %v619
    %2414 = vmatpush1.bf16.msra.mxu0 %v618
    %2415 = vmatprep.subr.bf16.mxu0 %v627
    %2416 = vmatpush1.bf16.msra.mxu0 %v626
    %2417 = vmatprep.subr.bf16.mxu0 %v635
    %2418 = vmatpush1.bf16.msra.mxu0 %v634
    %2419 = vmatprep.subr.bf16.mxu0 %v643
    %2420 = vmatpush1.bf16.msra.mxu0 %v642
    %2421 = vmatprep.subr.bf16.mxu0 %v651
    %2422 = vmatpush1.bf16.msra.mxu0 %v650
    %2423 = vmatprep.subr.bf16.mxu0 %v659
    %2424 = vmatpush1.bf16.msra.mxu0 %v658
    %2425 = vmatprep.subr.bf16.mxu0 %v667
    %2426 = vmatpush1.bf16.msra.mxu0 %v666
    %2427 = vmatprep.subr.bf16.mxu0 %v675
    %2428 = vmatpush1.bf16.msra.mxu0 %v674
    %2429 = vmatprep.subr.bf16.mxu0 %v683
    %2430 = vmatpush1.bf16.msra.mxu0 %v682
    %2431 = vmatprep.subr.bf16.mxu0 %v691
    %2432 = vmatpush1.bf16.msra.mxu0 %v690
    %2433 = vmatprep.subr.bf16.mxu0 %v699
    %2434 = vmatpush1.bf16.msra.mxu0 %v698
    %2435 = vmatprep.mubr.bf16.mxu0 %v2361
    %2436 = vmatmul.mubr.bf16.gmra.mrb[0].mxu0 %v2250
    %v2437 = vpop.f32.mrb[0].mxu0
    %v2438 = vadd.f32 0.0, %v2437
    %v2439 = vpop.f32.mrb[0].mxu0
    %v2440 = vadd.f32 0.0, %v2439
    %v2441 = vpop.f32.mrb[0].mxu0
    %v2442 = vpop.f32.mrb[0].mxu0
    %2443 = vdwg.mxu0
    %2444 = vmatprep.subr.bf16.mxu0 %v581
    %2445 = vmatpush1.bf16.msra.mxu0 %v580
    %2446 = vmatprep.subr.bf16.mxu0 %v589
    %2447 = vmatpush1.bf16.msra.mxu0 %v588
    %2448 = vmatprep.subr.bf16.mxu0 %v597
    %2449 = vmatpush1.bf16.msra.mxu0 %v596
    %2450 = vmatprep.subr.bf16.mxu0 %v605
    %2451 = vmatpush1.bf16.msra.mxu0 %v604
    %2452 = vmatprep.subr.bf16.mxu0 %v613
    %2453 = vmatpush1.bf16.msra.mxu0 %v612
    %2454 = vmatprep.subr.bf16.mxu0 %v621
    %2455 = vmatpush1.bf16.msra.mxu0 %v620
    %2456 = vmatprep.subr.bf16.mxu0 %v629
    %2457 = vmatpush1.bf16.msra.mxu0 %v628
    %2458 = vmatprep.subr.bf16.mxu0 %v637
    %2459 = vmatpush1.bf16.msra.mxu0 %v636
    %2460 = vmatprep.subr.bf16.mxu0 %v645
    %2461 = vmatpush1.bf16.msra.mxu0 %v644
    %2462 = vmatprep.subr.bf16.mxu0 %v653
    %2463 = vmatpush1.bf16.msra.mxu0 %v652
    %2464 = vmatprep.subr.bf16.mxu0 %v661
    %2465 = vmatpush1.bf16.msra.mxu0 %v660
    %2466 = vmatprep.subr.bf16.mxu0 %v669
    %2467 = vmatpush1.bf16.msra.mxu0 %v668
    %2468 = vmatprep.subr.bf16.mxu0 %v677
    %2469 = vmatpush1.bf16.msra.mxu0 %v676
    %2470 = vmatprep.subr.bf16.mxu0 %v685
    %2471 = vmatpush1.bf16.msra.mxu0 %v684
    %2472 = vmatprep.subr.bf16.mxu0 %v693
    %2473 = vmatpush1.bf16.msra.mxu0 %v692
    %2474 = vmatprep.subr.bf16.mxu0 %v701
    %2475 = vmatpush1.bf16.msra.mxu0 %v700
    %2476 = vmatprep.mubr.bf16.mxu0 %v2361
    %2477 = vmatmul.mubr.bf16.gmra.mrb[0].mxu0 %v2250
    %v2478 = vpop.f32.mrb[0].mxu0
    %v2479 = vadd.f32 0.0, %v2478
    %v2480 = vpop.f32.mrb[0].mxu0
    %v2481 = vadd.f32 0.0, %v2480
    %v2482 = vpop.f32.mrb[0].mxu0
    %v2483 = vpop.f32.mrb[0].mxu0
    %2484 = vdwg.mxu0
    %2485 = vmatprep.subr.bf16.mxu0 %v583
    %2486 = vmatpush1.bf16.msra.mxu0 %v582
    %2487 = vmatprep.subr.bf16.mxu0 %v591
    %2488 = vmatpush1.bf16.msra.mxu0 %v590
    %2489 = vmatprep.subr.bf16.mxu0 %v599
    %2490 = vmatpush1.bf16.msra.mxu0 %v598
    %2491 = vmatprep.subr.bf16.mxu0 %v607
    %2492 = vmatpush1.bf16.msra.mxu0 %v606
    %2493 = vmatprep.subr.bf16.mxu0 %v615
    %2494 = vmatpush1.bf16.msra.mxu0 %v614
    %2495 = vmatprep.subr.bf16.mxu0 %v623
    %2496 = vmatpush1.bf16.msra.mxu0 %v622
    %2497 = vmatprep.subr.bf16.mxu0 %v631
    %2498 = vmatpush1.bf16.msra.mxu0 %v630
    %2499 = vmatprep.subr.bf16.mxu0 %v639
    %2500 = vmatpush1.bf16.msra.mxu0 %v638
    %2501 = vmatprep.subr.bf16.mxu0 %v647
    %2502 = vmatpush1.bf16.msra.mxu0 %v646
    %2503 = vmatprep.subr.bf16.mxu0 %v655
    %2504 = vmatpush1.bf16.msra.mxu0 %v654
    %2505 = vmatprep.subr.bf16.mxu0 %v663
    %2506 = vmatpush1.bf16.msra.mxu0 %v662
    %2507 = vmatprep.subr.bf16.mxu0 %v671
    %2508 = vmatpush1.bf16.msra.mxu0 %v670
    %2509 = vmatprep.subr.bf16.mxu0 %v679
    %2510 = vmatpush1.bf16.msra.mxu0 %v678
    %2511 = vmatprep.subr.bf16.mxu0 %v687
    %2512 = vmatpush1.bf16.msra.mxu0 %v686
    %2513 = vmatprep.subr.bf16.mxu0 %v695
    %2514 = vmatpush1.bf16.msra.mxu0 %v694
    %2515 = vmatprep.subr.bf16.mxu0 %v703
    %2516 = vmatpush1.bf16.msra.mxu0 %v702
    %2517 = vmatprep.mubr.bf16.mxu0 %v2361
    %2518 = vmatmul.mubr.bf16.gmra.mrb[0].mxu0 %v2250
    %v2519 = vpop.f32.mrb[0].mxu0
    %v2520 = vadd.f32 0.0, %v2519
    %v2521 = vpop.f32.mrb[0].mxu0
    %v2522 = vadd.f32 0.0, %v2521
    %v2523 = vpop.f32.mrb[0].mxu0
    %v2524 = vpop.f32.mrb[0].mxu0
    %2525 = vdwg.mxu0
    %s2526 = scalar_lea.vmem %s0, 8
    %v2527 = vld [vmem:[%s2526] sm:$0x3]
    %2529 = vset.pattern.permute.xlu0 0
    %2530 = vperm.xlu0 %2529, %v2527
    %v2531 = vpop.permute.xlu0 %2530
    %v2533 = vmul.f32 %v2531, %v1006
    %v2534 = vmul.f32 %v2531, %v1010
    %v2535 = vmul.f32 %v2531, %v1014
    %v2536 = vmul.f32 %v2531, %v1018
    %v2537 = vadd.f32 %v2533, %v1031
    %v2538 = vadd.f32 %v2534, %v1035
    %v2539 = vadd.f32 %v2535, %v1039
    %v2540 = vadd.f32 %v2536, %v1043
    %v2541 = vadd.f32 %v2537, %v2397
    %v2542 = vadd.f32 %v2538, %v2399
    %v2543 = vadd.f32 %v2539, %v2438
    %v2544 = vadd.f32 %v2540, %v2440
    %v2545 = vxor.u32 %v2541, 2147483648
    %v2546 = vxor.u32 %v2542, 2147483648
    %v2547 = vxor.u32 %v2543, 2147483648
    %v2548 = vmul.f32 %v2545, 1.442695
    %v2549 = vpow.pop %v2548
    %v2550 = vmul.f32 %v2546, 1.442695
    %v2551 = vpow.pop %v2550
    %v2552 = vmul.f32 %v2547, 1.442695
    %v2553 = vpow.pop %v2552
    %v2554 = vadd.f32 %v2549, 1.0
    %v2555 = vadd.f32 %v2551, 1.0
    %v2556 = vadd.f32 %v2553, 1.0
    %v2557 = vrcp.pop %v2554
    %v2558 = vmul.f32 1.0, %v2557
    %v2559 = vrcp.pop %v2555
    %v2560 = vmul.f32 1.0, %v2559
    %v2561 = vrcp.pop %v2556
    %v2562 = vmul.f32 1.0, %v2561
    %v2563 = vtanh.pop %v2544
    %v2564 = vmul.f32 %v2560, %v2247
    %v2565 = vmul.f32 %v2558, %v2563
    %v2566 = vadd.f32 %v2564, %v2565
    %v2567 = vtanh.pop %v2566
    %v2568 = vmul.f32 %v2562, %v2567
    %v2569 = vpack.c.bf16 %v2568, %v2568
    %2570 = vmatprep.subr.bf16.mxu0 %v1210
    %2571 = vmatpush1.bf16.msra.mxu0 %v1209
    %2572 = vmatprep.subr.bf16.mxu0 %v1214
    %2573 = vmatpush1.bf16.msra.mxu0 %v1213
    %2574 = vmatprep.subr.bf16.mxu0 %v1218
    %2575 = vmatpush1.bf16.msra.mxu0 %v1217
    %2576 = vmatprep.subr.bf16.mxu0 %v1222
    %2577 = vmatpush1.bf16.msra.mxu0 %v1221
    %2578 = vmatprep.subr.bf16.mxu0 %v1226
    %2579 = vmatpush1.bf16.msra.mxu0 %v1225
    %2580 = vmatprep.subr.bf16.mxu0 %v1230
    %2581 = vmatpush1.bf16.msra.mxu0 %v1229
    %2582 = vmatprep.subr.bf16.mxu0 %v1234
    %2583 = vmatpush1.bf16.msra.mxu0 %v1233
    %2584 = vmatprep.subr.bf16.mxu0 %v1238
    %2585 = vmatpush1.bf16.msra.mxu0 %v1237
    %2586 = vmatprep.subr.bf16.mxu0 0
    %2587 = vmatpush1.bf16.msra.mxu0 0
    %2588 = vmatprep.subr.bf16.mxu0 0
    %2589 = vmatpush1.bf16.msra.mxu0 0
    %2590 = vmatprep.subr.bf16.mxu0 0
    %2591 = vmatpush1.bf16.msra.mxu0 0
    %2592 = vmatprep.subr.bf16.mxu0 0
    %2593 = vmatpush1.bf16.msra.mxu0 0
    %2594 = vmatprep.subr.bf16.mxu0 0
    %2595 = vmatpush1.bf16.msra.mxu0 0
    %2596 = vmatprep.subr.bf16.mxu0 0
    %2597 = vmatpush1.bf16.msra.mxu0 0
    %2598 = vmatprep.subr.bf16.mxu0 0
    %2599 = vmatpush1.bf16.msra.mxu0 0
    %2600 = vmatprep.subr.bf16.mxu0 0
    %2601 = vmatpush1.bf16.msra.mxu0 0
    %2602 = vmatprep.mubr.bf16.mxu0 0
    %2603 = vmatmul.mubr.bf16.gmra.mrb[0].mxu0 %v2569
    %v2604 = vpop.f32.mrb[0].mxu0
    %v2605 = vadd.f32 %v2479, %v2604
    %v2606 = vpop.f32.mrb[0].mxu0
    %v2607 = vadd.f32 %v2481, %v2606
    %v2608 = vpop.f32.mrb[0].mxu0
    %v2609 = vpop.f32.mrb[0].mxu0
    %2610 = vdwg.mxu0
    %2611 = vmatprep.subr.bf16.mxu0 %v1212
    %2612 = vmatpush1.bf16.msra.mxu0 %v1211
    %2613 = vmatprep.subr.bf16.mxu0 %v1216
    %2614 = vmatpush1.bf16.msra.mxu0 %v1215
    %2615 = vmatprep.subr.bf16.mxu0 %v1220
    %2616 = vmatpush1.bf16.msra.mxu0 %v1219
    %2617 = vmatprep.subr.bf16.mxu0 %v1224
    %2618 = vmatpush1.bf16.msra.mxu0 %v1223
    %2619 = vmatprep.subr.bf16.mxu0 %v1228
    %2620 = vmatpush1.bf16.msra.mxu0 %v1227
    %2621 = vmatprep.subr.bf16.mxu0 %v1232
    %2622 = vmatpush1.bf16.msra.mxu0 %v1231
    %2623 = vmatprep.subr.bf16.mxu0 %v1236
    %2624 = vmatpush1.bf16.msra.mxu0 %v1235
    %2625 = vmatprep.subr.bf16.mxu0 %v1240
    %2626 = vmatpush1.bf16.msra.mxu0 %v1239
    %2627 = vmatprep.subr.bf16.mxu0 0
    %2628 = vmatpush1.bf16.msra.mxu0 0
    %2629 = vmatprep.subr.bf16.mxu0 0
    %2630 = vmatpush1.bf16.msra.mxu0 0
    %2631 = vmatprep.subr.bf16.mxu0 0
    %2632 = vmatpush1.bf16.msra.mxu0 0
    %2633 = vmatprep.subr.bf16.mxu0 0
    %2634 = vmatpush1.bf16.msra.mxu0 0
    %2635 = vmatprep.subr.bf16.mxu0 0
    %2636 = vmatpush1.bf16.msra.mxu0 0
    %2637 = vmatprep.subr.bf16.mxu0 0
    %2638 = vmatpush1.bf16.msra.mxu0 0
    %2639 = vmatprep.subr.bf16.mxu0 0
    %2640 = vmatpush1.bf16.msra.mxu0 0
    %2641 = vmatprep.subr.bf16.mxu0 0
    %2642 = vmatpush1.bf16.msra.mxu0 0
    %2643 = vmatprep.mubr.bf16.mxu0 0
    %2644 = vmatmul.mubr.bf16.gmra.mrb[0].mxu0 %v2569
    %v2645 = vpop.f32.mrb[0].mxu0
    %v2646 = vadd.f32 %v2520, %v2645
    %v2647 = vpop.f32.mrb[0].mxu0
    %v2648 = vadd.f32 %v2522, %v2647
    %v2649 = vpop.f32.mrb[0].mxu0
    %v2650 = vpop.f32.mrb[0].mxu0
    %2651 = vdwg.mxu0
    %v2652 = vadd.f32 %v2605, %v1359
    %v2653 = vadd.f32 %v2607, %v1363
    %v2654 = vadd.f32 %v2646, %v1367
    %v2655 = vadd.f32 %v2648, %v1371
    %v2656 = vxor.u32 %v2652, 2147483648
    %v2657 = vxor.u32 %v2653, 2147483648
    %v2658 = vxor.u32 %v2654, 2147483648
    %v2659 = vmul.f32 %v2656, 1.442695
    %v2660 = vpow.pop %v2659
    %v2661 = vmul.f32 %v2657, 1.442695
    %v2662 = vpow.pop %v2661
    %v2663 = vmul.f32 %v2658, 1.442695
    %v2664 = vpow.pop %v2663
    %v2665 = vadd.f32 %v2660, 1.0
    %v2666 = vadd.f32 %v2662, 1.0
    %v2667 = vadd.f32 %v2664, 1.0
    %v2668 = vrcp.pop %v2665
    %v2669 = vmul.f32 1.0, %v2668
    %v2670 = vrcp.pop %v2666
    %v2671 = vmul.f32 1.0, %v2670
    %v2672 = vrcp.pop %v2667
    %v2673 = vmul.f32 1.0, %v2672
    %v2674 = vtanh.pop %v2655
    %v2675 = vmul.f32 %v2671, %v2358
    %v2676 = vmul.f32 %v2669, %v2674
    %v2677 = vadd.f32 %v2675, %v2676
    %v2678 = vtanh.pop %v2677
    %v2679 = vmul.f32 %v2673, %v2678
    %v2680 = vpack.c.bf16 %v2679, %v2679
    %2681 = vmatprep.subr.bf16.mxu0 %v577
    %2682 = vmatpush1.bf16.msra.mxu0 %v576
    %2683 = vmatprep.subr.bf16.mxu0 %v585
    %2684 = vmatpush1.bf16.msra.mxu0 %v584
    %2685 = vmatprep.subr.bf16.mxu0 %v593
    %2686 = vmatpush1.bf16.msra.mxu0 %v592
    %2687 = vmatprep.subr.bf16.mxu0 %v601
    %2688 = vmatpush1.bf16.msra.mxu0 %v600
    %2689 = vmatprep.subr.bf16.mxu0 %v609
    %2690 = vmatpush1.bf16.msra.mxu0 %v608
    %2691 = vmatprep.subr.bf16.mxu0 %v617
    %2692 = vmatpush1.bf16.msra.mxu0 %v616
    %2693 = vmatprep.subr.bf16.mxu0 %v625
    %2694 = vmatpush1.bf16.msra.mxu0 %v624
    %2695 = vmatprep.subr.bf16.mxu0 %v633
    %2696 = vmatpush1.bf16.msra.mxu0 %v632
    %2697 = vmatprep.subr.bf16.mxu0 %v641
    %2698 = vmatpush1.bf16.msra.mxu0 %v640
    %2699 = vmatprep.subr.bf16.mxu0 %v649
    %2700 = vmatpush1.bf16.msra.mxu0 %v648
    %2701 = vmatprep.subr.bf16.mxu0 %v657
    %2702 = vmatpush1.bf16.msra.mxu0 %v656
    %2703 = vmatprep.subr.bf16.mxu0 %v665
    %2704 = vmatpush1.bf16.msra.mxu0 %v664
    %2705 = vmatprep.subr.bf16.mxu0 %v673
    %2706 = vmatpush1.bf16.msra.mxu0 %v672
    %2707 = vmatprep.subr.bf16.mxu0 %v681
    %2708 = vmatpush1.bf16.msra.mxu0 %v680
    %2709 = vmatprep.subr.bf16.mxu0 %v689
    %2710 = vmatpush1.bf16.msra.mxu0 %v688
    %2711 = vmatprep.subr.bf16.mxu0 %v697
    %2712 = vmatpush1.bf16.msra.mxu0 %v696
    %2713 = vmatprep.mubr.bf16.mxu0 %v2680
    %2714 = vmatmul.mubr.bf16.gmra.mrb[0].mxu0 %v2569
    %v2715 = vpop.f32.mrb[0].mxu0
    %v2716 = vadd.f32 0.0, %v2715
    %v2717 = vpop.f32.mrb[0].mxu0
    %v2718 = vadd.f32 0.0, %v2717
    %v2719 = vpop.f32.mrb[0].mxu0
    %v2720 = vpop.f32.mrb[0].mxu0
    %2721 = vdwg.mxu0
    %2722 = vmatprep.subr.bf16.mxu0 %v579
    %2723 = vmatpush1.bf16.msra.mxu0 %v578
    %2724 = vmatprep.subr.bf16.mxu0 %v587
    %2725 = vmatpush1.bf16.msra.mxu0 %v586
    %2726 = vmatprep.subr.bf16.mxu0 %v595
    %2727 = vmatpush1.bf16.msra.mxu0 %v594
    %2728 = vmatprep.subr.bf16.mxu0 %v603
    %2729 = vmatpush1.bf16.msra.mxu0 %v602
    %2730 = vmatprep.subr.bf16.mxu0 %v611
    %2731 = vmatpush1.bf16.msra.mxu0 %v610
    %2732 = vmatprep.subr.bf16.mxu0 %v619
    %2733 = vmatpush1.bf16.msra.mxu0 %v618
    %2734 = vmatprep.subr.bf16.mxu0 %v627
    %2735 = vmatpush1.bf16.msra.mxu0 %v626
    %2736 = vmatprep.subr.bf16.mxu0 %v635
    %2737 = vmatpush1.bf16.msra.mxu0 %v634
    %2738 = vmatprep.subr.bf16.mxu0 %v643
    %2739 = vmatpush1.bf16.msra.mxu0 %v642
    %2740 = vmatprep.subr.bf16.mxu0 %v651
    %2741 = vmatpush1.bf16.msra.mxu0 %v650
    %2742 = vmatprep.subr.bf16.mxu0 %v659
    %2743 = vmatpush1.bf16.msra.mxu0 %v658
    %2744 = vmatprep.subr.bf16.mxu0 %v667
    %2745 = vmatpush1.bf16.msra.mxu0 %v666
    %2746 = vmatprep.subr.bf16.mxu0 %v675
    %2747 = vmatpush1.bf16.msra.mxu0 %v674
    %2748 = vmatprep.subr.bf16.mxu0 %v683
    %2749 = vmatpush1.bf16.msra.mxu0 %v682
    %2750 = vmatprep.subr.bf16.mxu0 %v691
    %2751 = vmatpush1.bf16.msra.mxu0 %v690
    %2752 = vmatprep.subr.bf16.mxu0 %v699
    %2753 = vmatpush1.bf16.msra.mxu0 %v698
    %2754 = vmatprep.mubr.bf16.mxu0 %v2680
    %2755 = vmatmul.mubr.bf16.gmra.mrb[0].mxu0 %v2569
    %v2756 = vpop.f32.mrb[0].mxu0
    %v2757 = vadd.f32 0.0, %v2756
    %v2758 = vpop.f32.mrb[0].mxu0
    %v2759 = vadd.f32 0.0, %v2758
    %v2760 = vpop.f32.mrb[0].mxu0
    %v2761 = vpop.f32.mrb[0].mxu0
    %2762 = vdwg.mxu0
    %2763 = vmatprep.subr.bf16.mxu0 %v581
    %2764 = vmatpush1.bf16.msra.mxu0 %v580
    %2765 = vmatprep.subr.bf16.mxu0 %v589
    %2766 = vmatpush1.bf16.msra.mxu0 %v588
    %2767 = vmatprep.subr.bf16.mxu0 %v597
    %2768 = vmatpush1.bf16.msra.mxu0 %v596
    %2769 = vmatprep.subr.bf16.mxu0 %v605
    %2770 = vmatpush1.bf16.msra.mxu0 %v604
    %2771 = vmatprep.subr.bf16.mxu0 %v613
    %2772 = vmatpush1.bf16.msra.mxu0 %v612
    %2773 = vmatprep.subr.bf16.mxu0 %v621
    %2774 = vmatpush1.bf16.msra.mxu0 %v620
    %2775 = vmatprep.subr.bf16.mxu0 %v629
    %2776 = vmatpush1.bf16.msra.mxu0 %v628
    %2777 = vmatprep.subr.bf16.mxu0 %v637
    %2778 = vmatpush1.bf16.msra.mxu0 %v636
    %2779 = vmatprep.subr.bf16.mxu0 %v645
    %2780 = vmatpush1.bf16.msra.mxu0 %v644
    %2781 = vmatprep.subr.bf16.mxu0 %v653
    %2782 = vmatpush1.bf16.msra.mxu0 %v652
    %2783 = vmatprep.subr.bf16.mxu0 %v661
    %2784 = vmatpush1.bf16.msra.mxu0 %v660
    %2785 = vmatprep.subr.bf16.mxu0 %v669
    %2786 = vmatpush1.bf16.msra.mxu0 %v668
    %2787 = vmatprep.subr.bf16.mxu0 %v677
    %2788 = vmatpush1.bf16.msra.mxu0 %v676
    %2789 = vmatprep.subr.bf16.mxu0 %v685
    %2790 = vmatpush1.bf16.msra.mxu0 %v684
    %2791 = vmatprep.subr.bf16.mxu0 %v693
    %2792 = vmatpush1.bf16.msra.mxu0 %v692
    %2793 = vmatprep.subr.bf16.mxu0 %v701
    %2794 = vmatpush1.bf16.msra.mxu0 %v700
    %2795 = vmatprep.mubr.bf16.mxu0 %v2680
    %2796 = vmatmul.mubr.bf16.gmra.mrb[0].mxu0 %v2569
    %v2797 = vpop.f32.mrb[0].mxu0
    %v2798 = vadd.f32 0.0, %v2797
    %v2799 = vpop.f32.mrb[0].mxu0
    %v2800 = vadd.f32 0.0, %v2799
    %v2801 = vpop.f32.mrb[0].mxu0
    %v2802 = vpop.f32.mrb[0].mxu0
    %2803 = vdwg.mxu0
    %2804 = vmatprep.subr.bf16.mxu0 %v583
    %2805 = vmatpush1.bf16.msra.mxu0 %v582
    %2806 = vmatprep.subr.bf16.mxu0 %v591
    %2807 = vmatpush1.bf16.msra.mxu0 %v590
    %2808 = vmatprep.subr.bf16.mxu0 %v599
    %2809 = vmatpush1.bf16.msra.mxu0 %v598
    %2810 = vmatprep.subr.bf16.mxu0 %v607
    %2811 = vmatpush1.bf16.msra.mxu0 %v606
    %2812 = vmatprep.subr.bf16.mxu0 %v615
    %2813 = vmatpush1.bf16.msra.mxu0 %v614
    %2814 = vmatprep.subr.bf16.mxu0 %v623
    %2815 = vmatpush1.bf16.msra.mxu0 %v622
    %2816 = vmatprep.subr.bf16.mxu0 %v631
    %2817 = vmatpush1.bf16.msra.mxu0 %v630
    %2818 = vmatprep.subr.bf16.mxu0 %v639
    %2819 = vmatpush1.bf16.msra.mxu0 %v638
    %2820 = vmatprep.subr.bf16.mxu0 %v647
    %2821 = vmatpush1.bf16.msra.mxu0 %v646
    %2822 = vmatprep.subr.bf16.mxu0 %v655
    %2823 = vmatpush1.bf16.msra.mxu0 %v654
    %2824 = vmatprep.subr.bf16.mxu0 %v663
    %2825 = vmatpush1.bf16.msra.mxu0 %v662
    %2826 = vmatprep.subr.bf16.mxu0 %v671
    %2827 = vmatpush1.bf16.msra.mxu0 %v670
    %2828 = vmatprep.subr.bf16.mxu0 %v679
    %2829 = vmatpush1.bf16.msra.mxu0 %v678
    %2830 = vmatprep.subr.bf16.mxu0 %v687
    %2831 = vmatpush1.bf16.msra.mxu0 %v686
    %2832 = vmatprep.subr.bf16.mxu0 %v695
    %2833 = vmatpush1.bf16.msra.mxu0 %v694
    %2834 = vmatprep.subr.bf16.mxu0 %v703
    %2835 = vmatpush1.bf16.msra.mxu0 %v702
    %2836 = vmatprep.mubr.bf16.mxu0 %v2680
    %2837 = vmatmul.mubr.bf16.gmra.mrb[0].mxu0 %v2569
    %v2838 = vpop.f32.mrb[0].mxu0
    %v2839 = vadd.f32 0.0, %v2838
    %v2840 = vpop.f32.mrb[0].mxu0
    %v2841 = vadd.f32 0.0, %v2840
    %v2842 = vpop.f32.mrb[0].mxu0
    %v2843 = vpop.f32.mrb[0].mxu0
    %2844 = vdwg.mxu0
    %s2845 = scalar_lea.vmem %s0, 10
    %v2846 = vld [vmem:[%s2845] sm:$0x3]
    %2848 = vset.pattern.permute.xlu0 0
    %2849 = vperm.xlu0 %2848, %v2846
    %v2850 = vpop.permute.xlu0 %2849
    %v2852 = vmul.f32 %v2850, %v1006
    %v2853 = vmul.f32 %v2850, %v1010
    %v2854 = vmul.f32 %v2850, %v1014
    %v2855 = vmul.f32 %v2850, %v1018
    %v2856 = vadd.f32 %v2852, %v1031
    %v2857 = vadd.f32 %v2853, %v1035
    %v2858 = vadd.f32 %v2854, %v1039
    %v2859 = vadd.f32 %v2855, %v1043
    %v2860 = vadd.f32 %v2856, %v2716
    %v2861 = vadd.f32 %v2857, %v2718
    %v2862 = vadd.f32 %v2858, %v2757
    %v2863 = vadd.f32 %v2859, %v2759
    %v2864 = vxor.u32 %v2860, 2147483648
    %v2865 = vxor.u32 %v2861, 2147483648
    %v2866 = vxor.u32 %v2862, 2147483648
    %v2867 = vmul.f32 %v2864, 1.442695
    %v2868 = vpow.pop %v2867
    %v2869 = vmul.f32 %v2865, 1.442695
    %v2870 = vpow.pop %v2869
    %v2871 = vmul.f32 %v2866, 1.442695
    %v2872 = vpow.pop %v2871
    %v2873 = vadd.f32 %v2868, 1.0
    %v2874 = vadd.f32 %v2870, 1.0
    %v2875 = vadd.f32 %v2872, 1.0
    %v2876 = vrcp.pop %v2873
    %v2877 = vmul.f32 1.0, %v2876
    %v2878 = vrcp.pop %v2874
    %v2879 = vmul.f32 1.0, %v2878
    %v2880 = vrcp.pop %v2875
    %v2881 = vmul.f32 1.0, %v2880
    %v2882 = vtanh.pop %v2863
    %v2883 = vmul.f32 %v2879, %v2566
    %v2884 = vmul.f32 %v2877, %v2882
    %v2885 = vadd.f32 %v2883, %v2884
    %v2886 = vtanh.pop %v2885
    %v2887 = vmul.f32 %v2881, %v2886
    %v2888 = vpack.c.bf16 %v2887, %v2887
    %2889 = vmatprep.subr.bf16.mxu0 %v1210
    %2890 = vmatpush1.bf16.msra.mxu0 %v1209
    %2891 = vmatprep.subr.bf16.mxu0 %v1214
    %2892 = vmatpush1.bf16.msra.mxu0 %v1213
    %2893 = vmatprep.subr.bf16.mxu0 %v1218
    %2894 = vmatpush1.bf16.msra.mxu0 %v1217
    %2895 = vmatprep.subr.bf16.mxu0 %v1222
    %2896 = vmatpush1.bf16.msra.mxu0 %v1221
    %2897 = vmatprep.subr.bf16.mxu0 %v1226
    %2898 = vmatpush1.bf16.msra.mxu0 %v1225
    %2899 = vmatprep.subr.bf16.mxu0 %v1230
    %2900 = vmatpush1.bf16.msra.mxu0 %v1229
    %2901 = vmatprep.subr.bf16.mxu0 %v1234
    %2902 = vmatpush1.bf16.msra.mxu0 %v1233
    %2903 = vmatprep.subr.bf16.mxu0 %v1238
    %2904 = vmatpush1.bf16.msra.mxu0 %v1237
    %2905 = vmatprep.subr.bf16.mxu0 0
    %2906 = vmatpush1.bf16.msra.mxu0 0
    %2907 = vmatprep.subr.bf16.mxu0 0
    %2908 = vmatpush1.bf16.msra.mxu0 0
    %2909 = vmatprep.subr.bf16.mxu0 0
    %2910 = vmatpush1.bf16.msra.mxu0 0
    %2911 = vmatprep.subr.bf16.mxu0 0
    %2912 = vmatpush1.bf16.msra.mxu0 0
    %2913 = vmatprep.subr.bf16.mxu0 0
    %2914 = vmatpush1.bf16.msra.mxu0 0
    %2915 = vmatprep.subr.bf16.mxu0 0
    %2916 = vmatpush1.bf16.msra.mxu0 0
    %2917 = vmatprep.subr.bf16.mxu0 0
    %2918 = vmatpush1.bf16.msra.mxu0 0
    %2919 = vmatprep.subr.bf16.mxu0 0
    %2920 = vmatpush1.bf16.msra.mxu0 0
    %2921 = vmatprep.mubr.bf16.mxu0 0
    %2922 = vmatmul.mubr.bf16.gmra.mrb[0].mxu0 %v2888
    %v2923 = vpop.f32.mrb[0].mxu0
    %v2924 = vadd.f32 %v2798, %v2923
    %v2925 = vpop.f32.mrb[0].mxu0
    %v2926 = vadd.f32 %v2800, %v2925
    %v2927 = vpop.f32.mrb[0].mxu0
    %v2928 = vpop.f32.mrb[0].mxu0
    %2929 = vdwg.mxu0
    %2930 = vmatprep.subr.bf16.mxu0 %v1212
    %2931 = vmatpush1.bf16.msra.mxu0 %v1211
    %2932 = vmatprep.subr.bf16.mxu0 %v1216
    %2933 = vmatpush1.bf16.msra.mxu0 %v1215
    %2934 = vmatprep.subr.bf16.mxu0 %v1220
    %2935 = vmatpush1.bf16.msra.mxu0 %v1219
    %2936 = vmatprep.subr.bf16.mxu0 %v1224
    %2937 = vmatpush1.bf16.msra.mxu0 %v1223
    %2938 = vmatprep.subr.bf16.mxu0 %v1228
    %2939 = vmatpush1.bf16.msra.mxu0 %v1227
    %2940 = vmatprep.subr.bf16.mxu0 %v1232
    %2941 = vmatpush1.bf16.msra.mxu0 %v1231
    %2942 = vmatprep.subr.bf16.mxu0 %v1236
    %2943 = vmatpush1.bf16.msra.mxu0 %v1235
    %2944 = vmatprep.subr.bf16.mxu0 %v1240
    %2945 = vmatpush1.bf16.msra.mxu0 %v1239
    %2946 = vmatprep.subr.bf16.mxu0 0
    %2947 = vmatpush1.bf16.msra.mxu0 0
    %2948 = vmatprep.subr.bf16.mxu0 0
    %2949 = vmatpush1.bf16.msra.mxu0 0
    %2950 = vmatprep.subr.bf16.mxu0 0
    %2951 = vmatpush1.bf16.msra.mxu0 0
    %2952 = vmatprep.subr.bf16.mxu0 0
    %2953 = vmatpush1.bf16.msra.mxu0 0
    %2954 = vmatprep.subr.bf16.mxu0 0
    %2955 = vmatpush1.bf16.msra.mxu0 0
    %2956 = vmatprep.subr.bf16.mxu0 0
    %2957 = vmatpush1.bf16.msra.mxu0 0
    %2958 = vmatprep.subr.bf16.mxu0 0
    %2959 = vmatpush1.bf16.msra.mxu0 0
    %2960 = vmatprep.subr.bf16.mxu0 0
    %2961 = vmatpush1.bf16.msra.mxu0 0
    %2962 = vmatprep.mubr.bf16.mxu0 0
    %2963 = vmatmul.mubr.bf16.gmra.mrb[0].mxu0 %v2888
    %v2964 = vpop.f32.mrb[0].mxu0
    %v2965 = vadd.f32 %v2839, %v2964
    %v2966 = vpop.f32.mrb[0].mxu0
    %v2967 = vadd.f32 %v2841, %v2966
    %v2968 = vpop.f32.mrb[0].mxu0
    %v2969 = vpop.f32.mrb[0].mxu0
    %2970 = vdwg.mxu0
    %v2971 = vadd.f32 %v2924, %v1359
    %v2972 = vadd.f32 %v2926, %v1363
    %v2973 = vadd.f32 %v2965, %v1367
    %v2974 = vadd.f32 %v2967, %v1371
    %v2975 = vxor.u32 %v2971, 2147483648
    %v2976 = vxor.u32 %v2972, 2147483648
    %v2977 = vxor.u32 %v2973, 2147483648
    %v2978 = vmul.f32 %v2975, 1.442695
    %v2979 = vpow.pop %v2978
    %v2980 = vmul.f32 %v2976, 1.442695
    %v2981 = vpow.pop %v2980
    %v2982 = vmul.f32 %v2977, 1.442695
    %v2983 = vpow.pop %v2982
    %v2984 = vadd.f32 %v2979, 1.0
    %v2985 = vadd.f32 %v2981, 1.0
    %v2986 = vadd.f32 %v2983, 1.0
    %v2987 = vrcp.pop %v2984
    %v2988 = vmul.f32 1.0, %v2987
    %v2989 = vrcp.pop %v2985
    %v2990 = vmul.f32 1.0, %v2989
    %v2991 = vrcp.pop %v2986
    %v2992 = vmul.f32 1.0, %v2991
    %v2993 = vtanh.pop %v2974
    %v2994 = vmul.f32 %v2990, %v2677
    %v2995 = vmul.f32 %v2988, %v2993
    %v2996 = vadd.f32 %v2994, %v2995
    %v2997 = vtanh.pop %v2996
    %v2998 = vmul.f32 %v2992, %v2997
    %v2999 = vpack.c.bf16 %v2998, %v2998
    %3000 = vmatprep.subr.bf16.mxu0 %v577
    %3001 = vmatpush1.bf16.msra.mxu0 %v576
    %3002 = vmatprep.subr.bf16.mxu0 %v585
    %3003 = vmatpush1.bf16.msra.mxu0 %v584
    %3004 = vmatprep.subr.bf16.mxu0 %v593
    %3005 = vmatpush1.bf16.msra.mxu0 %v592
    %3006 = vmatprep.subr.bf16.mxu0 %v601
    %3007 = vmatpush1.bf16.msra.mxu0 %v600
    %3008 = vmatprep.subr.bf16.mxu0 %v609
    %3009 = vmatpush1.bf16.msra.mxu0 %v608
    %3010 = vmatprep.subr.bf16.mxu0 %v617
    %3011 = vmatpush1.bf16.msra.mxu0 %v616
    %3012 = vmatprep.subr.bf16.mxu0 %v625
    %3013 = vmatpush1.bf16.msra.mxu0 %v624
    %3014 = vmatprep.subr.bf16.mxu0 %v633
    %3015 = vmatpush1.bf16.msra.mxu0 %v632
    %3016 = vmatprep.subr.bf16.mxu0 %v641
    %3017 = vmatpush1.bf16.msra.mxu0 %v640
    %3018 = vmatprep.subr.bf16.mxu0 %v649
    %3019 = vmatpush1.bf16.msra.mxu0 %v648
    %3020 = vmatprep.subr.bf16.mxu0 %v657
    %3021 = vmatpush1.bf16.msra.mxu0 %v656
    %3022 = vmatprep.subr.bf16.mxu0 %v665
    %3023 = vmatpush1.bf16.msra.mxu0 %v664
    %3024 = vmatprep.subr.bf16.mxu0 %v673
    %3025 = vmatpush1.bf16.msra.mxu0 %v672
    %3026 = vmatprep.subr.bf16.mxu0 %v681
    %3027 = vmatpush1.bf16.msra.mxu0 %v680
    %3028 = vmatprep.subr.bf16.mxu0 %v689
    %3029 = vmatpush1.bf16.msra.mxu0 %v688
    %3030 = vmatprep.subr.bf16.mxu0 %v697
    %3031 = vmatpush1.bf16.msra.mxu0 %v696
    %3032 = vmatprep.mubr.bf16.mxu0 %v2999
    %3033 = vmatmul.mubr.bf16.gmra.mrb[0].mxu0 %v2888
    %v3034 = vpop.f32.mrb[0].mxu0
    %v3035 = vadd.f32 0.0, %v3034
    %v3036 = vpop.f32.mrb[0].mxu0
    %v3037 = vadd.f32 0.0, %v3036
    %v3038 = vpop.f32.mrb[0].mxu0
    %v3039 = vpop.f32.mrb[0].mxu0
    %3040 = vdwg.mxu0
    %3041 = vmatprep.subr.bf16.mxu0 %v579
    %3042 = vmatpush1.bf16.msra.mxu0 %v578
    %3043 = vmatprep.subr.bf16.mxu0 %v587
    %3044 = vmatpush1.bf16.msra.mxu0 %v586
    %3045 = vmatprep.subr.bf16.mxu0 %v595
    %3046 = vmatpush1.bf16.msra.mxu0 %v594
    %3047 = vmatprep.subr.bf16.mxu0 %v603
    %3048 = vmatpush1.bf16.msra.mxu0 %v602
    %3049 = vmatprep.subr.bf16.mxu0 %v611
    %3050 = vmatpush1.bf16.msra.mxu0 %v610
    %3051 = vmatprep.subr.bf16.mxu0 %v619
    %3052 = vmatpush1.bf16.msra.mxu0 %v618
    %3053 = vmatprep.subr.bf16.mxu0 %v627
    %3054 = vmatpush1.bf16.msra.mxu0 %v626
    %3055 = vmatprep.subr.bf16.mxu0 %v635
    %3056 = vmatpush1.bf16.msra.mxu0 %v634
    %3057 = vmatprep.subr.bf16.mxu0 %v643
    %3058 = vmatpush1.bf16.msra.mxu0 %v642
    %3059 = vmatprep.subr.bf16.mxu0 %v651
    %3060 = vmatpush1.bf16.msra.mxu0 %v650
    %3061 = vmatprep.subr.bf16.mxu0 %v659
    %3062 = vmatpush1.bf16.msra.mxu0 %v658
    %3063 = vmatprep.subr.bf16.mxu0 %v667
    %3064 = vmatpush1.bf16.msra.mxu0 %v666
    %3065 = vmatprep.subr.bf16.mxu0 %v675
    %3066 = vmatpush1.bf16.msra.mxu0 %v674
    %3067 = vmatprep.subr.bf16.mxu0 %v683
    %3068 = vmatpush1.bf16.msra.mxu0 %v682
    %3069 = vmatprep.subr.bf16.mxu0 %v691
    %3070 = vmatpush1.bf16.msra.mxu0 %v690
    %3071 = vmatprep.subr.bf16.mxu0 %v699
    %3072 = vmatpush1.bf16.msra.mxu0 %v698
    %3073 = vmatprep.mubr.bf16.mxu0 %v2999
    %3074 = vmatmul.mubr.bf16.gmra.mrb[0].mxu0 %v2888
    %v3075 = vpop.f32.mrb[0].mxu0
    %v3076 = vadd.f32 0.0, %v3075
    %v3077 = vpop.f32.mrb[0].mxu0
    %v3078 = vadd.f32 0.0, %v3077
    %v3079 = vpop.f32.mrb[0].mxu0
    %v3080 = vpop.f32.mrb[0].mxu0
    %3081 = vdwg.mxu0
    %3082 = vmatprep.subr.bf16.mxu0 %v581
    %3083 = vmatpush1.bf16.msra.mxu0 %v580
    %3084 = vmatprep.subr.bf16.mxu0 %v589
    %3085 = vmatpush1.bf16.msra.mxu0 %v588
    %3086 = vmatprep.subr.bf16.mxu0 %v597
    %3087 = vmatpush1.bf16.msra.mxu0 %v596
    %3088 = vmatprep.subr.bf16.mxu0 %v605
    %3089 = vmatpush1.bf16.msra.mxu0 %v604
    %3090 = vmatprep.subr.bf16.mxu0 %v613
    %3091 = vmatpush1.bf16.msra.mxu0 %v612
    %3092 = vmatprep.subr.bf16.mxu0 %v621
    %3093 = vmatpush1.bf16.msra.mxu0 %v620
    %3094 = vmatprep.subr.bf16.mxu0 %v629
    %3095 = vmatpush1.bf16.msra.mxu0 %v628
    %3096 = vmatprep.subr.bf16.mxu0 %v637
    %3097 = vmatpush1.bf16.msra.mxu0 %v636
    %3098 = vmatprep.subr.bf16.mxu0 %v645
    %3099 = vmatpush1.bf16.msra.mxu0 %v644
    %3100 = vmatprep.subr.bf16.mxu0 %v653
    %3101 = vmatpush1.bf16.msra.mxu0 %v652
    %3102 = vmatprep.subr.bf16.mxu0 %v661
    %3103 = vmatpush1.bf16.msra.mxu0 %v660
    %3104 = vmatprep.subr.bf16.mxu0 %v669
    %3105 = vmatpush1.bf16.msra.mxu0 %v668
    %3106 = vmatprep.subr.bf16.mxu0 %v677
    %3107 = vmatpush1.bf16.msra.mxu0 %v676
    %3108 = vmatprep.subr.bf16.mxu0 %v685
    %3109 = vmatpush1.bf16.msra.mxu0 %v684
    %3110 = vmatprep.subr.bf16.mxu0 %v693
    %3111 = vmatpush1.bf16.msra.mxu0 %v692
    %3112 = vmatprep.subr.bf16.mxu0 %v701
    %3113 = vmatpush1.bf16.msra.mxu0 %v700
    %3114 = vmatprep.mubr.bf16.mxu0 %v2999
    %3115 = vmatmul.mubr.bf16.gmra.mrb[0].mxu0 %v2888
    %v3116 = vpop.f32.mrb[0].mxu0
    %v3117 = vadd.f32 0.0, %v3116
    %v3118 = vpop.f32.mrb[0].mxu0
    %v3119 = vadd.f32 0.0, %v3118
    %v3120 = vpop.f32.mrb[0].mxu0
    %v3121 = vpop.f32.mrb[0].mxu0
    %3122 = vdwg.mxu0
    %3123 = vmatprep.subr.bf16.mxu0 %v583
    %3124 = vmatpush1.bf16.msra.mxu0 %v582
    %3125 = vmatprep.subr.bf16.mxu0 %v591
    %3126 = vmatpush1.bf16.msra.mxu0 %v590
    %3127 = vmatprep.subr.bf16.mxu0 %v599
    %3128 = vmatpush1.bf16.msra.mxu0 %v598
    %3129 = vmatprep.subr.bf16.mxu0 %v607
    %3130 = vmatpush1.bf16.msra.mxu0 %v606
    %3131 = vmatprep.subr.bf16.mxu0 %v615
    %3132 = vmatpush1.bf16.msra.mxu0 %v614
    %3133 = vmatprep.subr.bf16.mxu0 %v623
    %3134 = vmatpush1.bf16.msra.mxu0 %v622
    %3135 = vmatprep.subr.bf16.mxu0 %v631
    %3136 = vmatpush1.bf16.msra.mxu0 %v630
    %3137 = vmatprep.subr.bf16.mxu0 %v639
    %3138 = vmatpush1.bf16.msra.mxu0 %v638
    %3139 = vmatprep.subr.bf16.mxu0 %v647
    %3140 = vmatpush1.bf16.msra.mxu0 %v646
    %3141 = vmatprep.subr.bf16.mxu0 %v655
    %3142 = vmatpush1.bf16.msra.mxu0 %v654
    %3143 = vmatprep.subr.bf16.mxu0 %v663
    %3144 = vmatpush1.bf16.msra.mxu0 %v662
    %3145 = vmatprep.subr.bf16.mxu0 %v671
    %3146 = vmatpush1.bf16.msra.mxu0 %v670
    %3147 = vmatprep.subr.bf16.mxu0 %v679
    %3148 = vmatpush1.bf16.msra.mxu0 %v678
    %3149 = vmatprep.subr.bf16.mxu0 %v687
    %3150 = vmatpush1.bf16.msra.mxu0 %v686
    %3151 = vmatprep.subr.bf16.mxu0 %v695
    %3152 = vmatpush1.bf16.msra.mxu0 %v694
    %3153 = vmatprep.subr.bf16.mxu0 %v703
    %3154 = vmatpush1.bf16.msra.mxu0 %v702
    %3155 = vmatprep.mubr.bf16.mxu0 %v2999
    %3156 = vmatmul.mubr.bf16.gmra.mrb[0].mxu0 %v2888
    %v3157 = vpop.f32.mrb[0].mxu0
    %v3158 = vadd.f32 0.0, %v3157
    %v3159 = vpop.f32.mrb[0].mxu0
    %v3160 = vadd.f32 0.0, %v3159
    %v3161 = vpop.f32.mrb[0].mxu0
    %v3162 = vpop.f32.mrb[0].mxu0
    %3163 = vdwg.mxu0
    %s3164 = scalar_lea.vmem %s0, 12
    %v3165 = vld [vmem:[%s3164] sm:$0x3]
    %3167 = vset.pattern.permute.xlu0 0
    %3168 = vperm.xlu0 %3167, %v3165
    %v3169 = vpop.permute.xlu0 %3168
    %v3171 = vmul.f32 %v3169, %v1006
    %v3172 = vmul.f32 %v3169, %v1010
    %v3173 = vmul.f32 %v3169, %v1014
    %v3174 = vmul.f32 %v3169, %v1018
    %v3175 = vadd.f32 %v3171, %v1031
    %v3176 = vadd.f32 %v3172, %v1035
    %v3177 = vadd.f32 %v3173, %v1039
    %v3178 = vadd.f32 %v3174, %v1043
    %v3179 = vadd.f32 %v3175, %v3035
    %v3180 = vadd.f32 %v3176, %v3037
    %v3181 = vadd.f32 %v3177, %v3076
    %v3182 = vadd.f32 %v3178, %v3078
    %v3183 = vxor.u32 %v3179, 2147483648
    %v3184 = vxor.u32 %v3180, 2147483648
    %v3185 = vxor.u32 %v3181, 2147483648
    %v3186 = vmul.f32 %v3183, 1.442695
    %v3187 = vpow.pop %v3186
    %v3188 = vmul.f32 %v3184, 1.442695
    %v3189 = vpow.pop %v3188
    %v3190 = vmul.f32 %v3185, 1.442695
    %v3191 = vpow.pop %v3190
    %v3192 = vadd.f32 %v3187, 1.0
    %v3193 = vadd.f32 %v3189, 1.0
    %v3194 = vadd.f32 %v3191, 1.0
    %v3195 = vrcp.pop %v3192
    %v3196 = vmul.f32 1.0, %v3195
    %v3197 = vrcp.pop %v3193
    %v3198 = vmul.f32 1.0, %v3197
    %v3199 = vrcp.pop %v3194
    %v3200 = vmul.f32 1.0, %v3199
    %v3201 = vtanh.pop %v3182
    %v3202 = vmul.f32 %v3198, %v2885
    %v3203 = vmul.f32 %v3196, %v3201
    %v3204 = vadd.f32 %v3202, %v3203
    %v3205 = vtanh.pop %v3204
    %v3206 = vmul.f32 %v3200, %v3205
    %v3207 = vpack.c.bf16 %v3206, %v3206
    %3208 = vmatprep.subr.bf16.mxu0 %v1210
    %3209 = vmatpush1.bf16.msra.mxu0 %v1209
    %3210 = vmatprep.subr.bf16.mxu0 %v1214
    %3211 = vmatpush1.bf16.msra.mxu0 %v1213
    %3212 = vmatprep.subr.bf16.mxu0 %v1218
    %3213 = vmatpush1.bf16.msra.mxu0 %v1217
    %3214 = vmatprep.subr.bf16.mxu0 %v1222
    %3215 = vmatpush1.bf16.msra.mxu0 %v1221
    %3216 = vmatprep.subr.bf16.mxu0 %v1226
    %3217 = vmatpush1.bf16.msra.mxu0 %v1225
    %3218 = vmatprep.subr.bf16.mxu0 %v1230
    %3219 = vmatpush1.bf16.msra.mxu0 %v1229
    %3220 = vmatprep.subr.bf16.mxu0 %v1234
    %3221 = vmatpush1.bf16.msra.mxu0 %v1233
    %3222 = vmatprep.subr.bf16.mxu0 %v1238
    %3223 = vmatpush1.bf16.msra.mxu0 %v1237
    %3224 = vmatprep.subr.bf16.mxu0 0
    %3225 = vmatpush1.bf16.msra.mxu0 0
    %3226 = vmatprep.subr.bf16.mxu0 0
    %3227 = vmatpush1.bf16.msra.mxu0 0
    %3228 = vmatprep.subr.bf16.mxu0 0
    %3229 = vmatpush1.bf16.msra.mxu0 0
    %3230 = vmatprep.subr.bf16.mxu0 0
    %3231 = vmatpush1.bf16.msra.mxu0 0
    %3232 = vmatprep.subr.bf16.mxu0 0
    %3233 = vmatpush1.bf16.msra.mxu0 0
    %3234 = vmatprep.subr.bf16.mxu0 0
    %3235 = vmatpush1.bf16.msra.mxu0 0
    %3236 = vmatprep.subr.bf16.mxu0 0
    %3237 = vmatpush1.bf16.msra.mxu0 0
    %3238 = vmatprep.subr.bf16.mxu0 0
    %3239 = vmatpush1.bf16.msra.mxu0 0
    %3240 = vmatprep.mubr.bf16.mxu0 0
    %3241 = vmatmul.mubr.bf16.gmra.mrb[0].mxu0 %v3207
    %v3242 = vpop.f32.mrb[0].mxu0
    %v3243 = vadd.f32 %v3117, %v3242
    %v3244 = vpop.f32.mrb[0].mxu0
    %v3245 = vadd.f32 %v3119, %v3244
    %v3246 = vpop.f32.mrb[0].mxu0
    %v3247 = vpop.f32.mrb[0].mxu0
    %3248 = vdwg.mxu0
    %3249 = vmatprep.subr.bf16.mxu0 %v1212
    %3250 = vmatpush1.bf16.msra.mxu0 %v1211
    %3251 = vmatprep.subr.bf16.mxu0 %v1216
    %3252 = vmatpush1.bf16.msra.mxu0 %v1215
    %3253 = vmatprep.subr.bf16.mxu0 %v1220
    %3254 = vmatpush1.bf16.msra.mxu0 %v1219
    %3255 = vmatprep.subr.bf16.mxu0 %v1224
    %3256 = vmatpush1.bf16.msra.mxu0 %v1223
    %3257 = vmatprep.subr.bf16.mxu0 %v1228
    %3258 = vmatpush1.bf16.msra.mxu0 %v1227
    %3259 = vmatprep.subr.bf16.mxu0 %v1232
    %3260 = vmatpush1.bf16.msra.mxu0 %v1231
    %3261 = vmatprep.subr.bf16.mxu0 %v1236
    %3262 = vmatpush1.bf16.msra.mxu0 %v1235
    %3263 = vmatprep.subr.bf16.mxu0 %v1240
    %3264 = vmatpush1.bf16.msra.mxu0 %v1239
    %3265 = vmatprep.subr.bf16.mxu0 0
    %3266 = vmatpush1.bf16.msra.mxu0 0
    %3267 = vmatprep.subr.bf16.mxu0 0
    %3268 = vmatpush1.bf16.msra.mxu0 0
    %3269 = vmatprep.subr.bf16.mxu0 0
    %3270 = vmatpush1.bf16.msra.mxu0 0
    %3271 = vmatprep.subr.bf16.mxu0 0
    %3272 = vmatpush1.bf16.msra.mxu0 0
    %3273 = vmatprep.subr.bf16.mxu0 0
    %3274 = vmatpush1.bf16.msra.mxu0 0
    %3275 = vmatprep.subr.bf16.mxu0 0
    %3276 = vmatpush1.bf16.msra.mxu0 0
    %3277 = vmatprep.subr.bf16.mxu0 0
    %3278 = vmatpush1.bf16.msra.mxu0 0
    %3279 = vmatprep.subr.bf16.mxu0 0
    %3280 = vmatpush1.bf16.msra.mxu0 0
    %3281 = vmatprep.mubr.bf16.mxu0 0
    %3282 = vmatmul.mubr.bf16.gmra.mrb[0].mxu0 %v3207
    %v3283 = vpop.f32.mrb[0].mxu0
    %v3284 = vadd.f32 %v3158, %v3283
    %v3285 = vpop.f32.mrb[0].mxu0
    %v3286 = vadd.f32 %v3160, %v3285
    %v3287 = vpop.f32.mrb[0].mxu0
    %v3288 = vpop.f32.mrb[0].mxu0
    %3289 = vdwg.mxu0
    %v3290 = vadd.f32 %v3243, %v1359
    %v3291 = vadd.f32 %v3245, %v1363
    %v3292 = vadd.f32 %v3284, %v1367
    %v3293 = vadd.f32 %v3286, %v1371
    %v3294 = vxor.u32 %v3290, 2147483648
    %v3295 = vxor.u32 %v3291, 2147483648
    %v3296 = vxor.u32 %v3292, 2147483648
    %v3297 = vmul.f32 %v3294, 1.442695
    %v3298 = vpow.pop %v3297
    %v3299 = vmul.f32 %v3295, 1.442695
    %v3300 = vpow.pop %v3299
    %v3301 = vmul.f32 %v3296, 1.442695
    %v3302 = vpow.pop %v3301
    %v3303 = vadd.f32 %v3298, 1.0
    %v3304 = vadd.f32 %v3300, 1.0
    %v3305 = vadd.f32 %v3302, 1.0
    %v3306 = vrcp.pop %v3303
    %v3307 = vmul.f32 1.0, %v3306
    %v3308 = vrcp.pop %v3304
    %v3309 = vmul.f32 1.0, %v3308
    %v3310 = vrcp.pop %v3305
    %v3311 = vmul.f32 1.0, %v3310
    %v3312 = vtanh.pop %v3293
    %v3313 = vmul.f32 %v3309, %v2996
    %v3314 = vmul.f32 %v3307, %v3312
    %v3315 = vadd.f32 %v3313, %v3314
    %v3316 = vtanh.pop %v3315
    %v3317 = vmul.f32 %v3311, %v3316
    %v3318 = vpack.c.bf16 %v3317, %v3317
    %3319 = vmatprep.subr.bf16.mxu0 %v577
    %3320 = vmatpush1.bf16.msra.mxu0 %v576
    %3321 = vmatprep.subr.bf16.mxu0 %v585
    %3322 = vmatpush1.bf16.msra.mxu0 %v584
    %3323 = vmatprep.subr.bf16.mxu0 %v593
    %3324 = vmatpush1.bf16.msra.mxu0 %v592
    %3325 = vmatprep.subr.bf16.mxu0 %v601
    %3326 = vmatpush1.bf16.msra.mxu0 %v600
    %3327 = vmatprep.subr.bf16.mxu0 %v609
    %3328 = vmatpush1.bf16.msra.mxu0 %v608
    %3329 = vmatprep.subr.bf16.mxu0 %v617
    %3330 = vmatpush1.bf16.msra.mxu0 %v616
    %3331 = vmatprep.subr.bf16.mxu0 %v625
    %3332 = vmatpush1.bf16.msra.mxu0 %v624
    %3333 = vmatprep.subr.bf16.mxu0 %v633
    %3334 = vmatpush1.bf16.msra.mxu0 %v632
    %3335 = vmatprep.subr.bf16.mxu0 %v641
    %3336 = vmatpush1.bf16.msra.mxu0 %v640
    %3337 = vmatprep.subr.bf16.mxu0 %v649
    %3338 = vmatpush1.bf16.msra.mxu0 %v648
    %3339 = vmatprep.subr.bf16.mxu0 %v657
    %3340 = vmatpush1.bf16.msra.mxu0 %v656
    %3341 = vmatprep.subr.bf16.mxu0 %v665
    %3342 = vmatpush1.bf16.msra.mxu0 %v664
    %3343 = vmatprep.subr.bf16.mxu0 %v673
    %3344 = vmatpush1.bf16.msra.mxu0 %v672
    %3345 = vmatprep.subr.bf16.mxu0 %v681
    %3346 = vmatpush1.bf16.msra.mxu0 %v680
    %3347 = vmatprep.subr.bf16.mxu0 %v689
    %3348 = vmatpush1.bf16.msra.mxu0 %v688
    %3349 = vmatprep.subr.bf16.mxu0 %v697
    %3350 = vmatpush1.bf16.msra.mxu0 %v696
    %3351 = vmatprep.mubr.bf16.mxu0 %v3318
    %3352 = vmatmul.mubr.bf16.gmra.mrb[0].mxu0 %v3207
    %v3353 = vpop.f32.mrb[0].mxu0
    %v3354 = vadd.f32 0.0, %v3353
    %v3355 = vpop.f32.mrb[0].mxu0
    %v3356 = vadd.f32 0.0, %v3355
    %v3357 = vpop.f32.mrb[0].mxu0
    %v3358 = vpop.f32.mrb[0].mxu0
    %3359 = vdwg.mxu0
    %3360 = vmatprep.subr.bf16.mxu0 %v579
    %3361 = vmatpush1.bf16.msra.mxu0 %v578
    %3362 = vmatprep.subr.bf16.mxu0 %v587
    %3363 = vmatpush1.bf16.msra.mxu0 %v586
    %3364 = vmatprep.subr.bf16.mxu0 %v595
    %3365 = vmatpush1.bf16.msra.mxu0 %v594
    %3366 = vmatprep.subr.bf16.mxu0 %v603
    %3367 = vmatpush1.bf16.msra.mxu0 %v602
    %3368 = vmatprep.subr.bf16.mxu0 %v611
    %3369 = vmatpush1.bf16.msra.mxu0 %v610
    %3370 = vmatprep.subr.bf16.mxu0 %v619
    %3371 = vmatpush1.bf16.msra.mxu0 %v618
    %3372 = vmatprep.subr.bf16.mxu0 %v627
    %3373 = vmatpush1.bf16.msra.mxu0 %v626
    %3374 = vmatprep.subr.bf16.mxu0 %v635
    %3375 = vmatpush1.bf16.msra.mxu0 %v634
    %3376 = vmatprep.subr.bf16.mxu0 %v643
    %3377 = vmatpush1.bf16.msra.mxu0 %v642
    %3378 = vmatprep.subr.bf16.mxu0 %v651
    %3379 = vmatpush1.bf16.msra.mxu0 %v650
    %3380 = vmatprep.subr.bf16.mxu0 %v659
    %3381 = vmatpush1.bf16.msra.mxu0 %v658
    %3382 = vmatprep.subr.bf16.mxu0 %v667
    %3383 = vmatpush1.bf16.msra.mxu0 %v666
    %3384 = vmatprep.subr.bf16.mxu0 %v675
    %3385 = vmatpush1.bf16.msra.mxu0 %v674
    %3386 = vmatprep.subr.bf16.mxu0 %v683
    %3387 = vmatpush1.bf16.msra.mxu0 %v682
    %3388 = vmatprep.subr.bf16.mxu0 %v691
    %3389 = vmatpush1.bf16.msra.mxu0 %v690
    %3390 = vmatprep.subr.bf16.mxu0 %v699
    %3391 = vmatpush1.bf16.msra.mxu0 %v698
    %3392 = vmatprep.mubr.bf16.mxu0 %v3318
    %3393 = vmatmul.mubr.bf16.gmra.mrb[0].mxu0 %v3207
    %v3394 = vpop.f32.mrb[0].mxu0
    %v3395 = vadd.f32 0.0, %v3394
    %v3396 = vpop.f32.mrb[0].mxu0
    %v3397 = vadd.f32 0.0, %v3396
    %v3398 = vpop.f32.mrb[0].mxu0
    %v3399 = vpop.f32.mrb[0].mxu0
    %3400 = vdwg.mxu0
    %3401 = vmatprep.subr.bf16.mxu0 %v581
    %3402 = vmatpush1.bf16.msra.mxu0 %v580
    %3403 = vmatprep.subr.bf16.mxu0 %v589
    %3404 = vmatpush1.bf16.msra.mxu0 %v588
    %3405 = vmatprep.subr.bf16.mxu0 %v597
    %3406 = vmatpush1.bf16.msra.mxu0 %v596
    %3407 = vmatprep.subr.bf16.mxu0 %v605
    %3408 = vmatpush1.bf16.msra.mxu0 %v604
    %3409 = vmatprep.subr.bf16.mxu0 %v613
    %3410 = vmatpush1.bf16.msra.mxu0 %v612
    %3411 = vmatprep.subr.bf16.mxu0 %v621
    %3412 = vmatpush1.bf16.msra.mxu0 %v620
    %3413 = vmatprep.subr.bf16.mxu0 %v629
    %3414 = vmatpush1.bf16.msra.mxu0 %v628
    %3415 = vmatprep.subr.bf16.mxu0 %v637
    %3416 = vmatpush1.bf16.msra.mxu0 %v636
    %3417 = vmatprep.subr.bf16.mxu0 %v645
    %3418 = vmatpush1.bf16.msra.mxu0 %v644
    %3419 = vmatprep.subr.bf16.mxu0 %v653
    %3420 = vmatpush1.bf16.msra.mxu0 %v652
    %3421 = vmatprep.subr.bf16.mxu0 %v661
    %3422 = vmatpush1.bf16.msra.mxu0 %v660
    %3423 = vmatprep.subr.bf16.mxu0 %v669
    %3424 = vmatpush1.bf16.msra.mxu0 %v668
    %3425 = vmatprep.subr.bf16.mxu0 %v677
    %3426 = vmatpush1.bf16.msra.mxu0 %v676
    %3427 = vmatprep.subr.bf16.mxu0 %v685
    %3428 = vmatpush1.bf16.msra.mxu0 %v684
    %3429 = vmatprep.subr.bf16.mxu0 %v693
    %3430 = vmatpush1.bf16.msra.mxu0 %v692
    %3431 = vmatprep.subr.bf16.mxu0 %v701
    %3432 = vmatpush1.bf16.msra.mxu0 %v700
    %3433 = vmatprep.mubr.bf16.mxu0 %v3318
    %3434 = vmatmul.mubr.bf16.gmra.mrb[0].mxu0 %v3207
    %v3435 = vpop.f32.mrb[0].mxu0
    %v3436 = vadd.f32 0.0, %v3435
    %v3437 = vpop.f32.mrb[0].mxu0
    %v3438 = vadd.f32 0.0, %v3437
    %v3439 = vpop.f32.mrb[0].mxu0
    %v3440 = vpop.f32.mrb[0].mxu0
    %3441 = vdwg.mxu0
    %3442 = vmatprep.subr.bf16.mxu0 %v583
    %3443 = vmatpush1.bf16.msra.mxu0 %v582
    %3444 = vmatprep.subr.bf16.mxu0 %v591
    %3445 = vmatpush1.bf16.msra.mxu0 %v590
    %3446 = vmatprep.subr.bf16.mxu0 %v599
    %3447 = vmatpush1.bf16.msra.mxu0 %v598
    %3448 = vmatprep.subr.bf16.mxu0 %v607
    %3449 = vmatpush1.bf16.msra.mxu0 %v606
    %3450 = vmatprep.subr.bf16.mxu0 %v615
    %3451 = vmatpush1.bf16.msra.mxu0 %v614
    %3452 = vmatprep.subr.bf16.mxu0 %v623
    %3453 = vmatpush1.bf16.msra.mxu0 %v622
    %3454 = vmatprep.subr.bf16.mxu0 %v631
    %3455 = vmatpush1.bf16.msra.mxu0 %v630
    %3456 = vmatprep.subr.bf16.mxu0 %v639
    %3457 = vmatpush1.bf16.msra.mxu0 %v638
    %3458 = vmatprep.subr.bf16.mxu0 %v647
    %3459 = vmatpush1.bf16.msra.mxu0 %v646
    %3460 = vmatprep.subr.bf16.mxu0 %v655
    %3461 = vmatpush1.bf16.msra.mxu0 %v654
    %3462 = vmatprep.subr.bf16.mxu0 %v663
    %3463 = vmatpush1.bf16.msra.mxu0 %v662
    %3464 = vmatprep.subr.bf16.mxu0 %v671
    %3465 = vmatpush1.bf16.msra.mxu0 %v670
    %3466 = vmatprep.subr.bf16.mxu0 %v679
    %3467 = vmatpush1.bf16.msra.mxu0 %v678
    %3468 = vmatprep.subr.bf16.mxu0 %v687
    %3469 = vmatpush1.bf16.msra.mxu0 %v686
    %3470 = vmatprep.subr.bf16.mxu0 %v695
    %3471 = vmatpush1.bf16.msra.mxu0 %v694
    %3472 = vmatprep.subr.bf16.mxu0 %v703
    %3473 = vmatpush1.bf16.msra.mxu0 %v702
    %3474 = vmatprep.mubr.bf16.mxu0 %v3318
    %3475 = vmatmul.mubr.bf16.gmra.mrb[0].mxu0 %v3207
    %v3476 = vpop.f32.mrb[0].mxu0
    %v3477 = vadd.f32 0.0, %v3476
    %v3478 = vpop.f32.mrb[0].mxu0
    %v3479 = vadd.f32 0.0, %v3478
    %v3480 = vpop.f32.mrb[0].mxu0
    %v3481 = vpop.f32.mrb[0].mxu0
    %3482 = vdwg.mxu0
    %s3483 = scalar_lea.vmem %s0, 14
    %v3484 = vld [vmem:[%s3483] sm:$0x3]
    %3486 = vset.pattern.permute.xlu0 0
    %3487 = vperm.xlu0 %3486, %v3484
    %v3488 = vpop.permute.xlu0 %3487
    %v3490 = vmul.f32 %v3488, %v1006
    %v3491 = vmul.f32 %v3488, %v1010
    %v3492 = vmul.f32 %v3488, %v1014
    %v3493 = vmul.f32 %v3488, %v1018
    %v3494 = vadd.f32 %v3490, %v1031
    %v3495 = vadd.f32 %v3491, %v1035
    %v3496 = vadd.f32 %v3492, %v1039
    %v3497 = vadd.f32 %v3493, %v1043
    %v3498 = vadd.f32 %v3494, %v3354
    %v3499 = vadd.f32 %v3495, %v3356
    %v3500 = vadd.f32 %v3496, %v3395
    %v3501 = vadd.f32 %v3497, %v3397
    %v3502 = vxor.u32 %v3498, 2147483648
    %v3503 = vxor.u32 %v3499, 2147483648
    %v3504 = vxor.u32 %v3500, 2147483648
    %v3505 = vmul.f32 %v3502, 1.442695
    %v3506 = vpow.pop %v3505
    %v3507 = vmul.f32 %v3503, 1.442695
    %v3508 = vpow.pop %v3507
    %v3509 = vmul.f32 %v3504, 1.442695
    %v3510 = vpow.pop %v3509
    %v3511 = vadd.f32 %v3506, 1.0
    %v3512 = vadd.f32 %v3508, 1.0
    %v3513 = vadd.f32 %v3510, 1.0
    %v3514 = vrcp.pop %v3511
    %v3515 = vmul.f32 1.0, %v3514
    %v3516 = vrcp.pop %v3512
    %v3517 = vmul.f32 1.0, %v3516
    %v3518 = vrcp.pop %v3513
    %v3519 = vmul.f32 1.0, %v3518
    %v3520 = vtanh.pop %v3501
    %v3521 = vmul.f32 %v3517, %v3204
    %v3522 = vmul.f32 %v3515, %v3520
    %v3523 = vadd.f32 %v3521, %v3522
    %v3524 = vtanh.pop %v3523
    %v3525 = vmul.f32 %v3519, %v3524
    %v3526 = vpack.c.bf16 %v3525, %v3525
    %3527 = vmatprep.subr.bf16.mxu0 %v1210
    %3528 = vmatpush1.bf16.msra.mxu0 %v1209
    %3529 = vmatprep.subr.bf16.mxu0 %v1214
    %3530 = vmatpush1.bf16.msra.mxu0 %v1213
    %3531 = vmatprep.subr.bf16.mxu0 %v1218
    %3532 = vmatpush1.bf16.msra.mxu0 %v1217
    %3533 = vmatprep.subr.bf16.mxu0 %v1222
    %3534 = vmatpush1.bf16.msra.mxu0 %v1221
    %3535 = vmatprep.subr.bf16.mxu0 %v1226
    %3536 = vmatpush1.bf16.msra.mxu0 %v1225
    %3537 = vmatprep.subr.bf16.mxu0 %v1230
    %3538 = vmatpush1.bf16.msra.mxu0 %v1229
    %3539 = vmatprep.subr.bf16.mxu0 %v1234
    %3540 = vmatpush1.bf16.msra.mxu0 %v1233
    %3541 = vmatprep.subr.bf16.mxu0 %v1238
    %3542 = vmatpush1.bf16.msra.mxu0 %v1237
    %3543 = vmatprep.subr.bf16.mxu0 0
    %3544 = vmatpush1.bf16.msra.mxu0 0
    %3545 = vmatprep.subr.bf16.mxu0 0
    %3546 = vmatpush1.bf16.msra.mxu0 0
    %3547 = vmatprep.subr.bf16.mxu0 0
    %3548 = vmatpush1.bf16.msra.mxu0 0
    %3549 = vmatprep.subr.bf16.mxu0 0
    %3550 = vmatpush1.bf16.msra.mxu0 0
    %3551 = vmatprep.subr.bf16.mxu0 0
    %3552 = vmatpush1.bf16.msra.mxu0 0
    %3553 = vmatprep.subr.bf16.mxu0 0
    %3554 = vmatpush1.bf16.msra.mxu0 0
    %3555 = vmatprep.subr.bf16.mxu0 0
    %3556 = vmatpush1.bf16.msra.mxu0 0
    %3557 = vmatprep.subr.bf16.mxu0 0
    %3558 = vmatpush1.bf16.msra.mxu0 0
    %3559 = vmatprep.mubr.bf16.mxu0 0
    %3560 = vmatmul.mubr.bf16.gmra.mrb[0].mxu0 %v3526
    %v3561 = vpop.f32.mrb[0].mxu0
    %v3562 = vadd.f32 %v3436, %v3561
    %v3563 = vpop.f32.mrb[0].mxu0
    %v3564 = vadd.f32 %v3438, %v3563
    %v3565 = vpop.f32.mrb[0].mxu0
    %v3566 = vpop.f32.mrb[0].mxu0
    %3567 = vdwg.mxu0
    %3568 = vmatprep.subr.bf16.mxu0 %v1212
    %3569 = vmatpush1.bf16.msra.mxu0 %v1211
    %3570 = vmatprep.subr.bf16.mxu0 %v1216
    %3571 = vmatpush1.bf16.msra.mxu0 %v1215
    %3572 = vmatprep.subr.bf16.mxu0 %v1220
    %3573 = vmatpush1.bf16.msra.mxu0 %v1219
    %3574 = vmatprep.subr.bf16.mxu0 %v1224
    %3575 = vmatpush1.bf16.msra.mxu0 %v1223
    %3576 = vmatprep.subr.bf16.mxu0 %v1228
    %3577 = vmatpush1.bf16.msra.mxu0 %v1227
    %3578 = vmatprep.subr.bf16.mxu0 %v1232
    %3579 = vmatpush1.bf16.msra.mxu0 %v1231
    %3580 = vmatprep.subr.bf16.mxu0 %v1236
    %3581 = vmatpush1.bf16.msra.mxu0 %v1235
    %3582 = vmatprep.subr.bf16.mxu0 %v1240
    %3583 = vmatpush1.bf16.msra.mxu0 %v1239
    %3584 = vmatprep.subr.bf16.mxu0 0
    %3585 = vmatpush1.bf16.msra.mxu0 0
    %3586 = vmatprep.subr.bf16.mxu0 0
    %3587 = vmatpush1.bf16.msra.mxu0 0
    %3588 = vmatprep.subr.bf16.mxu0 0
    %3589 = vmatpush1.bf16.msra.mxu0 0
    %3590 = vmatprep.subr.bf16.mxu0 0
    %3591 = vmatpush1.bf16.msra.mxu0 0
    %3592 = vmatprep.subr.bf16.mxu0 0
    %3593 = vmatpush1.bf16.msra.mxu0 0
    %3594 = vmatprep.subr.bf16.mxu0 0
    %3595 = vmatpush1.bf16.msra.mxu0 0
    %3596 = vmatprep.subr.bf16.mxu0 0
    %3597 = vmatpush1.bf16.msra.mxu0 0
    %3598 = vmatprep.subr.bf16.mxu0 0
    %3599 = vmatpush1.bf16.msra.mxu0 0
    %3600 = vmatprep.mubr.bf16.mxu0 0
    %3601 = vmatmul.mubr.bf16.gmra.mrb[0].mxu0 %v3526
    %v3602 = vpop.f32.mrb[0].mxu0
    %v3603 = vadd.f32 %v3477, %v3602
    %v3604 = vpop.f32.mrb[0].mxu0
    %v3605 = vadd.f32 %v3479, %v3604
    %v3606 = vpop.f32.mrb[0].mxu0
    %v3607 = vpop.f32.mrb[0].mxu0
    %3608 = vdwg.mxu0
    %v3609 = vadd.f32 %v3562, %v1359
    %v3610 = vadd.f32 %v3564, %v1363
    %v3611 = vadd.f32 %v3603, %v1367
    %v3612 = vadd.f32 %v3605, %v1371
    %v3613 = vxor.u32 %v3609, 2147483648
    %v3614 = vxor.u32 %v3610, 2147483648
    %v3615 = vxor.u32 %v3611, 2147483648
    %v3616 = vmul.f32 %v3613, 1.442695
    %v3617 = vpow.pop %v3616
    %v3618 = vmul.f32 %v3614, 1.442695
    %v3619 = vpow.pop %v3618
    %v3620 = vmul.f32 %v3615, 1.442695
    %v3621 = vpow.pop %v3620
    %v3622 = vadd.f32 %v3617, 1.0
    %v3623 = vadd.f32 %v3619, 1.0
    %v3624 = vadd.f32 %v3621, 1.0
    %v3625 = vrcp.pop %v3622
    %v3626 = vmul.f32 1.0, %v3625
    %v3627 = vrcp.pop %v3623
    %v3628 = vmul.f32 1.0, %v3627
    %v3629 = vrcp.pop %v3624
    %v3630 = vmul.f32 1.0, %v3629
    %v3631 = vtanh.pop %v3612
    %v3632 = vmul.f32 %v3628, %v3315
    %v3633 = vmul.f32 %v3626, %v3631
    %v3634 = vadd.f32 %v3632, %v3633
    %v3635 = vtanh.pop %v3634
    %v3636 = vmul.f32 %v3630, %v3635
    %v3637 = vld [vmem:[%s6] sm:$0x1]
    %v3639 = vlaneseq
    %v3640 = vshrl.u32 %v3639, 7
    %v3641 = vsub.s32 0, %v3640
    %v3642 = vrot.slane %v3637, %v3641
    %v3644 = vmul.f32 %v3636, %v3642
    %vm3645 = vcmask 1041408
    %v3646 = vsel %vm3645, %v3644, 0.0
    %3647 = vadd.xlane.f32.xlu0 %v3646
    %v3648 = vpop.xlane.xlu0 %3647
    %v3649 = vld [vmem:[#allocation2] sm:$0x1]
    %v3651 = vlaneseq
    %v3652 = vshrl.u32 %v3651, 7
    %v3653 = vsub.s32 0, %v3652
    %v3654 = vrot.slane %v3649, %v3653
    %v3656 = vadd.f32 %v3648, %v3654
    %vm3657 = vcmask 1024
    %3658 = vst.msk [vmem:[%s8] sm:$0x3] %vm3657, %v3656
    // Predicated region
    $region42: #{lstm_model_forward.1} parent=1 // pred_check
      _
    $region43: #{lstm_model_forward.1} parent=1 // pred_check_branch
      %3660 = sbr.rel (0) target = $region45
    $region44: #{lstm_model_forward.1} parent=1 // pred_region
      _
    $region45: #{lstm_model_forward.1} parent=1 // pred_fallthru
      _
    // Predicated region
    $region46: #{lstm_model_forward.1} parent=1 // pred_check
      _
    $region47: #{lstm_model_forward.1} parent=1 // pred_check_branch
      %3662 = sbr.rel (0) target = $region49
    $region48: #{lstm_model_forward.1} parent=1 // pred_region
      _
    $region49: #{lstm_model_forward.1} parent=1 // pred_fallthru
      _
    %3663 = vsyncpa [#allocation4], 1
    %3664 = vsyncpa [#allocation6], 1

</llo_original>
